<compile_context>
chip_gen: v7x
topology: tpu7x:2x2x1
jax: 0.10.0
libtpu: 0.0.40
codegen_flags: <defaults>
</compile_context>

<pallas_src>
import jax
import jax.numpy as jnp
from jax.experimental import pallas as pl
from jax.experimental.pallas import tpu as pltpu

D_MODEL = 32
NHEAD = 4
HEAD_DIM = D_MODEL // NHEAD
DIM_FF = 64
NUM_LAYERS = 2
SEQ = 8
BATCH = 2
TOKENS = BATCH * SEQ          # flattened (B*S) sublane axis
EPS = 1e-5


def _layernorm(x, gamma, beta):
    mu = jnp.mean(x, axis=-1, keepdims=True)
    var = jnp.mean((x - mu) ** 2, axis=-1, keepdims=True)
    return (x - mu) * jax.lax.rsqrt(var + EPS) * gamma + beta


def encoder_kernel(x_ref,
                   wqkv_ref, bqkv_ref, wo_ref, bo_ref,
                   g1_ref, be1_ref,
                   w1_ref, b1_ref, w2_ref, b2_ref,
                   g2_ref, be2_ref,
                   gf_ref, bf_ref, o_ref):
    f32 = jnp.float32
    x = x_ref[...]                                       # (B*S, D) = (16, 32)

    # Static Python unroll is fine at 2 layers; switch to lax.fori_loop /
    # a layer grid axis if NUM_LAYERS grows enough to create vreg pressure.
    for l in range(NUM_LAYERS):
        # ---------- fused QKV projection: one (16,32)@(32,96) matmul ----------
        qkv = jnp.dot(x, wqkv_ref[l], preferred_element_type=f32) + bqkv_ref[l]  # (16, 96)
        q = qkv[:, 0 * D_MODEL:1 * D_MODEL]              # (16, 32), heads on lanes, scale folded
        k = qkv[:, 1 * D_MODEL:2 * D_MODEL]
        v = qkv[:, 2 * D_MODEL:3 * D_MODEL]

        # ---------- per (batch, head) scores / softmax / context ----------
        ctx_rows = []
        for b in range(BATCH):
            r0 = b * SEQ
            head_ctx = []
            for h in range(NHEAD):
                c0 = h * HEAD_DIM
                qbh = q[r0:r0 + SEQ, c0:c0 + HEAD_DIM]   # (S, Dh)
                kbh = k[r0:r0 + SEQ, c0:c0 + HEAD_DIM]
                vbh = v[r0:r0 + SEQ, c0:c0 + HEAD_DIM]
                # contract Dh without an explicit transpose
                s = jax.lax.dot_general(qbh, kbh, (((1,), (1,)), ((), ())),
                                        preferred_element_type=f32)      # (S, S)
                s = s - jnp.max(s, axis=-1, keepdims=True)
                p = jnp.exp(s)
                p = p * pl.reciprocal(jnp.sum(p, axis=-1, keepdims=True), approx=True)
                head_ctx.append(jnp.dot(p, vbh, preferred_element_type=f32))  # (S, Dh)
            ctx_rows.append(jnp.concatenate(head_ctx, axis=-1))          # (S, D)
        ctx = jnp.concatenate(ctx_rows, axis=0)                          # (B*S, D)

        # ---------- output projection: one (16,32)@(32,32) matmul ----------
        attn = jnp.dot(ctx, wo_ref[l], preferred_element_type=f32) + bo_ref[l]

        # ---------- residual + LayerNorm 1 ----------
        y = _layernorm(x + attn, g1_ref[l], be1_ref[l])

        # ---------- feed-forward (ReLU) ----------
        h1 = jnp.dot(y, w1_ref[l], preferred_element_type=f32) + b1_ref[l]   # (16, 64)
        h1 = jnp.maximum(h1, 0.0)
        h2 = jnp.dot(h1, w2_ref[l], preferred_element_type=f32) + b2_ref[l]  # (16, 32)

        # ---------- residual + LayerNorm 2 ----------
        x = _layernorm(y + h2, g2_ref[l], be2_ref[l])

    # ---------- final LayerNorm of the encoder ----------
    o_ref[...] = _layernorm(x, gf_ref[...], bf_ref[...])


def init_torch_style_params(key, d_model, nhead, dim_ff, num_layers):
    """Random weights in PyTorch nn.TransformerEncoderLayer layout."""
    s = 0.1
    layers = []
    for i in range(num_layers):
        ks = jax.random.split(jax.random.fold_in(key, i), 8)
        layers.append({
            "in_proj_weight": s * jax.random.normal(ks[0], (3 * d_model, d_model), jnp.float32),
            "in_proj_bias":   s * jax.random.normal(ks[1], (3 * d_model,), jnp.float32),
            "out_proj_weight": s * jax.random.normal(ks[2], (d_model, d_model), jnp.float32),
            "out_proj_bias":   s * jax.random.normal(ks[3], (d_model,), jnp.float32),
            "ln1_gamma": jnp.ones((d_model,), jnp.float32),
            "ln1_beta":  jnp.zeros((d_model,), jnp.float32),
            "linear1_weight": s * jax.random.normal(ks[4], (dim_ff, d_model), jnp.float32),
            "linear1_bias":   s * jax.random.normal(ks[5], (dim_ff,), jnp.float32),
            "linear2_weight": s * jax.random.normal(ks[6], (d_model, dim_ff), jnp.float32),
            "linear2_bias":   s * jax.random.normal(ks[7], (d_model,), jnp.float32),
            "ln2_gamma": jnp.ones((d_model,), jnp.float32),
            "ln2_beta":  jnp.zeros((d_model,), jnp.float32),
        })
    final_norm = {"gamma": jnp.ones((d_model,), jnp.float32),
                  "beta":  jnp.zeros((d_model,), jnp.float32)}
    return layers, final_norm


def pack_params(layer_params, final_norm):
    """Pre-transpose / pre-fuse / pre-scale weights into the (input, output)
    layouts the fused kernel consumes. No batch/head replication: every weight
    is stored exactly once. All of this is free wrapper-side plumbing."""
    D, Dh, FF = D_MODEL, HEAD_DIM, DIM_FF
    scale = 1.0 / (Dh ** 0.5)

    keys = ["wqkv", "bqkv", "wo", "bo", "g1", "be1",
            "w1", "b1", "w2", "b2", "g2", "be2"]
    acc = {k: [] for k in keys}
    for p in layer_params:
        w, b = p["in_proj_weight"], p["in_proj_bias"]            # (3D, D), (3D,)
        wq_t, wk_t, wv_t = w[:D], w[D:2 * D], w[2 * D:]
        bq_t, bk_t, bv_t = b[:D], b[D:2 * D], b[2 * D:]
        # fused (D, 3D) weight, y = x @ wqkv; 1/sqrt(Dh) folded into the Q slice
        acc["wqkv"].append(jnp.concatenate([wq_t.T * scale, wk_t.T, wv_t.T], axis=1))
        acc["bqkv"].append(jnp.concatenate([bq_t * scale, bk_t, bv_t]).reshape(1, 3 * D))

        acc["wo"].append(p["out_proj_weight"].T)                  # (D, D) (in, out)
        acc["bo"].append(p["out_proj_bias"].reshape(1, D))

        acc["g1"].append(p["ln1_gamma"].reshape(1, D))
        acc["be1"].append(p["ln1_beta"].reshape(1, D))

        acc["w1"].append(p["linear1_weight"].T)                   # (D, FF)
        acc["b1"].append(p["linear1_bias"].reshape(1, FF))
        acc["w2"].append(p["linear2_weight"].T)                   # (FF, D)
        acc["b2"].append(p["linear2_bias"].reshape(1, D))

        acc["g2"].append(p["ln2_gamma"].reshape(1, D))
        acc["be2"].append(p["ln2_beta"].reshape(1, D))

    packed = {k: jnp.stack(v, axis=0) for k, v in acc.items()}
    packed["gf"] = final_norm["gamma"].reshape(1, D)
    packed["bf"] = final_norm["beta"].reshape(1, D)
    return packed


_ARG_ORDER = ["wqkv", "bqkv", "wo", "bo", "g1", "be1",
              "w1", "b1", "w2", "b2", "g2", "be2", "gf", "bf"]


@jax.jit
def transformer_encoder(x, packed):
    B, S, D = x.shape
    x2d = x.reshape(B * S, D)                    # wrapper-side flatten (free plumbing)
    args = [packed[k] for k in _ARG_ORDER]
    vmem = pl.BlockSpec(memory_space=pltpu.MemorySpace.VMEM)
    out2d = pl.pallas_call(
        encoder_kernel,
        out_shape=jax.ShapeDtypeStruct((B * S, D), jnp.float32),
        in_specs=[vmem] * (1 + len(args)),
        out_specs=vmem,
    )(x2d, *args)
    return out2d.reshape(B, S, D)


if __name__ == "__main__":
    key = jax.random.PRNGKey(0)
    kx, kp = jax.random.split(key)

    x = jax.random.normal(kx, (BATCH, SEQ, D_MODEL), jnp.float32)
    layer_params, final_norm = init_torch_style_params(kp, D_MODEL, NHEAD, DIM_FF, NUM_LAYERS)
    packed = pack_params(layer_params, final_norm)

    out = transformer_encoder(x, packed)
    out = jax.block_until_ready(out)
    assert out.shape == (BATCH, SEQ, D_MODEL)
    assert bool(jnp.all(jnp.isfinite(out)))
    print("KERNEL_OK")
</pallas_src>

<mosaic_0001>
module attributes {stable_mosaic.version = 11 : i64} {
  func.func @encoder_kernel(%arg0: memref<16x32xf32, #tpu.memory_space<vmem>>, %arg1: memref<2x32x96xf32, #tpu.memory_space<vmem>>, %arg2: memref<2x1x96xf32, #tpu.memory_space<vmem>>, %arg3: memref<2x32x32xf32, #tpu.memory_space<vmem>>, %arg4: memref<2x1x32xf32, #tpu.memory_space<vmem>>, %arg5: memref<2x1x32xf32, #tpu.memory_space<vmem>>, %arg6: memref<2x1x32xf32, #tpu.memory_space<vmem>>, %arg7: memref<2x32x64xf32, #tpu.memory_space<vmem>>, %arg8: memref<2x1x64xf32, #tpu.memory_space<vmem>>, %arg9: memref<2x64x32xf32, #tpu.memory_space<vmem>>, %arg10: memref<2x1x32xf32, #tpu.memory_space<vmem>>, %arg11: memref<2x1x32xf32, #tpu.memory_space<vmem>>, %arg12: memref<2x1x32xf32, #tpu.memory_space<vmem>>, %arg13: memref<1x32xf32, #tpu.memory_space<vmem>>, %arg14: memref<1x32xf32, #tpu.memory_space<vmem>>, %arg15: memref<16x32xf32, #tpu.memory_space<vmem>>) attributes {dimension_semantics = [], scalar_prefetch = 0 : i64, scratch_operands = 0 : i64, tpu.core_type = #tpu.core_type<tc>} {
    %c0 = arith.constant 0 : index
    %c0_0 = arith.constant 0 : index
    %0 = vector.load %arg0[%c0, %c0_0] : memref<16x32xf32, #tpu.memory_space<vmem>>, vector<16x32xf32>
    %c0_1 = arith.constant 0 : index
    %c0_2 = arith.constant 0 : index
    %c0_3 = arith.constant 0 : index
    %1 = vector.load %arg1[%c0_1, %c0_2, %c0_3] : memref<2x32x96xf32, #tpu.memory_space<vmem>>, vector<1x32x96xf32>
    %2 = vector.shape_cast %1 : vector<1x32x96xf32> to vector<32x96xf32>
    %cst = arith.constant dense<0.000000e+00> : vector<16x96xf32>
    %3 = tpu.matmul %0, %2, %cst {dimension_numbers = #tpu.dot_dimension_numbers<[1], [0], [0], [1], [0, 0, 1, 1], [], []>} : vector<16x32xf32>, vector<32x96xf32>, vector<16x96xf32> -> vector<16x96xf32>
    %c0_4 = arith.constant 0 : index
    %c0_5 = arith.constant 0 : index
    %c0_6 = arith.constant 0 : index
    %4 = vector.load %arg2[%c0_4, %c0_5, %c0_6] : memref<2x1x96xf32, #tpu.memory_space<vmem>>, vector<1x1x96xf32>
    %5 = vector.shape_cast %4 : vector<1x1x96xf32> to vector<1x96xf32>
    %6 = vector.broadcast %5 : vector<1x96xf32> to vector<16x96xf32>
    %7 = arith.addf %3, %6 : vector<16x96xf32>
    %8 = vector.extract_strided_slice %7 {offsets = [0, 0], sizes = [16, 32], strides = [1, 1]} : vector<16x96xf32> to vector<16x32xf32>
    %9 = vector.extract_strided_slice %7 {offsets = [0, 32], sizes = [16, 32], strides = [1, 1]} : vector<16x96xf32> to vector<16x32xf32>
    %10 = vector.extract_strided_slice %7 {offsets = [0, 64], sizes = [16, 32], strides = [1, 1]} : vector<16x96xf32> to vector<16x32xf32>
    %11 = vector.extract_strided_slice %8 {offsets = [0, 0], sizes = [8, 8], strides = [1, 1]} : vector<16x32xf32> to vector<8x8xf32>
    %12 = vector.extract_strided_slice %9 {offsets = [0, 0], sizes = [8, 8], strides = [1, 1]} : vector<16x32xf32> to vector<8x8xf32>
    %13 = vector.extract_strided_slice %10 {offsets = [0, 0], sizes = [8, 8], strides = [1, 1]} : vector<16x32xf32> to vector<8x8xf32>
    %cst_7 = arith.constant dense<0.000000e+00> : vector<8x8xf32>
    %14 = tpu.matmul %11, %12, %cst_7 {dimension_numbers = #tpu.dot_dimension_numbers<[1], [1], [0], [0], [0, 0, 1, 0], [], []>} : vector<8x8xf32>, vector<8x8xf32>, vector<8x8xf32> -> vector<8x8xf32>
    %cst_8 = arith.constant dense<0xFF800000> : vector<8xf32>
    %15 = vector.multi_reduction <maximumf>, %14, %cst_8 [1] : vector<8x8xf32> to vector<8xf32>
    %16 = vector.shape_cast %15 : vector<8xf32> to vector<8x1xf32>
    %17 = vector.broadcast %16 : vector<8x1xf32> to vector<8x8xf32>
    %18 = arith.subf %14, %17 : vector<8x8xf32>
    %19 = math.exp %18 : vector<8x8xf32>
    %cst_9 = arith.constant dense<0.000000e+00> : vector<8xf32>
    %20 = vector.multi_reduction <add>, %19, %cst_9 [1] : vector<8x8xf32> to vector<8xf32>
    %21 = vector.shape_cast %20 : vector<8xf32> to vector<8x1xf32>
    %22 = tpu.reciprocal %21 {approx = true} : vector<8x1xf32> -> vector<8x1xf32>
    %23 = vector.broadcast %22 : vector<8x1xf32> to vector<8x8xf32>
    %24 = arith.mulf %19, %23 : vector<8x8xf32>
    %cst_10 = arith.constant dense<0.000000e+00> : vector<8x8xf32>
    %25 = tpu.matmul %24, %13, %cst_10 {dimension_numbers = #tpu.dot_dimension_numbers<[1], [0], [0], [1], [0, 0, 1, 1], [], []>} : vector<8x8xf32>, vector<8x8xf32>, vector<8x8xf32> -> vector<8x8xf32>
    %26 = vector.extract_strided_slice %8 {offsets = [0, 8], sizes = [8, 8], strides = [1, 1]} : vector<16x32xf32> to vector<8x8xf32>
    %27 = vector.extract_strided_slice %9 {offsets = [0, 8], sizes = [8, 8], strides = [1, 1]} : vector<16x32xf32> to vector<8x8xf32>
    %28 = vector.extract_strided_slice %10 {offsets = [0, 8], sizes = [8, 8], strides = [1, 1]} : vector<16x32xf32> to vector<8x8xf32>
    %cst_11 = arith.constant dense<0.000000e+00> : vector<8x8xf32>
    %29 = tpu.matmul %26, %27, %cst_11 {dimension_numbers = #tpu.dot_dimension_numbers<[1], [1], [0], [0], [0, 0, 1, 0], [], []>} : vector<8x8xf32>, vector<8x8xf32>, vector<8x8xf32> -> vector<8x8xf32>
    %cst_12 = arith.constant dense<0xFF800000> : vector<8xf32>
    %30 = vector.multi_reduction <maximumf>, %29, %cst_12 [1] : vector<8x8xf32> to vector<8xf32>
    %31 = vector.shape_cast %30 : vector<8xf32> to vector<8x1xf32>
    %32 = vector.broadcast %31 : vector<8x1xf32> to vector<8x8xf32>
    %33 = arith.subf %29, %32 : vector<8x8xf32>
    %34 = math.exp %33 : vector<8x8xf32>
    %cst_13 = arith.constant dense<0.000000e+00> : vector<8xf32>
    %35 = vector.multi_reduction <add>, %34, %cst_13 [1] : vector<8x8xf32> to vector<8xf32>
    %36 = vector.shape_cast %35 : vector<8xf32> to vector<8x1xf32>
    %37 = tpu.reciprocal %36 {approx = true} : vector<8x1xf32> -> vector<8x1xf32>
    %38 = vector.broadcast %37 : vector<8x1xf32> to vector<8x8xf32>
    %39 = arith.mulf %34, %38 : vector<8x8xf32>
    %cst_14 = arith.constant dense<0.000000e+00> : vector<8x8xf32>
    %40 = tpu.matmul %39, %28, %cst_14 {dimension_numbers = #tpu.dot_dimension_numbers<[1], [0], [0], [1], [0, 0, 1, 1], [], []>} : vector<8x8xf32>, vector<8x8xf32>, vector<8x8xf32> -> vector<8x8xf32>
    %41 = vector.extract_strided_slice %8 {offsets = [0, 16], sizes = [8, 8], strides = [1, 1]} : vector<16x32xf32> to vector<8x8xf32>
    %42 = vector.extract_strided_slice %9 {offsets = [0, 16], sizes = [8, 8], strides = [1, 1]} : vector<16x32xf32> to vector<8x8xf32>
    %43 = vector.extract_strided_slice %10 {offsets = [0, 16], sizes = [8, 8], strides = [1, 1]} : vector<16x32xf32> to vector<8x8xf32>
    %cst_15 = arith.constant dense<0.000000e+00> : vector<8x8xf32>
    %44 = tpu.matmul %41, %42, %cst_15 {dimension_numbers = #tpu.dot_dimension_numbers<[1], [1], [0], [0], [0, 0, 1, 0], [], []>} : vector<8x8xf32>, vector<8x8xf32>, vector<8x8xf32> -> vector<8x8xf32>
    %cst_16 = arith.constant dense<0xFF800000> : vector<8xf32>
    %45 = vector.multi_reduction <maximumf>, %44, %cst_16 [1] : vector<8x8xf32> to vector<8xf32>
    %46 = vector.shape_cast %45 : vector<8xf32> to vector<8x1xf32>
    %47 = vector.broadcast %46 : vector<8x1xf32> to vector<8x8xf32>
    %48 = arith.subf %44, %47 : vector<8x8xf32>
    %49 = math.exp %48 : vector<8x8xf32>
    %cst_17 = arith.constant dense<0.000000e+00> : vector<8xf32>
    %50 = vector.multi_reduction <add>, %49, %cst_17 [1] : vector<8x8xf32> to vector<8xf32>
    %51 = vector.shape_cast %50 : vector<8xf32> to vector<8x1xf32>
    %52 = tpu.reciprocal %51 {approx = true} : vector<8x1xf32> -> vector<8x1xf32>
    %53 = vector.broadcast %52 : vector<8x1xf32> to vector<8x8xf32>
    %54 = arith.mulf %49, %53 : vector<8x8xf32>
    %cst_18 = arith.constant dense<0.000000e+00> : vector<8x8xf32>
    %55 = tpu.matmul %54, %43, %cst_18 {dimension_numbers = #tpu.dot_dimension_numbers<[1], [0], [0], [1], [0, 0, 1, 1], [], []>} : vector<8x8xf32>, vector<8x8xf32>, vector<8x8xf32> -> vector<8x8xf32>
    %56 = vector.extract_strided_slice %8 {offsets = [0, 24], sizes = [8, 8], strides = [1, 1]} : vector<16x32xf32> to vector<8x8xf32>
    %57 = vector.extract_strided_slice %9 {offsets = [0, 24], sizes = [8, 8], strides = [1, 1]} : vector<16x32xf32> to vector<8x8xf32>
    %58 = vector.extract_strided_slice %10 {offsets = [0, 24], sizes = [8, 8], strides = [1, 1]} : vector<16x32xf32> to vector<8x8xf32>
    %cst_19 = arith.constant dense<0.000000e+00> : vector<8x8xf32>
    %59 = tpu.matmul %56, %57, %cst_19 {dimension_numbers = #tpu.dot_dimension_numbers<[1], [1], [0], [0], [0, 0, 1, 0], [], []>} : vector<8x8xf32>, vector<8x8xf32>, vector<8x8xf32> -> vector<8x8xf32>
    %cst_20 = arith.constant dense<0xFF800000> : vector<8xf32>
    %60 = vector.multi_reduction <maximumf>, %59, %cst_20 [1] : vector<8x8xf32> to vector<8xf32>
    %61 = vector.shape_cast %60 : vector<8xf32> to vector<8x1xf32>
    %62 = vector.broadcast %61 : vector<8x1xf32> to vector<8x8xf32>
    %63 = arith.subf %59, %62 : vector<8x8xf32>
    %64 = math.exp %63 : vector<8x8xf32>
    %cst_21 = arith.constant dense<0.000000e+00> : vector<8xf32>
    %65 = vector.multi_reduction <add>, %64, %cst_21 [1] : vector<8x8xf32> to vector<8xf32>
    %66 = vector.shape_cast %65 : vector<8xf32> to vector<8x1xf32>
    %67 = tpu.reciprocal %66 {approx = true} : vector<8x1xf32> -> vector<8x1xf32>
    %68 = vector.broadcast %67 : vector<8x1xf32> to vector<8x8xf32>
    %69 = arith.mulf %64, %68 : vector<8x8xf32>
    %cst_22 = arith.constant dense<0.000000e+00> : vector<8x8xf32>
    %70 = tpu.matmul %69, %58, %cst_22 {dimension_numbers = #tpu.dot_dimension_numbers<[1], [0], [0], [1], [0, 0, 1, 1], [], []>} : vector<8x8xf32>, vector<8x8xf32>, vector<8x8xf32> -> vector<8x8xf32>
    %71 = tpu.concatenate %25, %40, %55, %70 in 1 : vector<8x8xf32>, vector<8x8xf32>, vector<8x8xf32>, vector<8x8xf32> -> vector<8x32xf32>
    %72 = vector.extract_strided_slice %8 {offsets = [8, 0], sizes = [8, 8], strides = [1, 1]} : vector<16x32xf32> to vector<8x8xf32>
    %73 = vector.extract_strided_slice %9 {offsets = [8, 0], sizes = [8, 8], strides = [1, 1]} : vector<16x32xf32> to vector<8x8xf32>
    %74 = vector.extract_strided_slice %10 {offsets = [8, 0], sizes = [8, 8], strides = [1, 1]} : vector<16x32xf32> to vector<8x8xf32>
    %cst_23 = arith.constant dense<0.000000e+00> : vector<8x8xf32>
    %75 = tpu.matmul %72, %73, %cst_23 {dimension_numbers = #tpu.dot_dimension_numbers<[1], [1], [0], [0], [0, 0, 1, 0], [], []>} : vector<8x8xf32>, vector<8x8xf32>, vector<8x8xf32> -> vector<8x8xf32>
    %cst_24 = arith.constant dense<0xFF800000> : vector<8xf32>
    %76 = vector.multi_reduction <maximumf>, %75, %cst_24 [1] : vector<8x8xf32> to vector<8xf32>
    %77 = vector.shape_cast %76 : vector<8xf32> to vector<8x1xf32>
    %78 = vector.broadcast %77 : vector<8x1xf32> to vector<8x8xf32>
    %79 = arith.subf %75, %78 : vector<8x8xf32>
    %80 = math.exp %79 : vector<8x8xf32>
    %cst_25 = arith.constant dense<0.000000e+00> : vector<8xf32>
    %81 = vector.multi_reduction <add>, %80, %cst_25 [1] : vector<8x8xf32> to vector<8xf32>
    %82 = vector.shape_cast %81 : vector<8xf32> to vector<8x1xf32>
    %83 = tpu.reciprocal %82 {approx = true} : vector<8x1xf32> -> vector<8x1xf32>
    %84 = vector.broadcast %83 : vector<8x1xf32> to vector<8x8xf32>
    %85 = arith.mulf %80, %84 : vector<8x8xf32>
    %cst_26 = arith.constant dense<0.000000e+00> : vector<8x8xf32>
    %86 = tpu.matmul %85, %74, %cst_26 {dimension_numbers = #tpu.dot_dimension_numbers<[1], [0], [0], [1], [0, 0, 1, 1], [], []>} : vector<8x8xf32>, vector<8x8xf32>, vector<8x8xf32> -> vector<8x8xf32>
    %87 = vector.extract_strided_slice %8 {offsets = [8, 8], sizes = [8, 8], strides = [1, 1]} : vector<16x32xf32> to vector<8x8xf32>
    %88 = vector.extract_strided_slice %9 {offsets = [8, 8], sizes = [8, 8], strides = [1, 1]} : vector<16x32xf32> to vector<8x8xf32>
    %89 = vector.extract_strided_slice %10 {offsets = [8, 8], sizes = [8, 8], strides = [1, 1]} : vector<16x32xf32> to vector<8x8xf32>
    %cst_27 = arith.constant dense<0.000000e+00> : vector<8x8xf32>
    %90 = tpu.matmul %87, %88, %cst_27 {dimension_numbers = #tpu.dot_dimension_numbers<[1], [1], [0], [0], [0, 0, 1, 0], [], []>} : vector<8x8xf32>, vector<8x8xf32>, vector<8x8xf32> -> vector<8x8xf32>
    %cst_28 = arith.constant dense<0xFF800000> : vector<8xf32>
    %91 = vector.multi_reduction <maximumf>, %90, %cst_28 [1] : vector<8x8xf32> to vector<8xf32>
    %92 = vector.shape_cast %91 : vector<8xf32> to vector<8x1xf32>
    %93 = vector.broadcast %92 : vector<8x1xf32> to vector<8x8xf32>
    %94 = arith.subf %90, %93 : vector<8x8xf32>
    %95 = math.exp %94 : vector<8x8xf32>
    %cst_29 = arith.constant dense<0.000000e+00> : vector<8xf32>
    %96 = vector.multi_reduction <add>, %95, %cst_29 [1] : vector<8x8xf32> to vector<8xf32>
    %97 = vector.shape_cast %96 : vector<8xf32> to vector<8x1xf32>
    %98 = tpu.reciprocal %97 {approx = true} : vector<8x1xf32> -> vector<8x1xf32>
    %99 = vector.broadcast %98 : vector<8x1xf32> to vector<8x8xf32>
    %100 = arith.mulf %95, %99 : vector<8x8xf32>
    %cst_30 = arith.constant dense<0.000000e+00> : vector<8x8xf32>
    %101 = tpu.matmul %100, %89, %cst_30 {dimension_numbers = #tpu.dot_dimension_numbers<[1], [0], [0], [1], [0, 0, 1, 1], [], []>} : vector<8x8xf32>, vector<8x8xf32>, vector<8x8xf32> -> vector<8x8xf32>
    %102 = vector.extract_strided_slice %8 {offsets = [8, 16], sizes = [8, 8], strides = [1, 1]} : vector<16x32xf32> to vector<8x8xf32>
    %103 = vector.extract_strided_slice %9 {offsets = [8, 16], sizes = [8, 8], strides = [1, 1]} : vector<16x32xf32> to vector<8x8xf32>
    %104 = vector.extract_strided_slice %10 {offsets = [8, 16], sizes = [8, 8], strides = [1, 1]} : vector<16x32xf32> to vector<8x8xf32>
    %cst_31 = arith.constant dense<0.000000e+00> : vector<8x8xf32>
    %105 = tpu.matmul %102, %103, %cst_31 {dimension_numbers = #tpu.dot_dimension_numbers<[1], [1], [0], [0], [0, 0, 1, 0], [], []>} : vector<8x8xf32>, vector<8x8xf32>, vector<8x8xf32> -> vector<8x8xf32>
    %cst_32 = arith.constant dense<0xFF800000> : vector<8xf32>
    %106 = vector.multi_reduction <maximumf>, %105, %cst_32 [1] : vector<8x8xf32> to vector<8xf32>
    %107 = vector.shape_cast %106 : vector<8xf32> to vector<8x1xf32>
    %108 = vector.broadcast %107 : vector<8x1xf32> to vector<8x8xf32>
    %109 = arith.subf %105, %108 : vector<8x8xf32>
    %110 = math.exp %109 : vector<8x8xf32>
    %cst_33 = arith.constant dense<0.000000e+00> : vector<8xf32>
    %111 = vector.multi_reduction <add>, %110, %cst_33 [1] : vector<8x8xf32> to vector<8xf32>
    %112 = vector.shape_cast %111 : vector<8xf32> to vector<8x1xf32>
    %113 = tpu.reciprocal %112 {approx = true} : vector<8x1xf32> -> vector<8x1xf32>
    %114 = vector.broadcast %113 : vector<8x1xf32> to vector<8x8xf32>
    %115 = arith.mulf %110, %114 : vector<8x8xf32>
    %cst_34 = arith.constant dense<0.000000e+00> : vector<8x8xf32>
    %116 = tpu.matmul %115, %104, %cst_34 {dimension_numbers = #tpu.dot_dimension_numbers<[1], [0], [0], [1], [0, 0, 1, 1], [], []>} : vector<8x8xf32>, vector<8x8xf32>, vector<8x8xf32> -> vector<8x8xf32>
    %117 = vector.extract_strided_slice %8 {offsets = [8, 24], sizes = [8, 8], strides = [1, 1]} : vector<16x32xf32> to vector<8x8xf32>
    %118 = vector.extract_strided_slice %9 {offsets = [8, 24], sizes = [8, 8], strides = [1, 1]} : vector<16x32xf32> to vector<8x8xf32>
    %119 = vector.extract_strided_slice %10 {offsets = [8, 24], sizes = [8, 8], strides = [1, 1]} : vector<16x32xf32> to vector<8x8xf32>
    %cst_35 = arith.constant dense<0.000000e+00> : vector<8x8xf32>
    %120 = tpu.matmul %117, %118, %cst_35 {dimension_numbers = #tpu.dot_dimension_numbers<[1], [1], [0], [0], [0, 0, 1, 0], [], []>} : vector<8x8xf32>, vector<8x8xf32>, vector<8x8xf32> -> vector<8x8xf32>
    %cst_36 = arith.constant dense<0xFF800000> : vector<8xf32>
    %121 = vector.multi_reduction <maximumf>, %120, %cst_36 [1] : vector<8x8xf32> to vector<8xf32>
    %122 = vector.shape_cast %121 : vector<8xf32> to vector<8x1xf32>
    %123 = vector.broadcast %122 : vector<8x1xf32> to vector<8x8xf32>
    %124 = arith.subf %120, %123 : vector<8x8xf32>
    %125 = math.exp %124 : vector<8x8xf32>
    %cst_37 = arith.constant dense<0.000000e+00> : vector<8xf32>
    %126 = vector.multi_reduction <add>, %125, %cst_37 [1] : vector<8x8xf32> to vector<8xf32>
    %127 = vector.shape_cast %126 : vector<8xf32> to vector<8x1xf32>
    %128 = tpu.reciprocal %127 {approx = true} : vector<8x1xf32> -> vector<8x1xf32>
    %129 = vector.broadcast %128 : vector<8x1xf32> to vector<8x8xf32>
    %130 = arith.mulf %125, %129 : vector<8x8xf32>
    %cst_38 = arith.constant dense<0.000000e+00> : vector<8x8xf32>
    %131 = tpu.matmul %130, %119, %cst_38 {dimension_numbers = #tpu.dot_dimension_numbers<[1], [0], [0], [1], [0, 0, 1, 1], [], []>} : vector<8x8xf32>, vector<8x8xf32>, vector<8x8xf32> -> vector<8x8xf32>
    %132 = tpu.concatenate %86, %101, %116, %131 in 1 : vector<8x8xf32>, vector<8x8xf32>, vector<8x8xf32>, vector<8x8xf32> -> vector<8x32xf32>
    %133 = tpu.concatenate %71, %132 in 0 : vector<8x32xf32>, vector<8x32xf32> -> vector<16x32xf32>
    %c0_39 = arith.constant 0 : index
    %c0_40 = arith.constant 0 : index
    %c0_41 = arith.constant 0 : index
    %134 = vector.load %arg3[%c0_39, %c0_40, %c0_41] : memref<2x32x32xf32, #tpu.memory_space<vmem>>, vector<1x32x32xf32>
    %135 = vector.shape_cast %134 : vector<1x32x32xf32> to vector<32x32xf32>
    %cst_42 = arith.constant dense<0.000000e+00> : vector<16x32xf32>
    %136 = tpu.matmul %133, %135, %cst_42 {dimension_numbers = #tpu.dot_dimension_numbers<[1], [0], [0], [1], [0, 0, 1, 1], [], []>} : vector<16x32xf32>, vector<32x32xf32>, vector<16x32xf32> -> vector<16x32xf32>
    %c0_43 = arith.constant 0 : index
    %c0_44 = arith.constant 0 : index
    %c0_45 = arith.constant 0 : index
    %137 = vector.load %arg4[%c0_43, %c0_44, %c0_45] : memref<2x1x32xf32, #tpu.memory_space<vmem>>, vector<1x1x32xf32>
    %138 = vector.shape_cast %137 : vector<1x1x32xf32> to vector<1x32xf32>
    %139 = vector.broadcast %138 : vector<1x32xf32> to vector<16x32xf32>
    %140 = arith.addf %136, %139 : vector<16x32xf32>
    %141 = arith.addf %0, %140 : vector<16x32xf32>
    %c0_46 = arith.constant 0 : index
    %c0_47 = arith.constant 0 : index
    %c0_48 = arith.constant 0 : index
    %142 = vector.load %arg5[%c0_46, %c0_47, %c0_48] : memref<2x1x32xf32, #tpu.memory_space<vmem>>, vector<1x1x32xf32>
    %143 = vector.shape_cast %142 : vector<1x1x32xf32> to vector<1x32xf32>
    %c0_49 = arith.constant 0 : index
    %c0_50 = arith.constant 0 : index
    %c0_51 = arith.constant 0 : index
    %144 = vector.load %arg6[%c0_49, %c0_50, %c0_51] : memref<2x1x32xf32, #tpu.memory_space<vmem>>, vector<1x1x32xf32>
    %145 = vector.shape_cast %144 : vector<1x1x32xf32> to vector<1x32xf32>
    %cst_52 = arith.constant dense<0.000000e+00> : vector<16xf32>
    %146 = vector.multi_reduction <add>, %141, %cst_52 [1] : vector<16x32xf32> to vector<16xf32>
    %147 = vector.shape_cast %146 : vector<16xf32> to vector<16x1xf32>
    %cst_53 = arith.constant 3.200000e+01 : f32
    %148 = vector.broadcast %cst_53 : f32 to vector<16x1xf32>
    %149 = arith.divf %147, %148 : vector<16x1xf32>
    %150 = vector.broadcast %149 : vector<16x1xf32> to vector<16x32xf32>
    %151 = arith.subf %141, %150 : vector<16x32xf32>
    %152 = arith.mulf %151, %151 : vector<16x32xf32>
    %cst_54 = arith.constant dense<0.000000e+00> : vector<16xf32>
    %153 = vector.multi_reduction <add>, %152, %cst_54 [1] : vector<16x32xf32> to vector<16xf32>
    %154 = vector.shape_cast %153 : vector<16xf32> to vector<16x1xf32>
    %cst_55 = arith.constant 3.200000e+01 : f32
    %155 = vector.broadcast %cst_55 : f32 to vector<16x1xf32>
    %156 = arith.divf %154, %155 : vector<16x1xf32>
    %157 = vector.broadcast %149 : vector<16x1xf32> to vector<16x32xf32>
    %158 = arith.subf %141, %157 : vector<16x32xf32>
    %cst_56 = arith.constant 9.99999974E-6 : f32
    %159 = vector.broadcast %cst_56 : f32 to vector<16x1xf32>
    %160 = arith.addf %156, %159 : vector<16x1xf32>
    %161 = math.rsqrt %160 : vector<16x1xf32>
    %162 = vector.broadcast %161 : vector<16x1xf32> to vector<16x32xf32>
    %163 = arith.mulf %158, %162 : vector<16x32xf32>
    %164 = vector.broadcast %143 : vector<1x32xf32> to vector<16x32xf32>
    %165 = arith.mulf %163, %164 : vector<16x32xf32>
    %166 = vector.broadcast %145 : vector<1x32xf32> to vector<16x32xf32>
    %167 = arith.addf %165, %166 : vector<16x32xf32>
    %c0_57 = arith.constant 0 : index
    %c0_58 = arith.constant 0 : index
    %c0_59 = arith.constant 0 : index
    %168 = vector.load %arg7[%c0_57, %c0_58, %c0_59] : memref<2x32x64xf32, #tpu.memory_space<vmem>>, vector<1x32x64xf32>
    %169 = vector.shape_cast %168 : vector<1x32x64xf32> to vector<32x64xf32>
    %cst_60 = arith.constant dense<0.000000e+00> : vector<16x64xf32>
    %170 = tpu.matmul %167, %169, %cst_60 {dimension_numbers = #tpu.dot_dimension_numbers<[1], [0], [0], [1], [0, 0, 1, 1], [], []>} : vector<16x32xf32>, vector<32x64xf32>, vector<16x64xf32> -> vector<16x64xf32>
    %c0_61 = arith.constant 0 : index
    %c0_62 = arith.constant 0 : index
    %c0_63 = arith.constant 0 : index
    %171 = vector.load %arg8[%c0_61, %c0_62, %c0_63] : memref<2x1x64xf32, #tpu.memory_space<vmem>>, vector<1x1x64xf32>
    %172 = vector.shape_cast %171 : vector<1x1x64xf32> to vector<1x64xf32>
    %173 = vector.broadcast %172 : vector<1x64xf32> to vector<16x64xf32>
    %174 = arith.addf %170, %173 : vector<16x64xf32>
    %cst_64 = arith.constant 0.000000e+00 : f32
    %175 = vector.broadcast %cst_64 : f32 to vector<16x64xf32>
    %176 = arith.maximumf %174, %175 : vector<16x64xf32>
    %c0_65 = arith.constant 0 : index
    %c0_66 = arith.constant 0 : index
    %c0_67 = arith.constant 0 : index
    %177 = vector.load %arg9[%c0_65, %c0_66, %c0_67] : memref<2x64x32xf32, #tpu.memory_space<vmem>>, vector<1x64x32xf32>
    %178 = vector.shape_cast %177 : vector<1x64x32xf32> to vector<64x32xf32>
    %cst_68 = arith.constant dense<0.000000e+00> : vector<16x32xf32>
    %179 = tpu.matmul %176, %178, %cst_68 {dimension_numbers = #tpu.dot_dimension_numbers<[1], [0], [0], [1], [0, 0, 1, 1], [], []>} : vector<16x64xf32>, vector<64x32xf32>, vector<16x32xf32> -> vector<16x32xf32>
    %c0_69 = arith.constant 0 : index
    %c0_70 = arith.constant 0 : index
    %c0_71 = arith.constant 0 : index
    %180 = vector.load %arg10[%c0_69, %c0_70, %c0_71] : memref<2x1x32xf32, #tpu.memory_space<vmem>>, vector<1x1x32xf32>
    %181 = vector.shape_cast %180 : vector<1x1x32xf32> to vector<1x32xf32>
    %182 = vector.broadcast %181 : vector<1x32xf32> to vector<16x32xf32>
    %183 = arith.addf %179, %182 : vector<16x32xf32>
    %184 = arith.addf %167, %183 : vector<16x32xf32>
    %c0_72 = arith.constant 0 : index
    %c0_73 = arith.constant 0 : index
    %c0_74 = arith.constant 0 : index
    %185 = vector.load %arg11[%c0_72, %c0_73, %c0_74] : memref<2x1x32xf32, #tpu.memory_space<vmem>>, vector<1x1x32xf32>
    %186 = vector.shape_cast %185 : vector<1x1x32xf32> to vector<1x32xf32>
    %c0_75 = arith.constant 0 : index
    %c0_76 = arith.constant 0 : index
    %c0_77 = arith.constant 0 : index
    %187 = vector.load %arg12[%c0_75, %c0_76, %c0_77] : memref<2x1x32xf32, #tpu.memory_space<vmem>>, vector<1x1x32xf32>
    %188 = vector.shape_cast %187 : vector<1x1x32xf32> to vector<1x32xf32>
    %cst_78 = arith.constant dense<0.000000e+00> : vector<16xf32>
    %189 = vector.multi_reduction <add>, %184, %cst_78 [1] : vector<16x32xf32> to vector<16xf32>
    %190 = vector.shape_cast %189 : vector<16xf32> to vector<16x1xf32>
    %cst_79 = arith.constant 3.200000e+01 : f32
    %191 = vector.broadcast %cst_79 : f32 to vector<16x1xf32>
    %192 = arith.divf %190, %191 : vector<16x1xf32>
    %193 = vector.broadcast %192 : vector<16x1xf32> to vector<16x32xf32>
    %194 = arith.subf %184, %193 : vector<16x32xf32>
    %195 = arith.mulf %194, %194 : vector<16x32xf32>
    %cst_80 = arith.constant dense<0.000000e+00> : vector<16xf32>
    %196 = vector.multi_reduction <add>, %195, %cst_80 [1] : vector<16x32xf32> to vector<16xf32>
    %197 = vector.shape_cast %196 : vector<16xf32> to vector<16x1xf32>
    %cst_81 = arith.constant 3.200000e+01 : f32
    %198 = vector.broadcast %cst_81 : f32 to vector<16x1xf32>
    %199 = arith.divf %197, %198 : vector<16x1xf32>
    %200 = vector.broadcast %192 : vector<16x1xf32> to vector<16x32xf32>
    %201 = arith.subf %184, %200 : vector<16x32xf32>
    %cst_82 = arith.constant 9.99999974E-6 : f32
    %202 = vector.broadcast %cst_82 : f32 to vector<16x1xf32>
    %203 = arith.addf %199, %202 : vector<16x1xf32>
    %204 = math.rsqrt %203 : vector<16x1xf32>
    %205 = vector.broadcast %204 : vector<16x1xf32> to vector<16x32xf32>
    %206 = arith.mulf %201, %205 : vector<16x32xf32>
    %207 = vector.broadcast %186 : vector<1x32xf32> to vector<16x32xf32>
    %208 = arith.mulf %206, %207 : vector<16x32xf32>
    %209 = vector.broadcast %188 : vector<1x32xf32> to vector<16x32xf32>
    %210 = arith.addf %208, %209 : vector<16x32xf32>
    %c1 = arith.constant 1 : index
    %c0_83 = arith.constant 0 : index
    %c0_84 = arith.constant 0 : index
    %211 = vector.load %arg1[%c1, %c0_83, %c0_84] : memref<2x32x96xf32, #tpu.memory_space<vmem>>, vector<1x32x96xf32>
    %212 = vector.shape_cast %211 : vector<1x32x96xf32> to vector<32x96xf32>
    %cst_85 = arith.constant dense<0.000000e+00> : vector<16x96xf32>
    %213 = tpu.matmul %210, %212, %cst_85 {dimension_numbers = #tpu.dot_dimension_numbers<[1], [0], [0], [1], [0, 0, 1, 1], [], []>} : vector<16x32xf32>, vector<32x96xf32>, vector<16x96xf32> -> vector<16x96xf32>
    %c1_86 = arith.constant 1 : index
    %c0_87 = arith.constant 0 : index
    %c0_88 = arith.constant 0 : index
    %214 = vector.load %arg2[%c1_86, %c0_87, %c0_88] : memref<2x1x96xf32, #tpu.memory_space<vmem>>, vector<1x1x96xf32>
    %215 = vector.shape_cast %214 : vector<1x1x96xf32> to vector<1x96xf32>
    %216 = vector.broadcast %215 : vector<1x96xf32> to vector<16x96xf32>
    %217 = arith.addf %213, %216 : vector<16x96xf32>
    %218 = vector.extract_strided_slice %217 {offsets = [0, 0], sizes = [16, 32], strides = [1, 1]} : vector<16x96xf32> to vector<16x32xf32>
    %219 = vector.extract_strided_slice %217 {offsets = [0, 32], sizes = [16, 32], strides = [1, 1]} : vector<16x96xf32> to vector<16x32xf32>
    %220 = vector.extract_strided_slice %217 {offsets = [0, 64], sizes = [16, 32], strides = [1, 1]} : vector<16x96xf32> to vector<16x32xf32>
    %221 = vector.extract_strided_slice %218 {offsets = [0, 0], sizes = [8, 8], strides = [1, 1]} : vector<16x32xf32> to vector<8x8xf32>
    %222 = vector.extract_strided_slice %219 {offsets = [0, 0], sizes = [8, 8], strides = [1, 1]} : vector<16x32xf32> to vector<8x8xf32>
    %223 = vector.extract_strided_slice %220 {offsets = [0, 0], sizes = [8, 8], strides = [1, 1]} : vector<16x32xf32> to vector<8x8xf32>
    %cst_89 = arith.constant dense<0.000000e+00> : vector<8x8xf32>
    %224 = tpu.matmul %221, %222, %cst_89 {dimension_numbers = #tpu.dot_dimension_numbers<[1], [1], [0], [0], [0, 0, 1, 0], [], []>} : vector<8x8xf32>, vector<8x8xf32>, vector<8x8xf32> -> vector<8x8xf32>
    %cst_90 = arith.constant dense<0xFF800000> : vector<8xf32>
    %225 = vector.multi_reduction <maximumf>, %224, %cst_90 [1] : vector<8x8xf32> to vector<8xf32>
    %226 = vector.shape_cast %225 : vector<8xf32> to vector<8x1xf32>
    %227 = vector.broadcast %226 : vector<8x1xf32> to vector<8x8xf32>
    %228 = arith.subf %224, %227 : vector<8x8xf32>
    %229 = math.exp %228 : vector<8x8xf32>
    %cst_91 = arith.constant dense<0.000000e+00> : vector<8xf32>
    %230 = vector.multi_reduction <add>, %229, %cst_91 [1] : vector<8x8xf32> to vector<8xf32>
    %231 = vector.shape_cast %230 : vector<8xf32> to vector<8x1xf32>
    %232 = tpu.reciprocal %231 {approx = true} : vector<8x1xf32> -> vector<8x1xf32>
    %233 = vector.broadcast %232 : vector<8x1xf32> to vector<8x8xf32>
    %234 = arith.mulf %229, %233 : vector<8x8xf32>
    %cst_92 = arith.constant dense<0.000000e+00> : vector<8x8xf32>
    %235 = tpu.matmul %234, %223, %cst_92 {dimension_numbers = #tpu.dot_dimension_numbers<[1], [0], [0], [1], [0, 0, 1, 1], [], []>} : vector<8x8xf32>, vector<8x8xf32>, vector<8x8xf32> -> vector<8x8xf32>
    %236 = vector.extract_strided_slice %218 {offsets = [0, 8], sizes = [8, 8], strides = [1, 1]} : vector<16x32xf32> to vector<8x8xf32>
    %237 = vector.extract_strided_slice %219 {offsets = [0, 8], sizes = [8, 8], strides = [1, 1]} : vector<16x32xf32> to vector<8x8xf32>
    %238 = vector.extract_strided_slice %220 {offsets = [0, 8], sizes = [8, 8], strides = [1, 1]} : vector<16x32xf32> to vector<8x8xf32>
    %cst_93 = arith.constant dense<0.000000e+00> : vector<8x8xf32>
    %239 = tpu.matmul %236, %237, %cst_93 {dimension_numbers = #tpu.dot_dimension_numbers<[1], [1], [0], [0], [0, 0, 1, 0], [], []>} : vector<8x8xf32>, vector<8x8xf32>, vector<8x8xf32> -> vector<8x8xf32>
    %cst_94 = arith.constant dense<0xFF800000> : vector<8xf32>
    %240 = vector.multi_reduction <maximumf>, %239, %cst_94 [1] : vector<8x8xf32> to vector<8xf32>
    %241 = vector.shape_cast %240 : vector<8xf32> to vector<8x1xf32>
    %242 = vector.broadcast %241 : vector<8x1xf32> to vector<8x8xf32>
    %243 = arith.subf %239, %242 : vector<8x8xf32>
    %244 = math.exp %243 : vector<8x8xf32>
    %cst_95 = arith.constant dense<0.000000e+00> : vector<8xf32>
    %245 = vector.multi_reduction <add>, %244, %cst_95 [1] : vector<8x8xf32> to vector<8xf32>
    %246 = vector.shape_cast %245 : vector<8xf32> to vector<8x1xf32>
    %247 = tpu.reciprocal %246 {approx = true} : vector<8x1xf32> -> vector<8x1xf32>
    %248 = vector.broadcast %247 : vector<8x1xf32> to vector<8x8xf32>
    %249 = arith.mulf %244, %248 : vector<8x8xf32>
    %cst_96 = arith.constant dense<0.000000e+00> : vector<8x8xf32>
    %250 = tpu.matmul %249, %238, %cst_96 {dimension_numbers = #tpu.dot_dimension_numbers<[1], [0], [0], [1], [0, 0, 1, 1], [], []>} : vector<8x8xf32>, vector<8x8xf32>, vector<8x8xf32> -> vector<8x8xf32>
    %251 = vector.extract_strided_slice %218 {offsets = [0, 16], sizes = [8, 8], strides = [1, 1]} : vector<16x32xf32> to vector<8x8xf32>
    %252 = vector.extract_strided_slice %219 {offsets = [0, 16], sizes = [8, 8], strides = [1, 1]} : vector<16x32xf32> to vector<8x8xf32>
    %253 = vector.extract_strided_slice %220 {offsets = [0, 16], sizes = [8, 8], strides = [1, 1]} : vector<16x32xf32> to vector<8x8xf32>
    %cst_97 = arith.constant dense<0.000000e+00> : vector<8x8xf32>
    %254 = tpu.matmul %251, %252, %cst_97 {dimension_numbers = #tpu.dot_dimension_numbers<[1], [1], [0], [0], [0, 0, 1, 0], [], []>} : vector<8x8xf32>, vector<8x8xf32>, vector<8x8xf32> -> vector<8x8xf32>
    %cst_98 = arith.constant dense<0xFF800000> : vector<8xf32>
    %255 = vector.multi_reduction <maximumf>, %254, %cst_98 [1] : vector<8x8xf32> to vector<8xf32>
    %256 = vector.shape_cast %255 : vector<8xf32> to vector<8x1xf32>
    %257 = vector.broadcast %256 : vector<8x1xf32> to vector<8x8xf32>
    %258 = arith.subf %254, %257 : vector<8x8xf32>
    %259 = math.exp %258 : vector<8x8xf32>
    %cst_99 = arith.constant dense<0.000000e+00> : vector<8xf32>
    %260 = vector.multi_reduction <add>, %259, %cst_99 [1] : vector<8x8xf32> to vector<8xf32>
    %261 = vector.shape_cast %260 : vector<8xf32> to vector<8x1xf32>
    %262 = tpu.reciprocal %261 {approx = true} : vector<8x1xf32> -> vector<8x1xf32>
    %263 = vector.broadcast %262 : vector<8x1xf32> to vector<8x8xf32>
    %264 = arith.mulf %259, %263 : vector<8x8xf32>
    %cst_100 = arith.constant dense<0.000000e+00> : vector<8x8xf32>
    %265 = tpu.matmul %264, %253, %cst_100 {dimension_numbers = #tpu.dot_dimension_numbers<[1], [0], [0], [1], [0, 0, 1, 1], [], []>} : vector<8x8xf32>, vector<8x8xf32>, vector<8x8xf32> -> vector<8x8xf32>
    %266 = vector.extract_strided_slice %218 {offsets = [0, 24], sizes = [8, 8], strides = [1, 1]} : vector<16x32xf32> to vector<8x8xf32>
    %267 = vector.extract_strided_slice %219 {offsets = [0, 24], sizes = [8, 8], strides = [1, 1]} : vector<16x32xf32> to vector<8x8xf32>
    %268 = vector.extract_strided_slice %220 {offsets = [0, 24], sizes = [8, 8], strides = [1, 1]} : vector<16x32xf32> to vector<8x8xf32>
    %cst_101 = arith.constant dense<0.000000e+00> : vector<8x8xf32>
    %269 = tpu.matmul %266, %267, %cst_101 {dimension_numbers = #tpu.dot_dimension_numbers<[1], [1], [0], [0], [0, 0, 1, 0], [], []>} : vector<8x8xf32>, vector<8x8xf32>, vector<8x8xf32> -> vector<8x8xf32>
    %cst_102 = arith.constant dense<0xFF800000> : vector<8xf32>
    %270 = vector.multi_reduction <maximumf>, %269, %cst_102 [1] : vector<8x8xf32> to vector<8xf32>
    %271 = vector.shape_cast %270 : vector<8xf32> to vector<8x1xf32>
    %272 = vector.broadcast %271 : vector<8x1xf32> to vector<8x8xf32>
    %273 = arith.subf %269, %272 : vector<8x8xf32>
    %274 = math.exp %273 : vector<8x8xf32>
    %cst_103 = arith.constant dense<0.000000e+00> : vector<8xf32>
    %275 = vector.multi_reduction <add>, %274, %cst_103 [1] : vector<8x8xf32> to vector<8xf32>
    %276 = vector.shape_cast %275 : vector<8xf32> to vector<8x1xf32>
    %277 = tpu.reciprocal %276 {approx = true} : vector<8x1xf32> -> vector<8x1xf32>
    %278 = vector.broadcast %277 : vector<8x1xf32> to vector<8x8xf32>
    %279 = arith.mulf %274, %278 : vector<8x8xf32>
    %cst_104 = arith.constant dense<0.000000e+00> : vector<8x8xf32>
    %280 = tpu.matmul %279, %268, %cst_104 {dimension_numbers = #tpu.dot_dimension_numbers<[1], [0], [0], [1], [0, 0, 1, 1], [], []>} : vector<8x8xf32>, vector<8x8xf32>, vector<8x8xf32> -> vector<8x8xf32>
    %281 = tpu.concatenate %235, %250, %265, %280 in 1 : vector<8x8xf32>, vector<8x8xf32>, vector<8x8xf32>, vector<8x8xf32> -> vector<8x32xf32>
    %282 = vector.extract_strided_slice %218 {offsets = [8, 0], sizes = [8, 8], strides = [1, 1]} : vector<16x32xf32> to vector<8x8xf32>
    %283 = vector.extract_strided_slice %219 {offsets = [8, 0], sizes = [8, 8], strides = [1, 1]} : vector<16x32xf32> to vector<8x8xf32>
    %284 = vector.extract_strided_slice %220 {offsets = [8, 0], sizes = [8, 8], strides = [1, 1]} : vector<16x32xf32> to vector<8x8xf32>
    %cst_105 = arith.constant dense<0.000000e+00> : vector<8x8xf32>
    %285 = tpu.matmul %282, %283, %cst_105 {dimension_numbers = #tpu.dot_dimension_numbers<[1], [1], [0], [0], [0, 0, 1, 0], [], []>} : vector<8x8xf32>, vector<8x8xf32>, vector<8x8xf32> -> vector<8x8xf32>
    %cst_106 = arith.constant dense<0xFF800000> : vector<8xf32>
    %286 = vector.multi_reduction <maximumf>, %285, %cst_106 [1] : vector<8x8xf32> to vector<8xf32>
    %287 = vector.shape_cast %286 : vector<8xf32> to vector<8x1xf32>
    %288 = vector.broadcast %287 : vector<8x1xf32> to vector<8x8xf32>
    %289 = arith.subf %285, %288 : vector<8x8xf32>
    %290 = math.exp %289 : vector<8x8xf32>
    %cst_107 = arith.constant dense<0.000000e+00> : vector<8xf32>
    %291 = vector.multi_reduction <add>, %290, %cst_107 [1] : vector<8x8xf32> to vector<8xf32>
    %292 = vector.shape_cast %291 : vector<8xf32> to vector<8x1xf32>
    %293 = tpu.reciprocal %292 {approx = true} : vector<8x1xf32> -> vector<8x1xf32>
    %294 = vector.broadcast %293 : vector<8x1xf32> to vector<8x8xf32>
    %295 = arith.mulf %290, %294 : vector<8x8xf32>
    %cst_108 = arith.constant dense<0.000000e+00> : vector<8x8xf32>
    %296 = tpu.matmul %295, %284, %cst_108 {dimension_numbers = #tpu.dot_dimension_numbers<[1], [0], [0], [1], [0, 0, 1, 1], [], []>} : vector<8x8xf32>, vector<8x8xf32>, vector<8x8xf32> -> vector<8x8xf32>
    %297 = vector.extract_strided_slice %218 {offsets = [8, 8], sizes = [8, 8], strides = [1, 1]} : vector<16x32xf32> to vector<8x8xf32>
    %298 = vector.extract_strided_slice %219 {offsets = [8, 8], sizes = [8, 8], strides = [1, 1]} : vector<16x32xf32> to vector<8x8xf32>
    %299 = vector.extract_strided_slice %220 {offsets = [8, 8], sizes = [8, 8], strides = [1, 1]} : vector<16x32xf32> to vector<8x8xf32>
    %cst_109 = arith.constant dense<0.000000e+00> : vector<8x8xf32>
    %300 = tpu.matmul %297, %298, %cst_109 {dimension_numbers = #tpu.dot_dimension_numbers<[1], [1], [0], [0], [0, 0, 1, 0], [], []>} : vector<8x8xf32>, vector<8x8xf32>, vector<8x8xf32> -> vector<8x8xf32>
    %cst_110 = arith.constant dense<0xFF800000> : vector<8xf32>
    %301 = vector.multi_reduction <maximumf>, %300, %cst_110 [1] : vector<8x8xf32> to vector<8xf32>
    %302 = vector.shape_cast %301 : vector<8xf32> to vector<8x1xf32>
    %303 = vector.broadcast %302 : vector<8x1xf32> to vector<8x8xf32>
    %304 = arith.subf %300, %303 : vector<8x8xf32>
    %305 = math.exp %304 : vector<8x8xf32>
    %cst_111 = arith.constant dense<0.000000e+00> : vector<8xf32>
    %306 = vector.multi_reduction <add>, %305, %cst_111 [1] : vector<8x8xf32> to vector<8xf32>
    %307 = vector.shape_cast %306 : vector<8xf32> to vector<8x1xf32>
    %308 = tpu.reciprocal %307 {approx = true} : vector<8x1xf32> -> vector<8x1xf32>
    %309 = vector.broadcast %308 : vector<8x1xf32> to vector<8x8xf32>
    %310 = arith.mulf %305, %309 : vector<8x8xf32>
    %cst_112 = arith.constant dense<0.000000e+00> : vector<8x8xf32>
    %311 = tpu.matmul %310, %299, %cst_112 {dimension_numbers = #tpu.dot_dimension_numbers<[1], [0], [0], [1], [0, 0, 1, 1], [], []>} : vector<8x8xf32>, vector<8x8xf32>, vector<8x8xf32> -> vector<8x8xf32>
    %312 = vector.extract_strided_slice %218 {offsets = [8, 16], sizes = [8, 8], strides = [1, 1]} : vector<16x32xf32> to vector<8x8xf32>
    %313 = vector.extract_strided_slice %219 {offsets = [8, 16], sizes = [8, 8], strides = [1, 1]} : vector<16x32xf32> to vector<8x8xf32>
    %314 = vector.extract_strided_slice %220 {offsets = [8, 16], sizes = [8, 8], strides = [1, 1]} : vector<16x32xf32> to vector<8x8xf32>
    %cst_113 = arith.constant dense<0.000000e+00> : vector<8x8xf32>
    %315 = tpu.matmul %312, %313, %cst_113 {dimension_numbers = #tpu.dot_dimension_numbers<[1], [1], [0], [0], [0, 0, 1, 0], [], []>} : vector<8x8xf32>, vector<8x8xf32>, vector<8x8xf32> -> vector<8x8xf32>
    %cst_114 = arith.constant dense<0xFF800000> : vector<8xf32>
    %316 = vector.multi_reduction <maximumf>, %315, %cst_114 [1] : vector<8x8xf32> to vector<8xf32>
    %317 = vector.shape_cast %316 : vector<8xf32> to vector<8x1xf32>
    %318 = vector.broadcast %317 : vector<8x1xf32> to vector<8x8xf32>
    %319 = arith.subf %315, %318 : vector<8x8xf32>
    %320 = math.exp %319 : vector<8x8xf32>
    %cst_115 = arith.constant dense<0.000000e+00> : vector<8xf32>
    %321 = vector.multi_reduction <add>, %320, %cst_115 [1] : vector<8x8xf32> to vector<8xf32>
    %322 = vector.shape_cast %321 : vector<8xf32> to vector<8x1xf32>
    %323 = tpu.reciprocal %322 {approx = true} : vector<8x1xf32> -> vector<8x1xf32>
    %324 = vector.broadcast %323 : vector<8x1xf32> to vector<8x8xf32>
    %325 = arith.mulf %320, %324 : vector<8x8xf32>
    %cst_116 = arith.constant dense<0.000000e+00> : vector<8x8xf32>
    %326 = tpu.matmul %325, %314, %cst_116 {dimension_numbers = #tpu.dot_dimension_numbers<[1], [0], [0], [1], [0, 0, 1, 1], [], []>} : vector<8x8xf32>, vector<8x8xf32>, vector<8x8xf32> -> vector<8x8xf32>
    %327 = vector.extract_strided_slice %218 {offsets = [8, 24], sizes = [8, 8], strides = [1, 1]} : vector<16x32xf32> to vector<8x8xf32>
    %328 = vector.extract_strided_slice %219 {offsets = [8, 24], sizes = [8, 8], strides = [1, 1]} : vector<16x32xf32> to vector<8x8xf32>
    %329 = vector.extract_strided_slice %220 {offsets = [8, 24], sizes = [8, 8], strides = [1, 1]} : vector<16x32xf32> to vector<8x8xf32>
    %cst_117 = arith.constant dense<0.000000e+00> : vector<8x8xf32>
    %330 = tpu.matmul %327, %328, %cst_117 {dimension_numbers = #tpu.dot_dimension_numbers<[1], [1], [0], [0], [0, 0, 1, 0], [], []>} : vector<8x8xf32>, vector<8x8xf32>, vector<8x8xf32> -> vector<8x8xf32>
    %cst_118 = arith.constant dense<0xFF800000> : vector<8xf32>
    %331 = vector.multi_reduction <maximumf>, %330, %cst_118 [1] : vector<8x8xf32> to vector<8xf32>
    %332 = vector.shape_cast %331 : vector<8xf32> to vector<8x1xf32>
    %333 = vector.broadcast %332 : vector<8x1xf32> to vector<8x8xf32>
    %334 = arith.subf %330, %333 : vector<8x8xf32>
    %335 = math.exp %334 : vector<8x8xf32>
    %cst_119 = arith.constant dense<0.000000e+00> : vector<8xf32>
    %336 = vector.multi_reduction <add>, %335, %cst_119 [1] : vector<8x8xf32> to vector<8xf32>
    %337 = vector.shape_cast %336 : vector<8xf32> to vector<8x1xf32>
    %338 = tpu.reciprocal %337 {approx = true} : vector<8x1xf32> -> vector<8x1xf32>
    %339 = vector.broadcast %338 : vector<8x1xf32> to vector<8x8xf32>
    %340 = arith.mulf %335, %339 : vector<8x8xf32>
    %cst_120 = arith.constant dense<0.000000e+00> : vector<8x8xf32>
    %341 = tpu.matmul %340, %329, %cst_120 {dimension_numbers = #tpu.dot_dimension_numbers<[1], [0], [0], [1], [0, 0, 1, 1], [], []>} : vector<8x8xf32>, vector<8x8xf32>, vector<8x8xf32> -> vector<8x8xf32>
    %342 = tpu.concatenate %296, %311, %326, %341 in 1 : vector<8x8xf32>, vector<8x8xf32>, vector<8x8xf32>, vector<8x8xf32> -> vector<8x32xf32>
    %343 = tpu.concatenate %281, %342 in 0 : vector<8x32xf32>, vector<8x32xf32> -> vector<16x32xf32>
    %c1_121 = arith.constant 1 : index
    %c0_122 = arith.constant 0 : index
    %c0_123 = arith.constant 0 : index
    %344 = vector.load %arg3[%c1_121, %c0_122, %c0_123] : memref<2x32x32xf32, #tpu.memory_space<vmem>>, vector<1x32x32xf32>
    %345 = vector.shape_cast %344 : vector<1x32x32xf32> to vector<32x32xf32>
    %cst_124 = arith.constant dense<0.000000e+00> : vector<16x32xf32>
    %346 = tpu.matmul %343, %345, %cst_124 {dimension_numbers = #tpu.dot_dimension_numbers<[1], [0], [0], [1], [0, 0, 1, 1], [], []>} : vector<16x32xf32>, vector<32x32xf32>, vector<16x32xf32> -> vector<16x32xf32>
    %c1_125 = arith.constant 1 : index
    %c0_126 = arith.constant 0 : index
    %c0_127 = arith.constant 0 : index
    %347 = vector.load %arg4[%c1_125, %c0_126, %c0_127] : memref<2x1x32xf32, #tpu.memory_space<vmem>>, vector<1x1x32xf32>
    %348 = vector.shape_cast %347 : vector<1x1x32xf32> to vector<1x32xf32>
    %349 = vector.broadcast %348 : vector<1x32xf32> to vector<16x32xf32>
    %350 = arith.addf %346, %349 : vector<16x32xf32>
    %351 = arith.addf %210, %350 : vector<16x32xf32>
    %c1_128 = arith.constant 1 : index
    %c0_129 = arith.constant 0 : index
    %c0_130 = arith.constant 0 : index
    %352 = vector.load %arg5[%c1_128, %c0_129, %c0_130] : memref<2x1x32xf32, #tpu.memory_space<vmem>>, vector<1x1x32xf32>
    %353 = vector.shape_cast %352 : vector<1x1x32xf32> to vector<1x32xf32>
    %c1_131 = arith.constant 1 : index
    %c0_132 = arith.constant 0 : index
    %c0_133 = arith.constant 0 : index
    %354 = vector.load %arg6[%c1_131, %c0_132, %c0_133] : memref<2x1x32xf32, #tpu.memory_space<vmem>>, vector<1x1x32xf32>
    %355 = vector.shape_cast %354 : vector<1x1x32xf32> to vector<1x32xf32>
    %cst_134 = arith.constant dense<0.000000e+00> : vector<16xf32>
    %356 = vector.multi_reduction <add>, %351, %cst_134 [1] : vector<16x32xf32> to vector<16xf32>
    %357 = vector.shape_cast %356 : vector<16xf32> to vector<16x1xf32>
    %cst_135 = arith.constant 3.200000e+01 : f32
    %358 = vector.broadcast %cst_135 : f32 to vector<16x1xf32>
    %359 = arith.divf %357, %358 : vector<16x1xf32>
    %360 = vector.broadcast %359 : vector<16x1xf32> to vector<16x32xf32>
    %361 = arith.subf %351, %360 : vector<16x32xf32>
    %362 = arith.mulf %361, %361 : vector<16x32xf32>
    %cst_136 = arith.constant dense<0.000000e+00> : vector<16xf32>
    %363 = vector.multi_reduction <add>, %362, %cst_136 [1] : vector<16x32xf32> to vector<16xf32>
    %364 = vector.shape_cast %363 : vector<16xf32> to vector<16x1xf32>
    %cst_137 = arith.constant 3.200000e+01 : f32
    %365 = vector.broadcast %cst_137 : f32 to vector<16x1xf32>
    %366 = arith.divf %364, %365 : vector<16x1xf32>
    %367 = vector.broadcast %359 : vector<16x1xf32> to vector<16x32xf32>
    %368 = arith.subf %351, %367 : vector<16x32xf32>
    %cst_138 = arith.constant 9.99999974E-6 : f32
    %369 = vector.broadcast %cst_138 : f32 to vector<16x1xf32>
    %370 = arith.addf %366, %369 : vector<16x1xf32>
    %371 = math.rsqrt %370 : vector<16x1xf32>
    %372 = vector.broadcast %371 : vector<16x1xf32> to vector<16x32xf32>
    %373 = arith.mulf %368, %372 : vector<16x32xf32>
    %374 = vector.broadcast %353 : vector<1x32xf32> to vector<16x32xf32>
    %375 = arith.mulf %373, %374 : vector<16x32xf32>
    %376 = vector.broadcast %355 : vector<1x32xf32> to vector<16x32xf32>
    %377 = arith.addf %375, %376 : vector<16x32xf32>
    %c1_139 = arith.constant 1 : index
    %c0_140 = arith.constant 0 : index
    %c0_141 = arith.constant 0 : index
    %378 = vector.load %arg7[%c1_139, %c0_140, %c0_141] : memref<2x32x64xf32, #tpu.memory_space<vmem>>, vector<1x32x64xf32>
    %379 = vector.shape_cast %378 : vector<1x32x64xf32> to vector<32x64xf32>
    %cst_142 = arith.constant dense<0.000000e+00> : vector<16x64xf32>
    %380 = tpu.matmul %377, %379, %cst_142 {dimension_numbers = #tpu.dot_dimension_numbers<[1], [0], [0], [1], [0, 0, 1, 1], [], []>} : vector<16x32xf32>, vector<32x64xf32>, vector<16x64xf32> -> vector<16x64xf32>
    %c1_143 = arith.constant 1 : index
    %c0_144 = arith.constant 0 : index
    %c0_145 = arith.constant 0 : index
    %381 = vector.load %arg8[%c1_143, %c0_144, %c0_145] : memref<2x1x64xf32, #tpu.memory_space<vmem>>, vector<1x1x64xf32>
    %382 = vector.shape_cast %381 : vector<1x1x64xf32> to vector<1x64xf32>
    %383 = vector.broadcast %382 : vector<1x64xf32> to vector<16x64xf32>
    %384 = arith.addf %380, %383 : vector<16x64xf32>
    %cst_146 = arith.constant 0.000000e+00 : f32
    %385 = vector.broadcast %cst_146 : f32 to vector<16x64xf32>
    %386 = arith.maximumf %384, %385 : vector<16x64xf32>
    %c1_147 = arith.constant 1 : index
    %c0_148 = arith.constant 0 : index
    %c0_149 = arith.constant 0 : index
    %387 = vector.load %arg9[%c1_147, %c0_148, %c0_149] : memref<2x64x32xf32, #tpu.memory_space<vmem>>, vector<1x64x32xf32>
    %388 = vector.shape_cast %387 : vector<1x64x32xf32> to vector<64x32xf32>
    %cst_150 = arith.constant dense<0.000000e+00> : vector<16x32xf32>
    %389 = tpu.matmul %386, %388, %cst_150 {dimension_numbers = #tpu.dot_dimension_numbers<[1], [0], [0], [1], [0, 0, 1, 1], [], []>} : vector<16x64xf32>, vector<64x32xf32>, vector<16x32xf32> -> vector<16x32xf32>
    %c1_151 = arith.constant 1 : index
    %c0_152 = arith.constant 0 : index
    %c0_153 = arith.constant 0 : index
    %390 = vector.load %arg10[%c1_151, %c0_152, %c0_153] : memref<2x1x32xf32, #tpu.memory_space<vmem>>, vector<1x1x32xf32>
    %391 = vector.shape_cast %390 : vector<1x1x32xf32> to vector<1x32xf32>
    %392 = vector.broadcast %391 : vector<1x32xf32> to vector<16x32xf32>
    %393 = arith.addf %389, %392 : vector<16x32xf32>
    %394 = arith.addf %377, %393 : vector<16x32xf32>
    %c1_154 = arith.constant 1 : index
    %c0_155 = arith.constant 0 : index
    %c0_156 = arith.constant 0 : index
    %395 = vector.load %arg11[%c1_154, %c0_155, %c0_156] : memref<2x1x32xf32, #tpu.memory_space<vmem>>, vector<1x1x32xf32>
    %396 = vector.shape_cast %395 : vector<1x1x32xf32> to vector<1x32xf32>
    %c1_157 = arith.constant 1 : index
    %c0_158 = arith.constant 0 : index
    %c0_159 = arith.constant 0 : index
    %397 = vector.load %arg12[%c1_157, %c0_158, %c0_159] : memref<2x1x32xf32, #tpu.memory_space<vmem>>, vector<1x1x32xf32>
    %398 = vector.shape_cast %397 : vector<1x1x32xf32> to vector<1x32xf32>
    %cst_160 = arith.constant dense<0.000000e+00> : vector<16xf32>
    %399 = vector.multi_reduction <add>, %394, %cst_160 [1] : vector<16x32xf32> to vector<16xf32>
    %400 = vector.shape_cast %399 : vector<16xf32> to vector<16x1xf32>
    %cst_161 = arith.constant 3.200000e+01 : f32
    %401 = vector.broadcast %cst_161 : f32 to vector<16x1xf32>
    %402 = arith.divf %400, %401 : vector<16x1xf32>
    %403 = vector.broadcast %402 : vector<16x1xf32> to vector<16x32xf32>
    %404 = arith.subf %394, %403 : vector<16x32xf32>
    %405 = arith.mulf %404, %404 : vector<16x32xf32>
    %cst_162 = arith.constant dense<0.000000e+00> : vector<16xf32>
    %406 = vector.multi_reduction <add>, %405, %cst_162 [1] : vector<16x32xf32> to vector<16xf32>
    %407 = vector.shape_cast %406 : vector<16xf32> to vector<16x1xf32>
    %cst_163 = arith.constant 3.200000e+01 : f32
    %408 = vector.broadcast %cst_163 : f32 to vector<16x1xf32>
    %409 = arith.divf %407, %408 : vector<16x1xf32>
    %410 = vector.broadcast %402 : vector<16x1xf32> to vector<16x32xf32>
    %411 = arith.subf %394, %410 : vector<16x32xf32>
    %cst_164 = arith.constant 9.99999974E-6 : f32
    %412 = vector.broadcast %cst_164 : f32 to vector<16x1xf32>
    %413 = arith.addf %409, %412 : vector<16x1xf32>
    %414 = math.rsqrt %413 : vector<16x1xf32>
    %415 = vector.broadcast %414 : vector<16x1xf32> to vector<16x32xf32>
    %416 = arith.mulf %411, %415 : vector<16x32xf32>
    %417 = vector.broadcast %396 : vector<1x32xf32> to vector<16x32xf32>
    %418 = arith.mulf %416, %417 : vector<16x32xf32>
    %419 = vector.broadcast %398 : vector<1x32xf32> to vector<16x32xf32>
    %420 = arith.addf %418, %419 : vector<16x32xf32>
    %c0_165 = arith.constant 0 : index
    %c0_166 = arith.constant 0 : index
    %421 = vector.load %arg13[%c0_165, %c0_166] : memref<1x32xf32, #tpu.memory_space<vmem>>, vector<1x32xf32>
    %c0_167 = arith.constant 0 : index
    %c0_168 = arith.constant 0 : index
    %422 = vector.load %arg14[%c0_167, %c0_168] : memref<1x32xf32, #tpu.memory_space<vmem>>, vector<1x32xf32>
    %cst_169 = arith.constant dense<0.000000e+00> : vector<16xf32>
    %423 = vector.multi_reduction <add>, %420, %cst_169 [1] : vector<16x32xf32> to vector<16xf32>
    %424 = vector.shape_cast %423 : vector<16xf32> to vector<16x1xf32>
    %cst_170 = arith.constant 3.200000e+01 : f32
    %425 = vector.broadcast %cst_170 : f32 to vector<16x1xf32>
    %426 = arith.divf %424, %425 : vector<16x1xf32>
    %427 = vector.broadcast %426 : vector<16x1xf32> to vector<16x32xf32>
    %428 = arith.subf %420, %427 : vector<16x32xf32>
    %429 = arith.mulf %428, %428 : vector<16x32xf32>
    %cst_171 = arith.constant dense<0.000000e+00> : vector<16xf32>
    %430 = vector.multi_reduction <add>, %429, %cst_171 [1] : vector<16x32xf32> to vector<16xf32>
    %431 = vector.shape_cast %430 : vector<16xf32> to vector<16x1xf32>
    %cst_172 = arith.constant 3.200000e+01 : f32
    %432 = vector.broadcast %cst_172 : f32 to vector<16x1xf32>
    %433 = arith.divf %431, %432 : vector<16x1xf32>
    %434 = vector.broadcast %426 : vector<16x1xf32> to vector<16x32xf32>
    %435 = arith.subf %420, %434 : vector<16x32xf32>
    %cst_173 = arith.constant 9.99999974E-6 : f32
    %436 = vector.broadcast %cst_173 : f32 to vector<16x1xf32>
    %437 = arith.addf %433, %436 : vector<16x1xf32>
    %438 = math.rsqrt %437 : vector<16x1xf32>
    %439 = vector.broadcast %438 : vector<16x1xf32> to vector<16x32xf32>
    %440 = arith.mulf %435, %439 : vector<16x32xf32>
    %441 = vector.broadcast %421 : vector<1x32xf32> to vector<16x32xf32>
    %442 = arith.mulf %440, %441 : vector<16x32xf32>
    %443 = vector.broadcast %422 : vector<1x32xf32> to vector<16x32xf32>
    %444 = arith.addf %442, %443 : vector<16x32xf32>
    %c0_174 = arith.constant 0 : index
    %c0_175 = arith.constant 0 : index
    %445 = vector.load %arg15[%c0_174, %c0_175] : memref<16x32xf32, #tpu.memory_space<vmem>>, vector<16x32xf32>
    tpu.vector_store %arg15[%c0_174, %c0_175], %444 {strides = array<i32>} : memref<16x32xf32, #tpu.memory_space<vmem>>, vector<16x32xf32>,
    return
  }
}

</mosaic_0001>

<llo_original>
// kernel: transformer_encoder.1
$region0: #{transformer_encoder.1}
  #allocation0 [shape = 'u32[]', space=smem, size = 0x4, offset = 0x4, fixed_abs, tag = 'smem constant byte address 0x4 - core index']
  #allocation1 [shape = 'u32[144,128]{1,0:T(1,128)}', space=vmem, size = 0x12000, scoped, tag = 'internal scratch']
  %s0 = inlined_call_operand.hbm [shape: f32[16,32], index: 0, kind: input, shape index: {}]
  %s1 = inlined_call_operand.vmem [shape: f32[2,32,96], index: 1, kind: input, shape index: {}]
  %s2 = inlined_call_operand.vmem [shape: f32[2,1,96], index: 2, kind: input, shape index: {}]
  %s3 = inlined_call_operand.vmem [shape: f32[2,32,32], index: 3, kind: input, shape index: {}]
  %s4 = inlined_call_operand.vmem [shape: f32[2,1,32], index: 4, kind: input, shape index: {}]
  %s5 = inlined_call_operand.vmem [shape: f32[2,1,32], index: 5, kind: input, shape index: {}]
  %s6 = inlined_call_operand.vmem [shape: f32[2,1,32], index: 6, kind: input, shape index: {}]
  %s7 = inlined_call_operand.vmem [shape: f32[2,32,64], index: 7, kind: input, shape index: {}]
  %s8 = inlined_call_operand.hbm [shape: f32[2,1,64], index: 8, kind: input, shape index: {}]
  %s9 = inlined_call_operand.vmem [shape: f32[2,64,32], index: 9, kind: input, shape index: {}]
  %s10 = inlined_call_operand.vmem [shape: f32[2,1,32], index: 10, kind: input, shape index: {}]
  %s11 = inlined_call_operand.vmem [shape: f32[2,1,32], index: 11, kind: input, shape index: {}]
  %s12 = inlined_call_operand.vmem [shape: f32[2,1,32], index: 12, kind: input, shape index: {}]
  %s13 = inlined_call_operand.vmem [shape: f32[1,32], index: 13, kind: input, shape index: {}]
  %s14 = inlined_call_operand.vmem [shape: f32[1,32], index: 14, kind: input, shape index: {}]
  %s15 = inlined_call_operand.hbm [shape: f32[16,32], index: 15, kind: output, shape index: {}]
  %s16 = sld [smem:[#allocation0]]
  $region78: #{transformer_encoder.1} parent=0
    _
  %s18 = ssub.s32 1, %s16
  %s19 = scalar_select 0, %s18, %s16
  $region1: #{transformer_encoder.1} parent=0
    #allocation2 [shape = 'u8[8192]{0}', space=vmem, size = 0x2000, scoped, tag = 'input window, operand 0, single buffered']
    #allocation3 [shape = 's32[1]{0}', space=sflag, size = 0x4, scoped, tag = 'scoped memory for transformer_encoder.1']
    #allocation4 [shape = 's32[1]{0}', space=sflag, size = 0x4, scoped, tag = 'scoped memory for transformer_encoder.1']
    #allocation5 [shape = 'u8[1024]{0}', space=vmem, size = 0x400, scoped, tag = 'input window, operand 8, single buffered']
    #allocation6 [shape = 's32[1]{0}', space=sflag, size = 0x4, scoped, tag = 'scoped memory for transformer_encoder.1']
    #allocation7 [shape = 'u8[8192]{0}', space=vmem, size = 0x2000, scoped, tag = 'output window, operand 0, single buffered']
    %20 = vsyncpa [#allocation3], 0
    %21 = vsyncpa [#allocation6], 0
    %22 = vsyncpa [#allocation4], 0
    // Predicated region
    $region2: #{transformer_encoder.1} parent=1 // pred_check
      _
    $region3: #{transformer_encoder.1} parent=1 // pred_check_branch
      %24 = sbr.rel (0) target = $region5
    $region4: #{transformer_encoder.1} parent=1 // pred_region
      %s26 = ssub.s32 256, 256
      %27 = vsyncadd [#allocation3], %s26
      %s28 = sshll.u32 [#allocation2], 4
      %s29 = int_to_ptr.vmem [resolvable:$true] %s28
      %34 = dma.hbm_to_vmem [thread:$0]  %s0, 256, %s29, [#allocation3], 128, 128, 8
    $region5: #{transformer_encoder.1} parent=1 // pred_fallthru
      _
    // Predicated region
    $region6: #{transformer_encoder.1} parent=1 // pred_check
      _
    $region7: #{transformer_encoder.1} parent=1 // pred_check_branch
      %36 = sbr.rel (0) target = $region9
    $region8: #{transformer_encoder.1} parent=1 // pred_region
      _
    $region9: #{transformer_encoder.1} parent=1 // pred_fallthru
      _
    // Predicated region
    $region10: #{transformer_encoder.1} parent=1 // pred_check
      _
    $region11: #{transformer_encoder.1} parent=1 // pred_check_branch
      %38 = sbr.rel (0) target = $region13
    $region12: #{transformer_encoder.1} parent=1 // pred_region
      _
    $region13: #{transformer_encoder.1} parent=1 // pred_fallthru
      _
    // Predicated region
    $region14: #{transformer_encoder.1} parent=1 // pred_check
      _
    $region15: #{transformer_encoder.1} parent=1 // pred_check_branch
      %40 = sbr.rel (0) target = $region17
    $region16: #{transformer_encoder.1} parent=1 // pred_region
      _
    $region17: #{transformer_encoder.1} parent=1 // pred_fallthru
      _
    // Predicated region
    $region18: #{transformer_encoder.1} parent=1 // pred_check
      _
    $region19: #{transformer_encoder.1} parent=1 // pred_check_branch
      %42 = sbr.rel (0) target = $region21
    $region20: #{transformer_encoder.1} parent=1 // pred_region
      _
    $region21: #{transformer_encoder.1} parent=1 // pred_fallthru
      _
    // Predicated region
    $region22: #{transformer_encoder.1} parent=1 // pred_check
      _
    $region23: #{transformer_encoder.1} parent=1 // pred_check_branch
      %44 = sbr.rel (0) target = $region25
    $region24: #{transformer_encoder.1} parent=1 // pred_region
      _
    $region25: #{transformer_encoder.1} parent=1 // pred_fallthru
      _
    // Predicated region
    $region26: #{transformer_encoder.1} parent=1 // pred_check
      _
    $region27: #{transformer_encoder.1} parent=1 // pred_check_branch
      %46 = sbr.rel (0) target = $region29
    $region28: #{transformer_encoder.1} parent=1 // pred_region
      _
    $region29: #{transformer_encoder.1} parent=1 // pred_fallthru
      _
    // Predicated region
    $region30: #{transformer_encoder.1} parent=1 // pred_check
      _
    $region31: #{transformer_encoder.1} parent=1 // pred_check_branch
      %48 = sbr.rel (0) target = $region33
    $region32: #{transformer_encoder.1} parent=1 // pred_region
      _
    $region33: #{transformer_encoder.1} parent=1 // pred_fallthru
      _
    // Predicated region
    $region34: #{transformer_encoder.1} parent=1 // pred_check
      _
    $region35: #{transformer_encoder.1} parent=1 // pred_check_branch
      %50 = sbr.rel (0) target = $region37
    $region36: #{transformer_encoder.1} parent=1 // pred_region
      %s52 = ssub.s32 32, 32
      %53 = vsyncadd [#allocation6], %s52
      %s54 = sshll.u32 [#allocation5], 4
      %s55 = int_to_ptr.vmem [resolvable:$true] %s54
      %60 = dma.hbm_to_vmem [thread:$0]  %s8, 32, %s55, [#allocation6], 16, 16, 1
    $region37: #{transformer_encoder.1} parent=1 // pred_fallthru
      _
    // Predicated region
    $region38: #{transformer_encoder.1} parent=1 // pred_check
      _
    $region39: #{transformer_encoder.1} parent=1 // pred_check_branch
      %62 = sbr.rel (0) target = $region41
    $region40: #{transformer_encoder.1} parent=1 // pred_region
      _
    $region41: #{transformer_encoder.1} parent=1 // pred_fallthru
      _
    // Predicated region
    $region42: #{transformer_encoder.1} parent=1 // pred_check
      _
    $region43: #{transformer_encoder.1} parent=1 // pred_check_branch
      %64 = sbr.rel (0) target = $region45
    $region44: #{transformer_encoder.1} parent=1 // pred_region
      _
    $region45: #{transformer_encoder.1} parent=1 // pred_fallthru
      _
    // Predicated region
    $region46: #{transformer_encoder.1} parent=1 // pred_check
      _
    $region47: #{transformer_encoder.1} parent=1 // pred_check_branch
      %66 = sbr.rel (0) target = $region49
    $region48: #{transformer_encoder.1} parent=1 // pred_region
      _
    $region49: #{transformer_encoder.1} parent=1 // pred_fallthru
      _
    // Predicated region
    $region50: #{transformer_encoder.1} parent=1 // pred_check
      _
    $region51: #{transformer_encoder.1} parent=1 // pred_check_branch
      %68 = sbr.rel (0) target = $region53
    $region52: #{transformer_encoder.1} parent=1 // pred_region
      _
    $region53: #{transformer_encoder.1} parent=1 // pred_fallthru
      _
    // Predicated region
    $region54: #{transformer_encoder.1} parent=1 // pred_check
      _
    $region55: #{transformer_encoder.1} parent=1 // pred_check_branch
      %70 = sbr.rel (0) target = $region57
    $region56: #{transformer_encoder.1} parent=1 // pred_region
      _
    $region57: #{transformer_encoder.1} parent=1 // pred_fallthru
      _
    // Predicated region
    $region58: #{transformer_encoder.1} parent=1 // pred_check
      _
    $region59: #{transformer_encoder.1} parent=1 // pred_check_branch
      %72 = sbr.rel (0) target = $region61
    $region60: #{transformer_encoder.1} parent=1 // pred_region
      _
    $region61: #{transformer_encoder.1} parent=1 // pred_fallthru
      _
    // Predicated region
    $region62: #{transformer_encoder.1} parent=1 // pred_check
      _
    $region63: #{transformer_encoder.1} parent=1 // pred_check_branch
      %74 = sbr.rel (0) target = $region65
    $region64: #{transformer_encoder.1} parent=1 // pred_region
      %75 = dma.done [#allocation3], 256
    $region65: #{transformer_encoder.1} parent=1 // pred_fallthru
      _
    // Predicated region
    $region66: #{transformer_encoder.1} parent=1 // pred_check
      _
    $region67: #{transformer_encoder.1} parent=1 // pred_check_branch
      %77 = sbr.rel (0) target = $region69
    $region68: #{transformer_encoder.1} parent=1 // pred_region
      %78 = dma.done [#allocation6], 32
    $region69: #{transformer_encoder.1} parent=1 // pred_fallthru
      _
    %v79 = vld [vmem:[#allocation2] sm:$0xff]
    %v80 = vld [vmem:[#allocation2 + $0x8] sm:$0xff]
    %v81 = vld [vmem:[%s1] sm:$0xff]
    %v82 = vld [vmem:[%s1 + $0x8] sm:$0xff]
    %v83 = vld [vmem:[%s1 + $0x10] sm:$0xff]
    %v84 = vld [vmem:[%s1 + $0x18] sm:$0xff]
    %v85 = vld [vmem:[%s2] sm:$0x1]
    %v87 = vlaneseq
    %v88 = vshrl.u32 %v87, 7
    %v89 = vsub.s32 0, %v88
    %v90 = vrot.slane %v85, %v89
    %vm92 = vcmask 261120
    %v94 = vsel %vm92, %v79, 0
    %v97 = vsel %vm92, %v80, 0
    %99 = vmatprep.subr.mxu0 0.0
    %100 = vmatpush1.msra.mxu0 %v81
    %101 = vmatprep.subr.mxu0 0.0
    %102 = vmatpush1.msra.mxu0 %v82
    %103 = vmatprep.subr.mxu0 0.0
    %104 = vmatpush1.msra.mxu0 %v83
    %105 = vmatprep.subr.mxu0 0.0
    %106 = vmatpush1.msra.mxu0 %v84
    %107 = vmatprep.subr.mxu0 0.0
    %108 = vmatpush1.msra.mxu0 0.0
    %109 = vmatprep.subr.mxu0 0.0
    %110 = vmatpush1.msra.mxu0 0.0
    %111 = vmatprep.subr.mxu0 0.0
    %112 = vmatpush1.msra.mxu0 0.0
    %113 = vmatprep.subr.mxu0 0.0
    %114 = vmatpush1.msra.mxu0 0.0
    %115 = vmatprep.subr.mxu0 0.0
    %116 = vmatpush1.msra.mxu0 0.0
    %117 = vmatprep.subr.mxu0 0.0
    %118 = vmatpush1.msra.mxu0 0.0
    %119 = vmatprep.subr.mxu0 0.0
    %120 = vmatpush1.msra.mxu0 0.0
    %121 = vmatprep.subr.mxu0 0.0
    %122 = vmatpush1.msra.mxu0 0.0
    %123 = vmatprep.subr.mxu0 0.0
    %124 = vmatpush1.msra.mxu0 0.0
    %125 = vmatprep.subr.mxu0 0.0
    %126 = vmatpush1.msra.mxu0 0.0
    %127 = vmatprep.subr.mxu0 0.0
    %128 = vmatpush1.msra.mxu0 0.0
    %129 = vmatprep.subr.mxu0 0.0
    %130 = vmatpush1.msra.mxu0 0.0
    %131 = vmatprep.subr.mxu0 0.0
    %132 = vmatpush1.msra.mxu0 0.0
    %133 = vmatprep.subr.mxu0 0.0
    %134 = vmatpush1.msra.mxu0 0.0
    %135 = vmatprep.subr.mxu0 0.0
    %136 = vmatpush1.msra.mxu0 0.0
    %137 = vmatprep.subr.mxu0 0.0
    %138 = vmatpush1.msra.mxu0 0.0
    %139 = vmatprep.subr.mxu0 0.0
    %140 = vmatpush1.msra.mxu0 0.0
    %141 = vmatprep.subr.mxu0 0.0
    %142 = vmatpush1.msra.mxu0 0.0
    %143 = vmatprep.subr.mxu0 0.0
    %144 = vmatpush1.msra.mxu0 0.0
    %145 = vmatprep.subr.mxu0 0.0
    %146 = vmatpush1.msra.mxu0 0.0
    %147 = vmatprep.subr.mxu0 0.0
    %148 = vmatpush1.msra.mxu0 0.0
    %149 = vmatprep.subr.mxu0 0.0
    %150 = vmatpush1.msra.mxu0 0.0
    %151 = vmatprep.subr.mxu0 0.0
    %152 = vmatpush1.msra.mxu0 0.0
    %153 = vmatprep.subr.mxu0 0.0
    %154 = vmatpush1.msra.mxu0 0.0
    %155 = vmatprep.subr.mxu0 0.0
    %156 = vmatpush1.msra.mxu0 0.0
    %157 = vmatprep.subr.mxu0 0.0
    %158 = vmatpush1.msra.mxu0 0.0
    %159 = vmatprep.subr.mxu0 0.0
    %160 = vmatpush1.msra.mxu0 0.0
    %161 = vmatprep.subr.mxu0 0.0
    %162 = vmatpush1.msra.mxu0 0.0
    %163 = vmatprep.mubr.f32.mxu0 0.0
    %164 = vmatmul.mubr.f32.gmra.mrb[0].mxu0 %v94
    %v165 = vpop.f32.mrb[0].mxu0
    %v166 = vadd.f32 %v90, %v165
    %v167 = vpop.f32.mrb[0].mxu0
    %168 = vmatprep.mubr.f32.mxu0 0.0
    %169 = vmatmul.mubr.f32.gmra.mrb[0].mxu0 %v97
    %v170 = vpop.f32.mrb[0].mxu0
    %v171 = vadd.f32 %v90, %v170
    %v172 = vpop.f32.mrb[0].mxu0
    %173 = vdwg.mxu0
    %175 = vrot.lane.b32.xlu0 %v166, 96
    %v176 = vpop.permute.xlu0 %175
    %vm177 = vcmask 64512
    %v178 = vsel %vm177, %v166, 0
    %v180 = vsel %vm177, %v176, 0
    %182 = vmatprep.subr.mxu0 0.0
    %183 = vmatpush1.xpose.msra.mxu0 %v180
    %184 = vmatprep.subr.mxu0 0.0
    %185 = vmatpush1.xpose.msra.mxu0 0.0
    %186 = vmatprep.subr.mxu0 0.0
    %187 = vmatpush1.xpose.msra.mxu0 0.0
    %188 = vmatprep.subr.mxu0 0.0
    %189 = vmatpush1.xpose.msra.mxu0 0.0
    %190 = vmatprep.subr.mxu0 0.0
    %191 = vmatpush1.xpose.msra.mxu0 0.0
    %192 = vmatprep.subr.mxu0 0.0
    %193 = vmatpush1.xpose.msra.mxu0 0.0
    %194 = vmatprep.subr.mxu0 0.0
    %195 = vmatpush1.xpose.msra.mxu0 0.0
    %196 = vmatprep.subr.mxu0 0.0
    %197 = vmatpush1.xpose.msra.mxu0 0.0
    %198 = vmatprep.subr.mxu0 0.0
    %199 = vmatpush1.xpose.msra.mxu0 0.0
    %200 = vmatprep.subr.mxu0 0.0
    %201 = vmatpush1.xpose.msra.mxu0 0.0
    %202 = vmatprep.subr.mxu0 0.0
    %203 = vmatpush1.xpose.msra.mxu0 0.0
    %204 = vmatprep.subr.mxu0 0.0
    %205 = vmatpush1.xpose.msra.mxu0 0.0
    %206 = vmatprep.subr.mxu0 0.0
    %207 = vmatpush1.xpose.msra.mxu0 0.0
    %208 = vmatprep.subr.mxu0 0.0
    %209 = vmatpush1.xpose.msra.mxu0 0.0
    %210 = vmatprep.subr.mxu0 0.0
    %211 = vmatpush1.xpose.msra.mxu0 0.0
    %212 = vmatprep.subr.mxu0 0.0
    %213 = vmatpush1.xpose.msra.mxu0 0.0
    %214 = vmatprep.subr.mxu0 0.0
    %215 = vmatpush1.xpose.msra.mxu0 0.0
    %216 = vmatprep.subr.mxu0 0.0
    %217 = vmatpush1.xpose.msra.mxu0 0.0
    %218 = vmatprep.subr.mxu0 0.0
    %219 = vmatpush1.xpose.msra.mxu0 0.0
    %220 = vmatprep.subr.mxu0 0.0
    %221 = vmatpush1.xpose.msra.mxu0 0.0
    %222 = vmatprep.subr.mxu0 0.0
    %223 = vmatpush1.xpose.msra.mxu0 0.0
    %224 = vmatprep.subr.mxu0 0.0
    %225 = vmatpush1.xpose.msra.mxu0 0.0
    %226 = vmatprep.subr.mxu0 0.0
    %227 = vmatpush1.xpose.msra.mxu0 0.0
    %228 = vmatprep.subr.mxu0 0.0
    %229 = vmatpush1.xpose.msra.mxu0 0.0
    %230 = vmatprep.subr.mxu0 0.0
    %231 = vmatpush1.xpose.msra.mxu0 0.0
    %232 = vmatprep.subr.mxu0 0.0
    %233 = vmatpush1.xpose.msra.mxu0 0.0
    %234 = vmatprep.subr.mxu0 0.0
    %235 = vmatpush1.xpose.msra.mxu0 0.0
    %236 = vmatprep.subr.mxu0 0.0
    %237 = vmatpush1.xpose.msra.mxu0 0.0
    %238 = vmatprep.subr.mxu0 0.0
    %239 = vmatpush1.xpose.msra.mxu0 0.0
    %240 = vmatprep.subr.mxu0 0.0
    %241 = vmatpush1.xpose.msra.mxu0 0.0
    %242 = vmatprep.subr.mxu0 0.0
    %243 = vmatpush1.xpose.msra.mxu0 0.0
    %244 = vmatprep.subr.mxu0 0.0
    %245 = vmatpush1.xpose.msra.mxu0 0.0
    %246 = vmatprep.mubr.f32.mxu0 0.0
    %247 = vmatmul.mubr.f32.gmra.mrb[0].mxu0 %v178
    %v248 = vpop.f32.mrb[0].mxu0
    %v249 = vadd.f32 0.0, %v248
    %v250 = vpop.f32.mrb[0].mxu0
    %251 = vdwg.mxu0
    %v252 = vsel %vm177, %v249, -inf
    %253 = vmax.xlane.f32.xlu0 %v252
    %v254 = vpop.xlane.xlu0 %253
    %v255 = vsub.f32 %v249, %v254
    %v256 = vmul.f32 %v255, 1.442695
    %v257 = vpow.pop %v256
    %v258 = vsel %vm177, %v257, 0.0
    %259 = vadd.xlane.f32.xlu0 %v258
    %v260 = vpop.xlane.xlu0 %259
    %v261 = vrcp.pop %v260
    %v262 = vmul.f32 %v257, %v261
    %263 = vrot.lane.b32.xlu0 %v166, 64
    %v264 = vpop.permute.xlu0 %263
    %v267 = vsel %vm177, %v262, 0
    %269 = vmatprep.subr.mxu0 0.0
    %270 = vmatpush1.msra.mxu0 %v264
    %271 = vmatprep.subr.mxu0 0.0
    %272 = vmatpush1.msra.mxu0 0.0
    %273 = vmatprep.subr.mxu0 0.0
    %274 = vmatpush1.msra.mxu0 0.0
    %275 = vmatprep.subr.mxu0 0.0
    %276 = vmatpush1.msra.mxu0 0.0
    %277 = vmatprep.subr.mxu0 0.0
    %278 = vmatpush1.msra.mxu0 0.0
    %279 = vmatprep.subr.mxu0 0.0
    %280 = vmatpush1.msra.mxu0 0.0
    %281 = vmatprep.subr.mxu0 0.0
    %282 = vmatpush1.msra.mxu0 0.0
    %283 = vmatprep.subr.mxu0 0.0
    %284 = vmatpush1.msra.mxu0 0.0
    %285 = vmatprep.subr.mxu0 0.0
    %286 = vmatpush1.msra.mxu0 0.0
    %287 = vmatprep.subr.mxu0 0.0
    %288 = vmatpush1.msra.mxu0 0.0
    %289 = vmatprep.subr.mxu0 0.0
    %290 = vmatpush1.msra.mxu0 0.0
    %291 = vmatprep.subr.mxu0 0.0
    %292 = vmatpush1.msra.mxu0 0.0
    %293 = vmatprep.subr.mxu0 0.0
    %294 = vmatpush1.msra.mxu0 0.0
    %295 = vmatprep.subr.mxu0 0.0
    %296 = vmatpush1.msra.mxu0 0.0
    %297 = vmatprep.subr.mxu0 0.0
    %298 = vmatpush1.msra.mxu0 0.0
    %299 = vmatprep.subr.mxu0 0.0
    %300 = vmatpush1.msra.mxu0 0.0
    %301 = vmatprep.subr.mxu0 0.0
    %302 = vmatpush1.msra.mxu0 0.0
    %303 = vmatprep.subr.mxu0 0.0
    %304 = vmatpush1.msra.mxu0 0.0
    %305 = vmatprep.subr.mxu0 0.0
    %306 = vmatpush1.msra.mxu0 0.0
    %307 = vmatprep.subr.mxu0 0.0
    %308 = vmatpush1.msra.mxu0 0.0
    %309 = vmatprep.subr.mxu0 0.0
    %310 = vmatpush1.msra.mxu0 0.0
    %311 = vmatprep.subr.mxu0 0.0
    %312 = vmatpush1.msra.mxu0 0.0
    %313 = vmatprep.subr.mxu0 0.0
    %314 = vmatpush1.msra.mxu0 0.0
    %315 = vmatprep.subr.mxu0 0.0
    %316 = vmatpush1.msra.mxu0 0.0
    %317 = vmatprep.subr.mxu0 0.0
    %318 = vmatpush1.msra.mxu0 0.0
    %319 = vmatprep.subr.mxu0 0.0
    %320 = vmatpush1.msra.mxu0 0.0
    %321 = vmatprep.subr.mxu0 0.0
    %322 = vmatpush1.msra.mxu0 0.0
    %323 = vmatprep.subr.mxu0 0.0
    %324 = vmatpush1.msra.mxu0 0.0
    %325 = vmatprep.subr.mxu0 0.0
    %326 = vmatpush1.msra.mxu0 0.0
    %327 = vmatprep.subr.mxu0 0.0
    %328 = vmatpush1.msra.mxu0 0.0
    %329 = vmatprep.subr.mxu0 0.0
    %330 = vmatpush1.msra.mxu0 0.0
    %331 = vmatprep.subr.mxu0 0.0
    %332 = vmatpush1.msra.mxu0 0.0
    %333 = vmatprep.mubr.f32.mxu0 0.0
    %334 = vmatmul.mubr.f32.gmra.mrb[0].mxu0 %v267
    %v335 = vpop.f32.mrb[0].mxu0
    %v336 = vadd.f32 0.0, %v335
    %v337 = vpop.f32.mrb[0].mxu0
    %338 = vdwg.mxu0
    %339 = vrot.lane.b32.xlu0 %v166, 120
    %v340 = vpop.permute.xlu0 %339
    %341 = vrot.lane.b32.xlu0 %v166, 88
    %v342 = vpop.permute.xlu0 %341
    %v343 = vsel %vm177, %v340, 0
    %v345 = vsel %vm177, %v342, 0
    %347 = vmatprep.subr.mxu0 0.0
    %348 = vmatpush1.xpose.msra.mxu0 %v345
    %349 = vmatprep.subr.mxu0 0.0
    %350 = vmatpush1.xpose.msra.mxu0 0.0
    %351 = vmatprep.subr.mxu0 0.0
    %352 = vmatpush1.xpose.msra.mxu0 0.0
    %353 = vmatprep.subr.mxu0 0.0
    %354 = vmatpush1.xpose.msra.mxu0 0.0
    %355 = vmatprep.subr.mxu0 0.0
    %356 = vmatpush1.xpose.msra.mxu0 0.0
    %357 = vmatprep.subr.mxu0 0.0
    %358 = vmatpush1.xpose.msra.mxu0 0.0
    %359 = vmatprep.subr.mxu0 0.0
    %360 = vmatpush1.xpose.msra.mxu0 0.0
    %361 = vmatprep.subr.mxu0 0.0
    %362 = vmatpush1.xpose.msra.mxu0 0.0
    %363 = vmatprep.subr.mxu0 0.0
    %364 = vmatpush1.xpose.msra.mxu0 0.0
    %365 = vmatprep.subr.mxu0 0.0
    %366 = vmatpush1.xpose.msra.mxu0 0.0
    %367 = vmatprep.subr.mxu0 0.0
    %368 = vmatpush1.xpose.msra.mxu0 0.0
    %369 = vmatprep.subr.mxu0 0.0
    %370 = vmatpush1.xpose.msra.mxu0 0.0
    %371 = vmatprep.subr.mxu0 0.0
    %372 = vmatpush1.xpose.msra.mxu0 0.0
    %373 = vmatprep.subr.mxu0 0.0
    %374 = vmatpush1.xpose.msra.mxu0 0.0
    %375 = vmatprep.subr.mxu0 0.0
    %376 = vmatpush1.xpose.msra.mxu0 0.0
    %377 = vmatprep.subr.mxu0 0.0
    %378 = vmatpush1.xpose.msra.mxu0 0.0
    %379 = vmatprep.subr.mxu0 0.0
    %380 = vmatpush1.xpose.msra.mxu0 0.0
    %381 = vmatprep.subr.mxu0 0.0
    %382 = vmatpush1.xpose.msra.mxu0 0.0
    %383 = vmatprep.subr.mxu0 0.0
    %384 = vmatpush1.xpose.msra.mxu0 0.0
    %385 = vmatprep.subr.mxu0 0.0
    %386 = vmatpush1.xpose.msra.mxu0 0.0
    %387 = vmatprep.subr.mxu0 0.0
    %388 = vmatpush1.xpose.msra.mxu0 0.0
    %389 = vmatprep.subr.mxu0 0.0
    %390 = vmatpush1.xpose.msra.mxu0 0.0
    %391 = vmatprep.subr.mxu0 0.0
    %392 = vmatpush1.xpose.msra.mxu0 0.0
    %393 = vmatprep.subr.mxu0 0.0
    %394 = vmatpush1.xpose.msra.mxu0 0.0
    %395 = vmatprep.subr.mxu0 0.0
    %396 = vmatpush1.xpose.msra.mxu0 0.0
    %397 = vmatprep.subr.mxu0 0.0
    %398 = vmatpush1.xpose.msra.mxu0 0.0
    %399 = vmatprep.subr.mxu0 0.0
    %400 = vmatpush1.xpose.msra.mxu0 0.0
    %401 = vmatprep.subr.mxu0 0.0
    %402 = vmatpush1.xpose.msra.mxu0 0.0
    %403 = vmatprep.subr.mxu0 0.0
    %404 = vmatpush1.xpose.msra.mxu0 0.0
    %405 = vmatprep.subr.mxu0 0.0
    %406 = vmatpush1.xpose.msra.mxu0 0.0
    %407 = vmatprep.subr.mxu0 0.0
    %408 = vmatpush1.xpose.msra.mxu0 0.0
    %409 = vmatprep.subr.mxu0 0.0
    %410 = vmatpush1.xpose.msra.mxu0 0.0
    %411 = vmatprep.mubr.f32.mxu0 0.0
    %412 = vmatmul.mubr.f32.gmra.mrb[0].mxu0 %v343
    %v413 = vpop.f32.mrb[0].mxu0
    %v414 = vadd.f32 0.0, %v413
    %v415 = vpop.f32.mrb[0].mxu0
    %416 = vdwg.mxu0
    %v417 = vsel %vm177, %v414, -inf
    %418 = vmax.xlane.f32.xlu0 %v417
    %v419 = vpop.xlane.xlu0 %418
    %v420 = vsub.f32 %v414, %v419
    %v421 = vmul.f32 %v420, 1.442695
    %v422 = vpow.pop %v421
    %v423 = vsel %vm177, %v422, 0.0
    %424 = vadd.xlane.f32.xlu0 %v423
    %v425 = vpop.xlane.xlu0 %424
    %v426 = vrcp.pop %v425
    %v427 = vmul.f32 %v422, %v426
    %428 = vrot.lane.b32.xlu0 %v166, 56
    %v429 = vpop.permute.xlu0 %428
    %v432 = vsel %vm177, %v427, 0
    %434 = vmatprep.subr.mxu0 0.0
    %435 = vmatpush1.msra.mxu0 %v429
    %436 = vmatprep.subr.mxu0 0.0
    %437 = vmatpush1.msra.mxu0 0.0
    %438 = vmatprep.subr.mxu0 0.0
    %439 = vmatpush1.msra.mxu0 0.0
    %440 = vmatprep.subr.mxu0 0.0
    %441 = vmatpush1.msra.mxu0 0.0
    %442 = vmatprep.subr.mxu0 0.0
    %443 = vmatpush1.msra.mxu0 0.0
    %444 = vmatprep.subr.mxu0 0.0
    %445 = vmatpush1.msra.mxu0 0.0
    %446 = vmatprep.subr.mxu0 0.0
    %447 = vmatpush1.msra.mxu0 0.0
    %448 = vmatprep.subr.mxu0 0.0
    %449 = vmatpush1.msra.mxu0 0.0
    %450 = vmatprep.subr.mxu0 0.0
    %451 = vmatpush1.msra.mxu0 0.0
    %452 = vmatprep.subr.mxu0 0.0
    %453 = vmatpush1.msra.mxu0 0.0
    %454 = vmatprep.subr.mxu0 0.0
    %455 = vmatpush1.msra.mxu0 0.0
    %456 = vmatprep.subr.mxu0 0.0
    %457 = vmatpush1.msra.mxu0 0.0
    %458 = vmatprep.subr.mxu0 0.0
    %459 = vmatpush1.msra.mxu0 0.0
    %460 = vmatprep.subr.mxu0 0.0
    %461 = vmatpush1.msra.mxu0 0.0
    %462 = vmatprep.subr.mxu0 0.0
    %463 = vmatpush1.msra.mxu0 0.0
    %464 = vmatprep.subr.mxu0 0.0
    %465 = vmatpush1.msra.mxu0 0.0
    %466 = vmatprep.subr.mxu0 0.0
    %467 = vmatpush1.msra.mxu0 0.0
    %468 = vmatprep.subr.mxu0 0.0
    %469 = vmatpush1.msra.mxu0 0.0
    %470 = vmatprep.subr.mxu0 0.0
    %471 = vmatpush1.msra.mxu0 0.0
    %472 = vmatprep.subr.mxu0 0.0
    %473 = vmatpush1.msra.mxu0 0.0
    %474 = vmatprep.subr.mxu0 0.0
    %475 = vmatpush1.msra.mxu0 0.0
    %476 = vmatprep.subr.mxu0 0.0
    %477 = vmatpush1.msra.mxu0 0.0
    %478 = vmatprep.subr.mxu0 0.0
    %479 = vmatpush1.msra.mxu0 0.0
    %480 = vmatprep.subr.mxu0 0.0
    %481 = vmatpush1.msra.mxu0 0.0
    %482 = vmatprep.subr.mxu0 0.0
    %483 = vmatpush1.msra.mxu0 0.0
    %484 = vmatprep.subr.mxu0 0.0
    %485 = vmatpush1.msra.mxu0 0.0
    %486 = vmatprep.subr.mxu0 0.0
    %487 = vmatpush1.msra.mxu0 0.0
    %488 = vmatprep.subr.mxu0 0.0
    %489 = vmatpush1.msra.mxu0 0.0
    %490 = vmatprep.subr.mxu0 0.0
    %491 = vmatpush1.msra.mxu0 0.0
    %492 = vmatprep.subr.mxu0 0.0
    %493 = vmatpush1.msra.mxu0 0.0
    %494 = vmatprep.subr.mxu0 0.0
    %495 = vmatpush1.msra.mxu0 0.0
    %496 = vmatprep.subr.mxu0 0.0
    %497 = vmatpush1.msra.mxu0 0.0
    %498 = vmatprep.mubr.f32.mxu0 0.0
    %499 = vmatmul.mubr.f32.gmra.mrb[0].mxu0 %v432
    %v500 = vpop.f32.mrb[0].mxu0
    %v501 = vadd.f32 0.0, %v500
    %v502 = vpop.f32.mrb[0].mxu0
    %503 = vdwg.mxu0
    %504 = vrot.lane.b32.xlu0 %v166, 112
    %v505 = vpop.permute.xlu0 %504
    %506 = vrot.lane.b32.xlu0 %v166, 80
    %v507 = vpop.permute.xlu0 %506
    %v508 = vsel %vm177, %v505, 0
    %v510 = vsel %vm177, %v507, 0
    %512 = vmatprep.subr.mxu0 0.0
    %513 = vmatpush1.xpose.msra.mxu0 %v510
    %514 = vmatprep.subr.mxu0 0.0
    %515 = vmatpush1.xpose.msra.mxu0 0.0
    %516 = vmatprep.subr.mxu0 0.0
    %517 = vmatpush1.xpose.msra.mxu0 0.0
    %518 = vmatprep.subr.mxu0 0.0
    %519 = vmatpush1.xpose.msra.mxu0 0.0
    %520 = vmatprep.subr.mxu0 0.0
    %521 = vmatpush1.xpose.msra.mxu0 0.0
    %522 = vmatprep.subr.mxu0 0.0
    %523 = vmatpush1.xpose.msra.mxu0 0.0
    %524 = vmatprep.subr.mxu0 0.0
    %525 = vmatpush1.xpose.msra.mxu0 0.0
    %526 = vmatprep.subr.mxu0 0.0
    %527 = vmatpush1.xpose.msra.mxu0 0.0
    %528 = vmatprep.subr.mxu0 0.0
    %529 = vmatpush1.xpose.msra.mxu0 0.0
    %530 = vmatprep.subr.mxu0 0.0
    %531 = vmatpush1.xpose.msra.mxu0 0.0
    %532 = vmatprep.subr.mxu0 0.0
    %533 = vmatpush1.xpose.msra.mxu0 0.0
    %534 = vmatprep.subr.mxu0 0.0
    %535 = vmatpush1.xpose.msra.mxu0 0.0
    %536 = vmatprep.subr.mxu0 0.0
    %537 = vmatpush1.xpose.msra.mxu0 0.0
    %538 = vmatprep.subr.mxu0 0.0
    %539 = vmatpush1.xpose.msra.mxu0 0.0
    %540 = vmatprep.subr.mxu0 0.0
    %541 = vmatpush1.xpose.msra.mxu0 0.0
    %542 = vmatprep.subr.mxu0 0.0
    %543 = vmatpush1.xpose.msra.mxu0 0.0
    %544 = vmatprep.subr.mxu0 0.0
    %545 = vmatpush1.xpose.msra.mxu0 0.0
    %546 = vmatprep.subr.mxu0 0.0
    %547 = vmatpush1.xpose.msra.mxu0 0.0
    %548 = vmatprep.subr.mxu0 0.0
    %549 = vmatpush1.xpose.msra.mxu0 0.0
    %550 = vmatprep.subr.mxu0 0.0
    %551 = vmatpush1.xpose.msra.mxu0 0.0
    %552 = vmatprep.subr.mxu0 0.0
    %553 = vmatpush1.xpose.msra.mxu0 0.0
    %554 = vmatprep.subr.mxu0 0.0
    %555 = vmatpush1.xpose.msra.mxu0 0.0
    %556 = vmatprep.subr.mxu0 0.0
    %557 = vmatpush1.xpose.msra.mxu0 0.0
    %558 = vmatprep.subr.mxu0 0.0
    %559 = vmatpush1.xpose.msra.mxu0 0.0
    %560 = vmatprep.subr.mxu0 0.0
    %561 = vmatpush1.xpose.msra.mxu0 0.0
    %562 = vmatprep.subr.mxu0 0.0
    %563 = vmatpush1.xpose.msra.mxu0 0.0
    %564 = vmatprep.subr.mxu0 0.0
    %565 = vmatpush1.xpose.msra.mxu0 0.0
    %566 = vmatprep.subr.mxu0 0.0
    %567 = vmatpush1.xpose.msra.mxu0 0.0
    %568 = vmatprep.subr.mxu0 0.0
    %569 = vmatpush1.xpose.msra.mxu0 0.0
    %570 = vmatprep.subr.mxu0 0.0
    %571 = vmatpush1.xpose.msra.mxu0 0.0
    %572 = vmatprep.subr.mxu0 0.0
    %573 = vmatpush1.xpose.msra.mxu0 0.0
    %574 = vmatprep.subr.mxu0 0.0
    %575 = vmatpush1.xpose.msra.mxu0 0.0
    %576 = vmatprep.mubr.f32.mxu0 0.0
    %577 = vmatmul.mubr.f32.gmra.mrb[0].mxu0 %v508
    %v578 = vpop.f32.mrb[0].mxu0
    %v579 = vadd.f32 0.0, %v578
    %v580 = vpop.f32.mrb[0].mxu0
    %581 = vdwg.mxu0
    %v582 = vsel %vm177, %v579, -inf
    %583 = vmax.xlane.f32.xlu0 %v582
    %v584 = vpop.xlane.xlu0 %583
    %v585 = vsub.f32 %v579, %v584
    %v586 = vmul.f32 %v585, 1.442695
    %v587 = vpow.pop %v586
    %v588 = vsel %vm177, %v587, 0.0
    %589 = vadd.xlane.f32.xlu0 %v588
    %v590 = vpop.xlane.xlu0 %589
    %v591 = vrcp.pop %v590
    %v592 = vmul.f32 %v587, %v591
    %593 = vrot.lane.b32.xlu0 %v166, 48
    %v594 = vpop.permute.xlu0 %593
    %v597 = vsel %vm177, %v592, 0
    %599 = vmatprep.subr.mxu0 0.0
    %600 = vmatpush1.msra.mxu0 %v594
    %601 = vmatprep.subr.mxu0 0.0
    %602 = vmatpush1.msra.mxu0 0.0
    %603 = vmatprep.subr.mxu0 0.0
    %604 = vmatpush1.msra.mxu0 0.0
    %605 = vmatprep.subr.mxu0 0.0
    %606 = vmatpush1.msra.mxu0 0.0
    %607 = vmatprep.subr.mxu0 0.0
    %608 = vmatpush1.msra.mxu0 0.0
    %609 = vmatprep.subr.mxu0 0.0
    %610 = vmatpush1.msra.mxu0 0.0
    %611 = vmatprep.subr.mxu0 0.0
    %612 = vmatpush1.msra.mxu0 0.0
    %613 = vmatprep.subr.mxu0 0.0
    %614 = vmatpush1.msra.mxu0 0.0
    %615 = vmatprep.subr.mxu0 0.0
    %616 = vmatpush1.msra.mxu0 0.0
    %617 = vmatprep.subr.mxu0 0.0
    %618 = vmatpush1.msra.mxu0 0.0
    %619 = vmatprep.subr.mxu0 0.0
    %620 = vmatpush1.msra.mxu0 0.0
    %621 = vmatprep.subr.mxu0 0.0
    %622 = vmatpush1.msra.mxu0 0.0
    %623 = vmatprep.subr.mxu0 0.0
    %624 = vmatpush1.msra.mxu0 0.0
    %625 = vmatprep.subr.mxu0 0.0
    %626 = vmatpush1.msra.mxu0 0.0
    %627 = vmatprep.subr.mxu0 0.0
    %628 = vmatpush1.msra.mxu0 0.0
    %629 = vmatprep.subr.mxu0 0.0
    %630 = vmatpush1.msra.mxu0 0.0
    %631 = vmatprep.subr.mxu0 0.0
    %632 = vmatpush1.msra.mxu0 0.0
    %633 = vmatprep.subr.mxu0 0.0
    %634 = vmatpush1.msra.mxu0 0.0
    %635 = vmatprep.subr.mxu0 0.0
    %636 = vmatpush1.msra.mxu0 0.0
    %637 = vmatprep.subr.mxu0 0.0
    %638 = vmatpush1.msra.mxu0 0.0
    %639 = vmatprep.subr.mxu0 0.0
    %640 = vmatpush1.msra.mxu0 0.0
    %641 = vmatprep.subr.mxu0 0.0
    %642 = vmatpush1.msra.mxu0 0.0
    %643 = vmatprep.subr.mxu0 0.0
    %644 = vmatpush1.msra.mxu0 0.0
    %645 = vmatprep.subr.mxu0 0.0
    %646 = vmatpush1.msra.mxu0 0.0
    %647 = vmatprep.subr.mxu0 0.0
    %648 = vmatpush1.msra.mxu0 0.0
    %649 = vmatprep.subr.mxu0 0.0
    %650 = vmatpush1.msra.mxu0 0.0
    %651 = vmatprep.subr.mxu0 0.0
    %652 = vmatpush1.msra.mxu0 0.0
    %653 = vmatprep.subr.mxu0 0.0
    %654 = vmatpush1.msra.mxu0 0.0
    %655 = vmatprep.subr.mxu0 0.0
    %656 = vmatpush1.msra.mxu0 0.0
    %657 = vmatprep.subr.mxu0 0.0
    %658 = vmatpush1.msra.mxu0 0.0
    %659 = vmatprep.subr.mxu0 0.0
    %660 = vmatpush1.msra.mxu0 0.0
    %661 = vmatprep.subr.mxu0 0.0
    %662 = vmatpush1.msra.mxu0 0.0
    %663 = vmatprep.mubr.f32.mxu0 0.0
    %664 = vmatmul.mubr.f32.gmra.mrb[0].mxu0 %v597
    %v665 = vpop.f32.mrb[0].mxu0
    %v666 = vadd.f32 0.0, %v665
    %v667 = vpop.f32.mrb[0].mxu0
    %668 = vdwg.mxu0
    %669 = vrot.lane.b32.xlu0 %v166, 104
    %v670 = vpop.permute.xlu0 %669
    %671 = vrot.lane.b32.xlu0 %v166, 72
    %v672 = vpop.permute.xlu0 %671
    %v673 = vsel %vm177, %v670, 0
    %v675 = vsel %vm177, %v672, 0
    %677 = vmatprep.subr.mxu0 0.0
    %678 = vmatpush1.xpose.msra.mxu0 %v675
    %679 = vmatprep.subr.mxu0 0.0
    %680 = vmatpush1.xpose.msra.mxu0 0.0
    %681 = vmatprep.subr.mxu0 0.0
    %682 = vmatpush1.xpose.msra.mxu0 0.0
    %683 = vmatprep.subr.mxu0 0.0
    %684 = vmatpush1.xpose.msra.mxu0 0.0
    %685 = vmatprep.subr.mxu0 0.0
    %686 = vmatpush1.xpose.msra.mxu0 0.0
    %687 = vmatprep.subr.mxu0 0.0
    %688 = vmatpush1.xpose.msra.mxu0 0.0
    %689 = vmatprep.subr.mxu0 0.0
    %690 = vmatpush1.xpose.msra.mxu0 0.0
    %691 = vmatprep.subr.mxu0 0.0
    %692 = vmatpush1.xpose.msra.mxu0 0.0
    %693 = vmatprep.subr.mxu0 0.0
    %694 = vmatpush1.xpose.msra.mxu0 0.0
    %695 = vmatprep.subr.mxu0 0.0
    %696 = vmatpush1.xpose.msra.mxu0 0.0
    %697 = vmatprep.subr.mxu0 0.0
    %698 = vmatpush1.xpose.msra.mxu0 0.0
    %699 = vmatprep.subr.mxu0 0.0
    %700 = vmatpush1.xpose.msra.mxu0 0.0
    %701 = vmatprep.subr.mxu0 0.0
    %702 = vmatpush1.xpose.msra.mxu0 0.0
    %703 = vmatprep.subr.mxu0 0.0
    %704 = vmatpush1.xpose.msra.mxu0 0.0
    %705 = vmatprep.subr.mxu0 0.0
    %706 = vmatpush1.xpose.msra.mxu0 0.0
    %707 = vmatprep.subr.mxu0 0.0
    %708 = vmatpush1.xpose.msra.mxu0 0.0
    %709 = vmatprep.subr.mxu0 0.0
    %710 = vmatpush1.xpose.msra.mxu0 0.0
    %711 = vmatprep.subr.mxu0 0.0
    %712 = vmatpush1.xpose.msra.mxu0 0.0
    %713 = vmatprep.subr.mxu0 0.0
    %714 = vmatpush1.xpose.msra.mxu0 0.0
    %715 = vmatprep.subr.mxu0 0.0
    %716 = vmatpush1.xpose.msra.mxu0 0.0
    %717 = vmatprep.subr.mxu0 0.0
    %718 = vmatpush1.xpose.msra.mxu0 0.0
    %719 = vmatprep.subr.mxu0 0.0
    %720 = vmatpush1.xpose.msra.mxu0 0.0
    %721 = vmatprep.subr.mxu0 0.0
    %722 = vmatpush1.xpose.msra.mxu0 0.0
    %723 = vmatprep.subr.mxu0 0.0
    %724 = vmatpush1.xpose.msra.mxu0 0.0
    %725 = vmatprep.subr.mxu0 0.0
    %726 = vmatpush1.xpose.msra.mxu0 0.0
    %727 = vmatprep.subr.mxu0 0.0
    %728 = vmatpush1.xpose.msra.mxu0 0.0
    %729 = vmatprep.subr.mxu0 0.0
    %730 = vmatpush1.xpose.msra.mxu0 0.0
    %731 = vmatprep.subr.mxu0 0.0
    %732 = vmatpush1.xpose.msra.mxu0 0.0
    %733 = vmatprep.subr.mxu0 0.0
    %734 = vmatpush1.xpose.msra.mxu0 0.0
    %735 = vmatprep.subr.mxu0 0.0
    %736 = vmatpush1.xpose.msra.mxu0 0.0
    %737 = vmatprep.subr.mxu0 0.0
    %738 = vmatpush1.xpose.msra.mxu0 0.0
    %739 = vmatprep.subr.mxu0 0.0
    %740 = vmatpush1.xpose.msra.mxu0 0.0
    %741 = vmatprep.mubr.f32.mxu0 0.0
    %742 = vmatmul.mubr.f32.gmra.mrb[0].mxu0 %v673
    %v743 = vpop.f32.mrb[0].mxu0
    %v744 = vadd.f32 0.0, %v743
    %v745 = vpop.f32.mrb[0].mxu0
    %746 = vdwg.mxu0
    %v747 = vsel %vm177, %v744, -inf
    %748 = vmax.xlane.f32.xlu0 %v747
    %v749 = vpop.xlane.xlu0 %748
    %v750 = vsub.f32 %v744, %v749
    %v751 = vmul.f32 %v750, 1.442695
    %v752 = vpow.pop %v751
    %v753 = vsel %vm177, %v752, 0.0
    %754 = vadd.xlane.f32.xlu0 %v753
    %v755 = vpop.xlane.xlu0 %754
    %v756 = vrcp.pop %v755
    %v757 = vmul.f32 %v752, %v756
    %758 = vrot.lane.b32.xlu0 %v166, 40
    %v759 = vpop.permute.xlu0 %758
    %v762 = vsel %vm177, %v757, 0
    %764 = vmatprep.subr.mxu0 0.0
    %765 = vmatpush1.msra.mxu0 %v759
    %766 = vmatprep.subr.mxu0 0.0
    %767 = vmatpush1.msra.mxu0 0.0
    %768 = vmatprep.subr.mxu0 0.0
    %769 = vmatpush1.msra.mxu0 0.0
    %770 = vmatprep.subr.mxu0 0.0
    %771 = vmatpush1.msra.mxu0 0.0
    %772 = vmatprep.subr.mxu0 0.0
    %773 = vmatpush1.msra.mxu0 0.0
    %774 = vmatprep.subr.mxu0 0.0
    %775 = vmatpush1.msra.mxu0 0.0
    %776 = vmatprep.subr.mxu0 0.0
    %777 = vmatpush1.msra.mxu0 0.0
    %778 = vmatprep.subr.mxu0 0.0
    %779 = vmatpush1.msra.mxu0 0.0
    %780 = vmatprep.subr.mxu0 0.0
    %781 = vmatpush1.msra.mxu0 0.0
    %782 = vmatprep.subr.mxu0 0.0
    %783 = vmatpush1.msra.mxu0 0.0
    %784 = vmatprep.subr.mxu0 0.0
    %785 = vmatpush1.msra.mxu0 0.0
    %786 = vmatprep.subr.mxu0 0.0
    %787 = vmatpush1.msra.mxu0 0.0
    %788 = vmatprep.subr.mxu0 0.0
    %789 = vmatpush1.msra.mxu0 0.0
    %790 = vmatprep.subr.mxu0 0.0
    %791 = vmatpush1.msra.mxu0 0.0
    %792 = vmatprep.subr.mxu0 0.0
    %793 = vmatpush1.msra.mxu0 0.0
    %794 = vmatprep.subr.mxu0 0.0
    %795 = vmatpush1.msra.mxu0 0.0
    %796 = vmatprep.subr.mxu0 0.0
    %797 = vmatpush1.msra.mxu0 0.0
    %798 = vmatprep.subr.mxu0 0.0
    %799 = vmatpush1.msra.mxu0 0.0
    %800 = vmatprep.subr.mxu0 0.0
    %801 = vmatpush1.msra.mxu0 0.0
    %802 = vmatprep.subr.mxu0 0.0
    %803 = vmatpush1.msra.mxu0 0.0
    %804 = vmatprep.subr.mxu0 0.0
    %805 = vmatpush1.msra.mxu0 0.0
    %806 = vmatprep.subr.mxu0 0.0
    %807 = vmatpush1.msra.mxu0 0.0
    %808 = vmatprep.subr.mxu0 0.0
    %809 = vmatpush1.msra.mxu0 0.0
    %810 = vmatprep.subr.mxu0 0.0
    %811 = vmatpush1.msra.mxu0 0.0
    %812 = vmatprep.subr.mxu0 0.0
    %813 = vmatpush1.msra.mxu0 0.0
    %814 = vmatprep.subr.mxu0 0.0
    %815 = vmatpush1.msra.mxu0 0.0
    %816 = vmatprep.subr.mxu0 0.0
    %817 = vmatpush1.msra.mxu0 0.0
    %818 = vmatprep.subr.mxu0 0.0
    %819 = vmatpush1.msra.mxu0 0.0
    %820 = vmatprep.subr.mxu0 0.0
    %821 = vmatpush1.msra.mxu0 0.0
    %822 = vmatprep.subr.mxu0 0.0
    %823 = vmatpush1.msra.mxu0 0.0
    %824 = vmatprep.subr.mxu0 0.0
    %825 = vmatpush1.msra.mxu0 0.0
    %826 = vmatprep.subr.mxu0 0.0
    %827 = vmatpush1.msra.mxu0 0.0
    %828 = vmatprep.mubr.f32.mxu0 0.0
    %829 = vmatmul.mubr.f32.gmra.mrb[0].mxu0 %v762
    %v830 = vpop.f32.mrb[0].mxu0
    %v831 = vadd.f32 0.0, %v830
    %v832 = vpop.f32.mrb[0].mxu0
    %833 = vdwg.mxu0
    %835 = vrot.lane.b32.xlu0 %v501, 8
    %v836 = vpop.permute.xlu0 %835
    %839 = vrot.lane.b32.xlu0 %v666, 16
    %v840 = vpop.permute.xlu0 %839
    %843 = vrot.lane.b32.xlu0 %v831, 24
    %v844 = vpop.permute.xlu0 %843
    %v846 = vsel %vm177, %v336, %v836
    %vm847 = vcmask 130048
    %v848 = vsel %vm847, %v846, %v840
    %vm849 = vcmask 195584
    %v850 = vsel %vm849, %v848, %v844
    %852 = vrot.lane.b32.xlu0 %v171, 96
    %v853 = vpop.permute.xlu0 %852
    %v854 = vsel %vm177, %v171, 0
    %v856 = vsel %vm177, %v853, 0
    %858 = vmatprep.subr.mxu0 0.0
    %859 = vmatpush1.xpose.msra.mxu0 %v856
    %860 = vmatprep.subr.mxu0 0.0
    %861 = vmatpush1.xpose.msra.mxu0 0.0
    %862 = vmatprep.subr.mxu0 0.0
    %863 = vmatpush1.xpose.msra.mxu0 0.0
    %864 = vmatprep.subr.mxu0 0.0
    %865 = vmatpush1.xpose.msra.mxu0 0.0
    %866 = vmatprep.subr.mxu0 0.0
    %867 = vmatpush1.xpose.msra.mxu0 0.0
    %868 = vmatprep.subr.mxu0 0.0
    %869 = vmatpush1.xpose.msra.mxu0 0.0
    %870 = vmatprep.subr.mxu0 0.0
    %871 = vmatpush1.xpose.msra.mxu0 0.0
    %872 = vmatprep.subr.mxu0 0.0
    %873 = vmatpush1.xpose.msra.mxu0 0.0
    %874 = vmatprep.subr.mxu0 0.0
    %875 = vmatpush1.xpose.msra.mxu0 0.0
    %876 = vmatprep.subr.mxu0 0.0
    %877 = vmatpush1.xpose.msra.mxu0 0.0
    %878 = vmatprep.subr.mxu0 0.0
    %879 = vmatpush1.xpose.msra.mxu0 0.0
    %880 = vmatprep.subr.mxu0 0.0
    %881 = vmatpush1.xpose.msra.mxu0 0.0
    %882 = vmatprep.subr.mxu0 0.0
    %883 = vmatpush1.xpose.msra.mxu0 0.0
    %884 = vmatprep.subr.mxu0 0.0
    %885 = vmatpush1.xpose.msra.mxu0 0.0
    %886 = vmatprep.subr.mxu0 0.0
    %887 = vmatpush1.xpose.msra.mxu0 0.0
    %888 = vmatprep.subr.mxu0 0.0
    %889 = vmatpush1.xpose.msra.mxu0 0.0
    %890 = vmatprep.subr.mxu0 0.0
    %891 = vmatpush1.xpose.msra.mxu0 0.0
    %892 = vmatprep.subr.mxu0 0.0
    %893 = vmatpush1.xpose.msra.mxu0 0.0
    %894 = vmatprep.subr.mxu0 0.0
    %895 = vmatpush1.xpose.msra.mxu0 0.0
    %896 = vmatprep.subr.mxu0 0.0
    %897 = vmatpush1.xpose.msra.mxu0 0.0
    %898 = vmatprep.subr.mxu0 0.0
    %899 = vmatpush1.xpose.msra.mxu0 0.0
    %900 = vmatprep.subr.mxu0 0.0
    %901 = vmatpush1.xpose.msra.mxu0 0.0
    %902 = vmatprep.subr.mxu0 0.0
    %903 = vmatpush1.xpose.msra.mxu0 0.0
    %904 = vmatprep.subr.mxu0 0.0
    %905 = vmatpush1.xpose.msra.mxu0 0.0
    %906 = vmatprep.subr.mxu0 0.0
    %907 = vmatpush1.xpose.msra.mxu0 0.0
    %908 = vmatprep.subr.mxu0 0.0
    %909 = vmatpush1.xpose.msra.mxu0 0.0
    %910 = vmatprep.subr.mxu0 0.0
    %911 = vmatpush1.xpose.msra.mxu0 0.0
    %912 = vmatprep.subr.mxu0 0.0
    %913 = vmatpush1.xpose.msra.mxu0 0.0
    %914 = vmatprep.subr.mxu0 0.0
    %915 = vmatpush1.xpose.msra.mxu0 0.0
    %916 = vmatprep.subr.mxu0 0.0
    %917 = vmatpush1.xpose.msra.mxu0 0.0
    %918 = vmatprep.subr.mxu0 0.0
    %919 = vmatpush1.xpose.msra.mxu0 0.0
    %920 = vmatprep.subr.mxu0 0.0
    %921 = vmatpush1.xpose.msra.mxu0 0.0
    %922 = vmatprep.mubr.f32.mxu0 0.0
    %923 = vmatmul.mubr.f32.gmra.mrb[0].mxu0 %v854
    %v924 = vpop.f32.mrb[0].mxu0
    %v925 = vadd.f32 0.0, %v924
    %v926 = vpop.f32.mrb[0].mxu0
    %927 = vdwg.mxu0
    %v928 = vsel %vm177, %v925, -inf
    %929 = vmax.xlane.f32.xlu0 %v928
    %v930 = vpop.xlane.xlu0 %929
    %v931 = vsub.f32 %v925, %v930
    %v932 = vmul.f32 %v931, 1.442695
    %v933 = vpow.pop %v932
    %v934 = vsel %vm177, %v933, 0.0
    %935 = vadd.xlane.f32.xlu0 %v934
    %v936 = vpop.xlane.xlu0 %935
    %v937 = vrcp.pop %v936
    %v938 = vmul.f32 %v933, %v937
    %939 = vrot.lane.b32.xlu0 %v171, 64
    %v940 = vpop.permute.xlu0 %939
    %v943 = vsel %vm177, %v938, 0
    %945 = vmatprep.subr.mxu0 0.0
    %946 = vmatpush1.msra.mxu0 %v940
    %947 = vmatprep.subr.mxu0 0.0
    %948 = vmatpush1.msra.mxu0 0.0
    %949 = vmatprep.subr.mxu0 0.0
    %950 = vmatpush1.msra.mxu0 0.0
    %951 = vmatprep.subr.mxu0 0.0
    %952 = vmatpush1.msra.mxu0 0.0
    %953 = vmatprep.subr.mxu0 0.0
    %954 = vmatpush1.msra.mxu0 0.0
    %955 = vmatprep.subr.mxu0 0.0
    %956 = vmatpush1.msra.mxu0 0.0
    %957 = vmatprep.subr.mxu0 0.0
    %958 = vmatpush1.msra.mxu0 0.0
    %959 = vmatprep.subr.mxu0 0.0
    %960 = vmatpush1.msra.mxu0 0.0
    %961 = vmatprep.subr.mxu0 0.0
    %962 = vmatpush1.msra.mxu0 0.0
    %963 = vmatprep.subr.mxu0 0.0
    %964 = vmatpush1.msra.mxu0 0.0
    %965 = vmatprep.subr.mxu0 0.0
    %966 = vmatpush1.msra.mxu0 0.0
    %967 = vmatprep.subr.mxu0 0.0
    %968 = vmatpush1.msra.mxu0 0.0
    %969 = vmatprep.subr.mxu0 0.0
    %970 = vmatpush1.msra.mxu0 0.0
    %971 = vmatprep.subr.mxu0 0.0
    %972 = vmatpush1.msra.mxu0 0.0
    %973 = vmatprep.subr.mxu0 0.0
    %974 = vmatpush1.msra.mxu0 0.0
    %975 = vmatprep.subr.mxu0 0.0
    %976 = vmatpush1.msra.mxu0 0.0
    %977 = vmatprep.subr.mxu0 0.0
    %978 = vmatpush1.msra.mxu0 0.0
    %979 = vmatprep.subr.mxu0 0.0
    %980 = vmatpush1.msra.mxu0 0.0
    %981 = vmatprep.subr.mxu0 0.0
    %982 = vmatpush1.msra.mxu0 0.0
    %983 = vmatprep.subr.mxu0 0.0
    %984 = vmatpush1.msra.mxu0 0.0
    %985 = vmatprep.subr.mxu0 0.0
    %986 = vmatpush1.msra.mxu0 0.0
    %987 = vmatprep.subr.mxu0 0.0
    %988 = vmatpush1.msra.mxu0 0.0
    %989 = vmatprep.subr.mxu0 0.0
    %990 = vmatpush1.msra.mxu0 0.0
    %991 = vmatprep.subr.mxu0 0.0
    %992 = vmatpush1.msra.mxu0 0.0
    %993 = vmatprep.subr.mxu0 0.0
    %994 = vmatpush1.msra.mxu0 0.0
    %995 = vmatprep.subr.mxu0 0.0
    %996 = vmatpush1.msra.mxu0 0.0
    %997 = vmatprep.subr.mxu0 0.0
    %998 = vmatpush1.msra.mxu0 0.0
    %999 = vmatprep.subr.mxu0 0.0
    %1000 = vmatpush1.msra.mxu0 0.0
    %1001 = vmatprep.subr.mxu0 0.0
    %1002 = vmatpush1.msra.mxu0 0.0
    %1003 = vmatprep.subr.mxu0 0.0
    %1004 = vmatpush1.msra.mxu0 0.0
    %1005 = vmatprep.subr.mxu0 0.0
    %1006 = vmatpush1.msra.mxu0 0.0
    %1007 = vmatprep.subr.mxu0 0.0
    %1008 = vmatpush1.msra.mxu0 0.0
    %1009 = vmatprep.mubr.f32.mxu0 0.0
    %1010 = vmatmul.mubr.f32.gmra.mrb[0].mxu0 %v943
    %v1011 = vpop.f32.mrb[0].mxu0
    %v1012 = vadd.f32 0.0, %v1011
    %v1013 = vpop.f32.mrb[0].mxu0
    %1014 = vdwg.mxu0
    %1015 = vrot.lane.b32.xlu0 %v171, 120
    %v1016 = vpop.permute.xlu0 %1015
    %1017 = vrot.lane.b32.xlu0 %v171, 88
    %v1018 = vpop.permute.xlu0 %1017
    %v1019 = vsel %vm177, %v1016, 0
    %v1021 = vsel %vm177, %v1018, 0
    %1023 = vmatprep.subr.mxu0 0.0
    %1024 = vmatpush1.xpose.msra.mxu0 %v1021
    %1025 = vmatprep.subr.mxu0 0.0
    %1026 = vmatpush1.xpose.msra.mxu0 0.0
    %1027 = vmatprep.subr.mxu0 0.0
    %1028 = vmatpush1.xpose.msra.mxu0 0.0
    %1029 = vmatprep.subr.mxu0 0.0
    %1030 = vmatpush1.xpose.msra.mxu0 0.0
    %1031 = vmatprep.subr.mxu0 0.0
    %1032 = vmatpush1.xpose.msra.mxu0 0.0
    %1033 = vmatprep.subr.mxu0 0.0
    %1034 = vmatpush1.xpose.msra.mxu0 0.0
    %1035 = vmatprep.subr.mxu0 0.0
    %1036 = vmatpush1.xpose.msra.mxu0 0.0
    %1037 = vmatprep.subr.mxu0 0.0
    %1038 = vmatpush1.xpose.msra.mxu0 0.0
    %1039 = vmatprep.subr.mxu0 0.0
    %1040 = vmatpush1.xpose.msra.mxu0 0.0
    %1041 = vmatprep.subr.mxu0 0.0
    %1042 = vmatpush1.xpose.msra.mxu0 0.0
    %1043 = vmatprep.subr.mxu0 0.0
    %1044 = vmatpush1.xpose.msra.mxu0 0.0
    %1045 = vmatprep.subr.mxu0 0.0
    %1046 = vmatpush1.xpose.msra.mxu0 0.0
    %1047 = vmatprep.subr.mxu0 0.0
    %1048 = vmatpush1.xpose.msra.mxu0 0.0
    %1049 = vmatprep.subr.mxu0 0.0
    %1050 = vmatpush1.xpose.msra.mxu0 0.0
    %1051 = vmatprep.subr.mxu0 0.0
    %1052 = vmatpush1.xpose.msra.mxu0 0.0
    %1053 = vmatprep.subr.mxu0 0.0
    %1054 = vmatpush1.xpose.msra.mxu0 0.0
    %1055 = vmatprep.subr.mxu0 0.0
    %1056 = vmatpush1.xpose.msra.mxu0 0.0
    %1057 = vmatprep.subr.mxu0 0.0
    %1058 = vmatpush1.xpose.msra.mxu0 0.0
    %1059 = vmatprep.subr.mxu0 0.0
    %1060 = vmatpush1.xpose.msra.mxu0 0.0
    %1061 = vmatprep.subr.mxu0 0.0
    %1062 = vmatpush1.xpose.msra.mxu0 0.0
    %1063 = vmatprep.subr.mxu0 0.0
    %1064 = vmatpush1.xpose.msra.mxu0 0.0
    %1065 = vmatprep.subr.mxu0 0.0
    %1066 = vmatpush1.xpose.msra.mxu0 0.0
    %1067 = vmatprep.subr.mxu0 0.0
    %1068 = vmatpush1.xpose.msra.mxu0 0.0
    %1069 = vmatprep.subr.mxu0 0.0
    %1070 = vmatpush1.xpose.msra.mxu0 0.0
    %1071 = vmatprep.subr.mxu0 0.0
    %1072 = vmatpush1.xpose.msra.mxu0 0.0
    %1073 = vmatprep.subr.mxu0 0.0
    %1074 = vmatpush1.xpose.msra.mxu0 0.0
    %1075 = vmatprep.subr.mxu0 0.0
    %1076 = vmatpush1.xpose.msra.mxu0 0.0
    %1077 = vmatprep.subr.mxu0 0.0
    %1078 = vmatpush1.xpose.msra.mxu0 0.0
    %1079 = vmatprep.subr.mxu0 0.0
    %1080 = vmatpush1.xpose.msra.mxu0 0.0
    %1081 = vmatprep.subr.mxu0 0.0
    %1082 = vmatpush1.xpose.msra.mxu0 0.0
    %1083 = vmatprep.subr.mxu0 0.0
    %1084 = vmatpush1.xpose.msra.mxu0 0.0
    %1085 = vmatprep.subr.mxu0 0.0
    %1086 = vmatpush1.xpose.msra.mxu0 0.0
    %1087 = vmatprep.mubr.f32.mxu0 0.0
    %1088 = vmatmul.mubr.f32.gmra.mrb[0].mxu0 %v1019
    %v1089 = vpop.f32.mrb[0].mxu0
    %v1090 = vadd.f32 0.0, %v1089
    %v1091 = vpop.f32.mrb[0].mxu0
    %1092 = vdwg.mxu0
    %v1093 = vsel %vm177, %v1090, -inf
    %1094 = vmax.xlane.f32.xlu0 %v1093
    %v1095 = vpop.xlane.xlu0 %1094
    %v1096 = vsub.f32 %v1090, %v1095
    %v1097 = vmul.f32 %v1096, 1.442695
    %v1098 = vpow.pop %v1097
    %v1099 = vsel %vm177, %v1098, 0.0
    %1100 = vadd.xlane.f32.xlu0 %v1099
    %v1101 = vpop.xlane.xlu0 %1100
    %v1102 = vrcp.pop %v1101
    %v1103 = vmul.f32 %v1098, %v1102
    %1104 = vrot.lane.b32.xlu0 %v171, 56
    %v1105 = vpop.permute.xlu0 %1104
    %v1108 = vsel %vm177, %v1103, 0
    %1110 = vmatprep.subr.mxu0 0.0
    %1111 = vmatpush1.msra.mxu0 %v1105
    %1112 = vmatprep.subr.mxu0 0.0
    %1113 = vmatpush1.msra.mxu0 0.0
    %1114 = vmatprep.subr.mxu0 0.0
    %1115 = vmatpush1.msra.mxu0 0.0
    %1116 = vmatprep.subr.mxu0 0.0
    %1117 = vmatpush1.msra.mxu0 0.0
    %1118 = vmatprep.subr.mxu0 0.0
    %1119 = vmatpush1.msra.mxu0 0.0
    %1120 = vmatprep.subr.mxu0 0.0
    %1121 = vmatpush1.msra.mxu0 0.0
    %1122 = vmatprep.subr.mxu0 0.0
    %1123 = vmatpush1.msra.mxu0 0.0
    %1124 = vmatprep.subr.mxu0 0.0
    %1125 = vmatpush1.msra.mxu0 0.0
    %1126 = vmatprep.subr.mxu0 0.0
    %1127 = vmatpush1.msra.mxu0 0.0
    %1128 = vmatprep.subr.mxu0 0.0
    %1129 = vmatpush1.msra.mxu0 0.0
    %1130 = vmatprep.subr.mxu0 0.0
    %1131 = vmatpush1.msra.mxu0 0.0
    %1132 = vmatprep.subr.mxu0 0.0
    %1133 = vmatpush1.msra.mxu0 0.0
    %1134 = vmatprep.subr.mxu0 0.0
    %1135 = vmatpush1.msra.mxu0 0.0
    %1136 = vmatprep.subr.mxu0 0.0
    %1137 = vmatpush1.msra.mxu0 0.0
    %1138 = vmatprep.subr.mxu0 0.0
    %1139 = vmatpush1.msra.mxu0 0.0
    %1140 = vmatprep.subr.mxu0 0.0
    %1141 = vmatpush1.msra.mxu0 0.0
    %1142 = vmatprep.subr.mxu0 0.0
    %1143 = vmatpush1.msra.mxu0 0.0
    %1144 = vmatprep.subr.mxu0 0.0
    %1145 = vmatpush1.msra.mxu0 0.0
    %1146 = vmatprep.subr.mxu0 0.0
    %1147 = vmatpush1.msra.mxu0 0.0
    %1148 = vmatprep.subr.mxu0 0.0
    %1149 = vmatpush1.msra.mxu0 0.0
    %1150 = vmatprep.subr.mxu0 0.0
    %1151 = vmatpush1.msra.mxu0 0.0
    %1152 = vmatprep.subr.mxu0 0.0
    %1153 = vmatpush1.msra.mxu0 0.0
    %1154 = vmatprep.subr.mxu0 0.0
    %1155 = vmatpush1.msra.mxu0 0.0
    %1156 = vmatprep.subr.mxu0 0.0
    %1157 = vmatpush1.msra.mxu0 0.0
    %1158 = vmatprep.subr.mxu0 0.0
    %1159 = vmatpush1.msra.mxu0 0.0
    %1160 = vmatprep.subr.mxu0 0.0
    %1161 = vmatpush1.msra.mxu0 0.0
    %1162 = vmatprep.subr.mxu0 0.0
    %1163 = vmatpush1.msra.mxu0 0.0
    %1164 = vmatprep.subr.mxu0 0.0
    %1165 = vmatpush1.msra.mxu0 0.0
    %1166 = vmatprep.subr.mxu0 0.0
    %1167 = vmatpush1.msra.mxu0 0.0
    %1168 = vmatprep.subr.mxu0 0.0
    %1169 = vmatpush1.msra.mxu0 0.0
    %1170 = vmatprep.subr.mxu0 0.0
    %1171 = vmatpush1.msra.mxu0 0.0
    %1172 = vmatprep.subr.mxu0 0.0
    %1173 = vmatpush1.msra.mxu0 0.0
    %1174 = vmatprep.mubr.f32.mxu0 0.0
    %1175 = vmatmul.mubr.f32.gmra.mrb[0].mxu0 %v1108
    %v1176 = vpop.f32.mrb[0].mxu0
    %v1177 = vadd.f32 0.0, %v1176
    %v1178 = vpop.f32.mrb[0].mxu0
    %1179 = vdwg.mxu0
    %1180 = vrot.lane.b32.xlu0 %v171, 112
    %v1181 = vpop.permute.xlu0 %1180
    %1182 = vrot.lane.b32.xlu0 %v171, 80
    %v1183 = vpop.permute.xlu0 %1182
    %v1184 = vsel %vm177, %v1181, 0
    %v1186 = vsel %vm177, %v1183, 0
    %1188 = vmatprep.subr.mxu0 0.0
    %1189 = vmatpush1.xpose.msra.mxu0 %v1186
    %1190 = vmatprep.subr.mxu0 0.0
    %1191 = vmatpush1.xpose.msra.mxu0 0.0
    %1192 = vmatprep.subr.mxu0 0.0
    %1193 = vmatpush1.xpose.msra.mxu0 0.0
    %1194 = vmatprep.subr.mxu0 0.0
    %1195 = vmatpush1.xpose.msra.mxu0 0.0
    %1196 = vmatprep.subr.mxu0 0.0
    %1197 = vmatpush1.xpose.msra.mxu0 0.0
    %1198 = vmatprep.subr.mxu0 0.0
    %1199 = vmatpush1.xpose.msra.mxu0 0.0
    %1200 = vmatprep.subr.mxu0 0.0
    %1201 = vmatpush1.xpose.msra.mxu0 0.0
    %1202 = vmatprep.subr.mxu0 0.0
    %1203 = vmatpush1.xpose.msra.mxu0 0.0
    %1204 = vmatprep.subr.mxu0 0.0
    %1205 = vmatpush1.xpose.msra.mxu0 0.0
    %1206 = vmatprep.subr.mxu0 0.0
    %1207 = vmatpush1.xpose.msra.mxu0 0.0
    %1208 = vmatprep.subr.mxu0 0.0
    %1209 = vmatpush1.xpose.msra.mxu0 0.0
    %1210 = vmatprep.subr.mxu0 0.0
    %1211 = vmatpush1.xpose.msra.mxu0 0.0
    %1212 = vmatprep.subr.mxu0 0.0
    %1213 = vmatpush1.xpose.msra.mxu0 0.0
    %1214 = vmatprep.subr.mxu0 0.0
    %1215 = vmatpush1.xpose.msra.mxu0 0.0
    %1216 = vmatprep.subr.mxu0 0.0
    %1217 = vmatpush1.xpose.msra.mxu0 0.0
    %1218 = vmatprep.subr.mxu0 0.0
    %1219 = vmatpush1.xpose.msra.mxu0 0.0
    %1220 = vmatprep.subr.mxu0 0.0
    %1221 = vmatpush1.xpose.msra.mxu0 0.0
    %1222 = vmatprep.subr.mxu0 0.0
    %1223 = vmatpush1.xpose.msra.mxu0 0.0
    %1224 = vmatprep.subr.mxu0 0.0
    %1225 = vmatpush1.xpose.msra.mxu0 0.0
    %1226 = vmatprep.subr.mxu0 0.0
    %1227 = vmatpush1.xpose.msra.mxu0 0.0
    %1228 = vmatprep.subr.mxu0 0.0
    %1229 = vmatpush1.xpose.msra.mxu0 0.0
    %1230 = vmatprep.subr.mxu0 0.0
    %1231 = vmatpush1.xpose.msra.mxu0 0.0
    %1232 = vmatprep.subr.mxu0 0.0
    %1233 = vmatpush1.xpose.msra.mxu0 0.0
    %1234 = vmatprep.subr.mxu0 0.0
    %1235 = vmatpush1.xpose.msra.mxu0 0.0
    %1236 = vmatprep.subr.mxu0 0.0
    %1237 = vmatpush1.xpose.msra.mxu0 0.0
    %1238 = vmatprep.subr.mxu0 0.0
    %1239 = vmatpush1.xpose.msra.mxu0 0.0
    %1240 = vmatprep.subr.mxu0 0.0
    %1241 = vmatpush1.xpose.msra.mxu0 0.0
    %1242 = vmatprep.subr.mxu0 0.0
    %1243 = vmatpush1.xpose.msra.mxu0 0.0
    %1244 = vmatprep.subr.mxu0 0.0
    %1245 = vmatpush1.xpose.msra.mxu0 0.0
    %1246 = vmatprep.subr.mxu0 0.0
    %1247 = vmatpush1.xpose.msra.mxu0 0.0
    %1248 = vmatprep.subr.mxu0 0.0
    %1249 = vmatpush1.xpose.msra.mxu0 0.0
    %1250 = vmatprep.subr.mxu0 0.0
    %1251 = vmatpush1.xpose.msra.mxu0 0.0
    %1252 = vmatprep.mubr.f32.mxu0 0.0
    %1253 = vmatmul.mubr.f32.gmra.mrb[0].mxu0 %v1184
    %v1254 = vpop.f32.mrb[0].mxu0
    %v1255 = vadd.f32 0.0, %v1254
    %v1256 = vpop.f32.mrb[0].mxu0
    %1257 = vdwg.mxu0
    %v1258 = vsel %vm177, %v1255, -inf
    %1259 = vmax.xlane.f32.xlu0 %v1258
    %v1260 = vpop.xlane.xlu0 %1259
    %v1261 = vsub.f32 %v1255, %v1260
    %v1262 = vmul.f32 %v1261, 1.442695
    %v1263 = vpow.pop %v1262
    %v1264 = vsel %vm177, %v1263, 0.0
    %1265 = vadd.xlane.f32.xlu0 %v1264
    %v1266 = vpop.xlane.xlu0 %1265
    %v1267 = vrcp.pop %v1266
    %v1268 = vmul.f32 %v1263, %v1267
    %1269 = vrot.lane.b32.xlu0 %v171, 48
    %v1270 = vpop.permute.xlu0 %1269
    %v1273 = vsel %vm177, %v1268, 0
    %1275 = vmatprep.subr.mxu0 0.0
    %1276 = vmatpush1.msra.mxu0 %v1270
    %1277 = vmatprep.subr.mxu0 0.0
    %1278 = vmatpush1.msra.mxu0 0.0
    %1279 = vmatprep.subr.mxu0 0.0
    %1280 = vmatpush1.msra.mxu0 0.0
    %1281 = vmatprep.subr.mxu0 0.0
    %1282 = vmatpush1.msra.mxu0 0.0
    %1283 = vmatprep.subr.mxu0 0.0
    %1284 = vmatpush1.msra.mxu0 0.0
    %1285 = vmatprep.subr.mxu0 0.0
    %1286 = vmatpush1.msra.mxu0 0.0
    %1287 = vmatprep.subr.mxu0 0.0
    %1288 = vmatpush1.msra.mxu0 0.0
    %1289 = vmatprep.subr.mxu0 0.0
    %1290 = vmatpush1.msra.mxu0 0.0
    %1291 = vmatprep.subr.mxu0 0.0
    %1292 = vmatpush1.msra.mxu0 0.0
    %1293 = vmatprep.subr.mxu0 0.0
    %1294 = vmatpush1.msra.mxu0 0.0
    %1295 = vmatprep.subr.mxu0 0.0
    %1296 = vmatpush1.msra.mxu0 0.0
    %1297 = vmatprep.subr.mxu0 0.0
    %1298 = vmatpush1.msra.mxu0 0.0
    %1299 = vmatprep.subr.mxu0 0.0
    %1300 = vmatpush1.msra.mxu0 0.0
    %1301 = vmatprep.subr.mxu0 0.0
    %1302 = vmatpush1.msra.mxu0 0.0
    %1303 = vmatprep.subr.mxu0 0.0
    %1304 = vmatpush1.msra.mxu0 0.0
    %1305 = vmatprep.subr.mxu0 0.0
    %1306 = vmatpush1.msra.mxu0 0.0
    %1307 = vmatprep.subr.mxu0 0.0
    %1308 = vmatpush1.msra.mxu0 0.0
    %1309 = vmatprep.subr.mxu0 0.0
    %1310 = vmatpush1.msra.mxu0 0.0
    %1311 = vmatprep.subr.mxu0 0.0
    %1312 = vmatpush1.msra.mxu0 0.0
    %1313 = vmatprep.subr.mxu0 0.0
    %1314 = vmatpush1.msra.mxu0 0.0
    %1315 = vmatprep.subr.mxu0 0.0
    %1316 = vmatpush1.msra.mxu0 0.0
    %1317 = vmatprep.subr.mxu0 0.0
    %1318 = vmatpush1.msra.mxu0 0.0
    %1319 = vmatprep.subr.mxu0 0.0
    %1320 = vmatpush1.msra.mxu0 0.0
    %1321 = vmatprep.subr.mxu0 0.0
    %1322 = vmatpush1.msra.mxu0 0.0
    %1323 = vmatprep.subr.mxu0 0.0
    %1324 = vmatpush1.msra.mxu0 0.0
    %1325 = vmatprep.subr.mxu0 0.0
    %1326 = vmatpush1.msra.mxu0 0.0
    %1327 = vmatprep.subr.mxu0 0.0
    %1328 = vmatpush1.msra.mxu0 0.0
    %1329 = vmatprep.subr.mxu0 0.0
    %1330 = vmatpush1.msra.mxu0 0.0
    %1331 = vmatprep.subr.mxu0 0.0
    %1332 = vmatpush1.msra.mxu0 0.0
    %1333 = vmatprep.subr.mxu0 0.0
    %1334 = vmatpush1.msra.mxu0 0.0
    %1335 = vmatprep.subr.mxu0 0.0
    %1336 = vmatpush1.msra.mxu0 0.0
    %1337 = vmatprep.subr.mxu0 0.0
    %1338 = vmatpush1.msra.mxu0 0.0
    %1339 = vmatprep.mubr.f32.mxu0 0.0
    %1340 = vmatmul.mubr.f32.gmra.mrb[0].mxu0 %v1273
    %v1341 = vpop.f32.mrb[0].mxu0
    %v1342 = vadd.f32 0.0, %v1341
    %v1343 = vpop.f32.mrb[0].mxu0
    %1344 = vdwg.mxu0
    %1345 = vrot.lane.b32.xlu0 %v171, 104
    %v1346 = vpop.permute.xlu0 %1345
    %1347 = vrot.lane.b32.xlu0 %v171, 72
    %v1348 = vpop.permute.xlu0 %1347
    %v1349 = vsel %vm177, %v1346, 0
    %v1351 = vsel %vm177, %v1348, 0
    %1353 = vmatprep.subr.mxu0 0.0
    %1354 = vmatpush1.xpose.msra.mxu0 %v1351
    %1355 = vmatprep.subr.mxu0 0.0
    %1356 = vmatpush1.xpose.msra.mxu0 0.0
    %1357 = vmatprep.subr.mxu0 0.0
    %1358 = vmatpush1.xpose.msra.mxu0 0.0
    %1359 = vmatprep.subr.mxu0 0.0
    %1360 = vmatpush1.xpose.msra.mxu0 0.0
    %1361 = vmatprep.subr.mxu0 0.0
    %1362 = vmatpush1.xpose.msra.mxu0 0.0
    %1363 = vmatprep.subr.mxu0 0.0
    %1364 = vmatpush1.xpose.msra.mxu0 0.0
    %1365 = vmatprep.subr.mxu0 0.0
    %1366 = vmatpush1.xpose.msra.mxu0 0.0
    %1367 = vmatprep.subr.mxu0 0.0
    %1368 = vmatpush1.xpose.msra.mxu0 0.0
    %1369 = vmatprep.subr.mxu0 0.0
    %1370 = vmatpush1.xpose.msra.mxu0 0.0
    %1371 = vmatprep.subr.mxu0 0.0
    %1372 = vmatpush1.xpose.msra.mxu0 0.0
    %1373 = vmatprep.subr.mxu0 0.0
    %1374 = vmatpush1.xpose.msra.mxu0 0.0
    %1375 = vmatprep.subr.mxu0 0.0
    %1376 = vmatpush1.xpose.msra.mxu0 0.0
    %1377 = vmatprep.subr.mxu0 0.0
    %1378 = vmatpush1.xpose.msra.mxu0 0.0
    %1379 = vmatprep.subr.mxu0 0.0
    %1380 = vmatpush1.xpose.msra.mxu0 0.0
    %1381 = vmatprep.subr.mxu0 0.0
    %1382 = vmatpush1.xpose.msra.mxu0 0.0
    %1383 = vmatprep.subr.mxu0 0.0
    %1384 = vmatpush1.xpose.msra.mxu0 0.0
    %1385 = vmatprep.subr.mxu0 0.0
    %1386 = vmatpush1.xpose.msra.mxu0 0.0
    %1387 = vmatprep.subr.mxu0 0.0
    %1388 = vmatpush1.xpose.msra.mxu0 0.0
    %1389 = vmatprep.subr.mxu0 0.0
    %1390 = vmatpush1.xpose.msra.mxu0 0.0
    %1391 = vmatprep.subr.mxu0 0.0
    %1392 = vmatpush1.xpose.msra.mxu0 0.0
    %1393 = vmatprep.subr.mxu0 0.0
    %1394 = vmatpush1.xpose.msra.mxu0 0.0
    %1395 = vmatprep.subr.mxu0 0.0
    %1396 = vmatpush1.xpose.msra.mxu0 0.0
    %1397 = vmatprep.subr.mxu0 0.0
    %1398 = vmatpush1.xpose.msra.mxu0 0.0
    %1399 = vmatprep.subr.mxu0 0.0
    %1400 = vmatpush1.xpose.msra.mxu0 0.0
    %1401 = vmatprep.subr.mxu0 0.0
    %1402 = vmatpush1.xpose.msra.mxu0 0.0
    %1403 = vmatprep.subr.mxu0 0.0
    %1404 = vmatpush1.xpose.msra.mxu0 0.0
    %1405 = vmatprep.subr.mxu0 0.0
    %1406 = vmatpush1.xpose.msra.mxu0 0.0
    %1407 = vmatprep.subr.mxu0 0.0
    %1408 = vmatpush1.xpose.msra.mxu0 0.0
    %1409 = vmatprep.subr.mxu0 0.0
    %1410 = vmatpush1.xpose.msra.mxu0 0.0
    %1411 = vmatprep.subr.mxu0 0.0
    %1412 = vmatpush1.xpose.msra.mxu0 0.0
    %1413 = vmatprep.subr.mxu0 0.0
    %1414 = vmatpush1.xpose.msra.mxu0 0.0
    %1415 = vmatprep.subr.mxu0 0.0
    %1416 = vmatpush1.xpose.msra.mxu0 0.0
    %1417 = vmatprep.mubr.f32.mxu0 0.0
    %1418 = vmatmul.mubr.f32.gmra.mrb[0].mxu0 %v1349
    %v1419 = vpop.f32.mrb[0].mxu0
    %v1420 = vadd.f32 0.0, %v1419
    %v1421 = vpop.f32.mrb[0].mxu0
    %1422 = vdwg.mxu0
    %v1423 = vsel %vm177, %v1420, -inf
    %1424 = vmax.xlane.f32.xlu0 %v1423
    %v1425 = vpop.xlane.xlu0 %1424
    %v1426 = vsub.f32 %v1420, %v1425
    %v1427 = vmul.f32 %v1426, 1.442695
    %v1428 = vpow.pop %v1427
    %v1429 = vsel %vm177, %v1428, 0.0
    %1430 = vadd.xlane.f32.xlu0 %v1429
    %v1431 = vpop.xlane.xlu0 %1430
    %v1432 = vrcp.pop %v1431
    %v1433 = vmul.f32 %v1428, %v1432
    %1434 = vrot.lane.b32.xlu0 %v171, 40
    %v1435 = vpop.permute.xlu0 %1434
    %v1438 = vsel %vm177, %v1433, 0
    %1440 = vmatprep.subr.mxu0 0.0
    %1441 = vmatpush1.msra.mxu0 %v1435
    %1442 = vmatprep.subr.mxu0 0.0
    %1443 = vmatpush1.msra.mxu0 0.0
    %1444 = vmatprep.subr.mxu0 0.0
    %1445 = vmatpush1.msra.mxu0 0.0
    %1446 = vmatprep.subr.mxu0 0.0
    %1447 = vmatpush1.msra.mxu0 0.0
    %1448 = vmatprep.subr.mxu0 0.0
    %1449 = vmatpush1.msra.mxu0 0.0
    %1450 = vmatprep.subr.mxu0 0.0
    %1451 = vmatpush1.msra.mxu0 0.0
    %1452 = vmatprep.subr.mxu0 0.0
    %1453 = vmatpush1.msra.mxu0 0.0
    %1454 = vmatprep.subr.mxu0 0.0
    %1455 = vmatpush1.msra.mxu0 0.0
    %1456 = vmatprep.subr.mxu0 0.0
    %1457 = vmatpush1.msra.mxu0 0.0
    %1458 = vmatprep.subr.mxu0 0.0
    %1459 = vmatpush1.msra.mxu0 0.0
    %1460 = vmatprep.subr.mxu0 0.0
    %1461 = vmatpush1.msra.mxu0 0.0
    %1462 = vmatprep.subr.mxu0 0.0
    %1463 = vmatpush1.msra.mxu0 0.0
    %1464 = vmatprep.subr.mxu0 0.0
    %1465 = vmatpush1.msra.mxu0 0.0
    %1466 = vmatprep.subr.mxu0 0.0
    %1467 = vmatpush1.msra.mxu0 0.0
    %1468 = vmatprep.subr.mxu0 0.0
    %1469 = vmatpush1.msra.mxu0 0.0
    %1470 = vmatprep.subr.mxu0 0.0
    %1471 = vmatpush1.msra.mxu0 0.0
    %1472 = vmatprep.subr.mxu0 0.0
    %1473 = vmatpush1.msra.mxu0 0.0
    %1474 = vmatprep.subr.mxu0 0.0
    %1475 = vmatpush1.msra.mxu0 0.0
    %1476 = vmatprep.subr.mxu0 0.0
    %1477 = vmatpush1.msra.mxu0 0.0
    %1478 = vmatprep.subr.mxu0 0.0
    %1479 = vmatpush1.msra.mxu0 0.0
    %1480 = vmatprep.subr.mxu0 0.0
    %1481 = vmatpush1.msra.mxu0 0.0
    %1482 = vmatprep.subr.mxu0 0.0
    %1483 = vmatpush1.msra.mxu0 0.0
    %1484 = vmatprep.subr.mxu0 0.0
    %1485 = vmatpush1.msra.mxu0 0.0
    %1486 = vmatprep.subr.mxu0 0.0
    %1487 = vmatpush1.msra.mxu0 0.0
    %1488 = vmatprep.subr.mxu0 0.0
    %1489 = vmatpush1.msra.mxu0 0.0
    %1490 = vmatprep.subr.mxu0 0.0
    %1491 = vmatpush1.msra.mxu0 0.0
    %1492 = vmatprep.subr.mxu0 0.0
    %1493 = vmatpush1.msra.mxu0 0.0
    %1494 = vmatprep.subr.mxu0 0.0
    %1495 = vmatpush1.msra.mxu0 0.0
    %1496 = vmatprep.subr.mxu0 0.0
    %1497 = vmatpush1.msra.mxu0 0.0
    %1498 = vmatprep.subr.mxu0 0.0
    %1499 = vmatpush1.msra.mxu0 0.0
    %1500 = vmatprep.subr.mxu0 0.0
    %1501 = vmatpush1.msra.mxu0 0.0
    %1502 = vmatprep.subr.mxu0 0.0
    %1503 = vmatpush1.msra.mxu0 0.0
    %1504 = vmatprep.mubr.f32.mxu0 0.0
    %1505 = vmatmul.mubr.f32.gmra.mrb[0].mxu0 %v1438
    %v1506 = vpop.f32.mrb[0].mxu0
    %v1507 = vadd.f32 0.0, %v1506
    %v1508 = vpop.f32.mrb[0].mxu0
    %1509 = vdwg.mxu0
    %1511 = vrot.lane.b32.xlu0 %v1177, 8
    %v1512 = vpop.permute.xlu0 %1511
    %1515 = vrot.lane.b32.xlu0 %v1342, 16
    %v1516 = vpop.permute.xlu0 %1515
    %1519 = vrot.lane.b32.xlu0 %v1507, 24
    %v1520 = vpop.permute.xlu0 %1519
    %v1522 = vsel %vm177, %v1012, %v1512
    %v1523 = vsel %vm847, %v1522, %v1516
    %v1524 = vsel %vm849, %v1523, %v1520
    %v1525 = vld [vmem:[%s3] sm:$0xff]
    %v1526 = vld [vmem:[%s3 + $0x8] sm:$0xff]
    %v1527 = vld [vmem:[%s3 + $0x10] sm:$0xff]
    %v1528 = vld [vmem:[%s3 + $0x18] sm:$0xff]
    %v1529 = vld [vmem:[%s4] sm:$0x1]
    %v1531 = vlaneseq
    %v1532 = vshrl.u32 %v1531, 7
    %v1533 = vsub.s32 0, %v1532
    %v1534 = vrot.slane %v1529, %v1533
    %v1537 = vsel %vm92, %v850, 0
    %v1540 = vsel %vm92, %v1524, 0
    %1542 = vmatprep.subr.mxu0 0.0
    %1543 = vmatpush1.msra.mxu0 %v1525
    %1544 = vmatprep.subr.mxu0 0.0
    %1545 = vmatpush1.msra.mxu0 %v1526
    %1546 = vmatprep.subr.mxu0 0.0
    %1547 = vmatpush1.msra.mxu0 %v1527
    %1548 = vmatprep.subr.mxu0 0.0
    %1549 = vmatpush1.msra.mxu0 %v1528
    %1550 = vmatprep.subr.mxu0 0.0
    %1551 = vmatpush1.msra.mxu0 0.0
    %1552 = vmatprep.subr.mxu0 0.0
    %1553 = vmatpush1.msra.mxu0 0.0
    %1554 = vmatprep.subr.mxu0 0.0
    %1555 = vmatpush1.msra.mxu0 0.0
    %1556 = vmatprep.subr.mxu0 0.0
    %1557 = vmatpush1.msra.mxu0 0.0
    %1558 = vmatprep.subr.mxu0 0.0
    %1559 = vmatpush1.msra.mxu0 0.0
    %1560 = vmatprep.subr.mxu0 0.0
    %1561 = vmatpush1.msra.mxu0 0.0
    %1562 = vmatprep.subr.mxu0 0.0
    %1563 = vmatpush1.msra.mxu0 0.0
    %1564 = vmatprep.subr.mxu0 0.0
    %1565 = vmatpush1.msra.mxu0 0.0
    %1566 = vmatprep.subr.mxu0 0.0
    %1567 = vmatpush1.msra.mxu0 0.0
    %1568 = vmatprep.subr.mxu0 0.0
    %1569 = vmatpush1.msra.mxu0 0.0
    %1570 = vmatprep.subr.mxu0 0.0
    %1571 = vmatpush1.msra.mxu0 0.0
    %1572 = vmatprep.subr.mxu0 0.0
    %1573 = vmatpush1.msra.mxu0 0.0
    %1574 = vmatprep.subr.mxu0 0.0
    %1575 = vmatpush1.msra.mxu0 0.0
    %1576 = vmatprep.subr.mxu0 0.0
    %1577 = vmatpush1.msra.mxu0 0.0
    %1578 = vmatprep.subr.mxu0 0.0
    %1579 = vmatpush1.msra.mxu0 0.0
    %1580 = vmatprep.subr.mxu0 0.0
    %1581 = vmatpush1.msra.mxu0 0.0
    %1582 = vmatprep.subr.mxu0 0.0
    %1583 = vmatpush1.msra.mxu0 0.0
    %1584 = vmatprep.subr.mxu0 0.0
    %1585 = vmatpush1.msra.mxu0 0.0
    %1586 = vmatprep.subr.mxu0 0.0
    %1587 = vmatpush1.msra.mxu0 0.0
    %1588 = vmatprep.subr.mxu0 0.0
    %1589 = vmatpush1.msra.mxu0 0.0
    %1590 = vmatprep.subr.mxu0 0.0
    %1591 = vmatpush1.msra.mxu0 0.0
    %1592 = vmatprep.subr.mxu0 0.0
    %1593 = vmatpush1.msra.mxu0 0.0
    %1594 = vmatprep.subr.mxu0 0.0
    %1595 = vmatpush1.msra.mxu0 0.0
    %1596 = vmatprep.subr.mxu0 0.0
    %1597 = vmatpush1.msra.mxu0 0.0
    %1598 = vmatprep.subr.mxu0 0.0
    %1599 = vmatpush1.msra.mxu0 0.0
    %1600 = vmatprep.subr.mxu0 0.0
    %1601 = vmatpush1.msra.mxu0 0.0
    %1602 = vmatprep.subr.mxu0 0.0
    %1603 = vmatpush1.msra.mxu0 0.0
    %1604 = vmatprep.subr.mxu0 0.0
    %1605 = vmatpush1.msra.mxu0 0.0
    %1606 = vmatprep.mubr.f32.mxu0 0.0
    %1607 = vmatmul.mubr.f32.gmra.mrb[0].mxu0 %v1537
    %v1608 = vpop.f32.mrb[0].mxu0
    %v1609 = vadd.f32 %v1534, %v1608
    %v1610 = vpop.f32.mrb[0].mxu0
    %1611 = vmatprep.mubr.f32.mxu0 0.0
    %1612 = vmatmul.mubr.f32.gmra.mrb[0].mxu0 %v1540
    %v1613 = vpop.f32.mrb[0].mxu0
    %v1614 = vadd.f32 %v1534, %v1613
    %v1615 = vpop.f32.mrb[0].mxu0
    %1616 = vdwg.mxu0
    %v1617 = vadd.f32 %v79, %v1609
    %v1618 = vadd.f32 %v80, %v1614
    %v1619 = vld [vmem:[%s5] sm:$0x1]
    %v1620 = vld [vmem:[%s6] sm:$0x1]
    %v1621 = vsel %vm92, %v1617, 0.0
    %1622 = vadd.xlane.f32.xlu0 %v1621
    %v1623 = vpop.xlane.xlu0 %1622
    %v1624 = vsel %vm92, %v1618, 0.0
    %1625 = vadd.xlane.f32.xlu0 %v1624
    %v1626 = vpop.xlane.xlu0 %1625
    %v1627 = vrcp.pop 32.0
    %v1628 = vmul.f32 %v1623, %v1627
    %v1629 = vmul.f32 %v1626, %v1627
    %v1630 = vsub.f32 %v1617, %v1628
    %v1631 = vsub.f32 %v1618, %v1629
    %v1632 = vmul.f32 %v1630, %v1630
    %v1633 = vmul.f32 %v1631, %v1631
    %v1634 = vsel %vm92, %v1632, 0.0
    %1635 = vadd.xlane.f32.xlu0 %v1634
    %v1636 = vpop.xlane.xlu0 %1635
    %v1637 = vsel %vm92, %v1633, 0.0
    %1638 = vadd.xlane.f32.xlu0 %v1637
    %v1639 = vpop.xlane.xlu0 %1638
    %v1640 = vmul.f32 %v1636, %v1627
    %v1641 = vmul.f32 %v1639, %v1627
    %v1642 = vadd.f32 %v1640, 1e-05
    %v1643 = vadd.f32 %v1641, 1e-05
    %v1644 = vrsqrt.pop %v1642
    %v1645 = vrsqrt.pop %v1643
    %v1646 = vmul.f32 %v1630, %v1644
    %v1647 = vmul.f32 %v1631, %v1645
    %v1649 = vlaneseq
    %v1650 = vshrl.u32 %v1649, 7
    %v1651 = vsub.s32 0, %v1650
    %v1652 = vrot.slane %v1619, %v1651
    %v1654 = vmul.f32 %v1646, %v1652
    %v1655 = vmul.f32 %v1647, %v1652
    %v1657 = vlaneseq
    %v1658 = vshrl.u32 %v1657, 7
    %v1659 = vsub.s32 0, %v1658
    %v1660 = vrot.slane %v1620, %v1659
    %v1662 = vadd.f32 %v1654, %v1660
    %v1663 = vadd.f32 %v1655, %v1660
    %v1664 = vld [vmem:[%s7] sm:$0xff]
    %v1665 = vld [vmem:[%s7 + $0x8] sm:$0xff]
    %v1666 = vld [vmem:[%s7 + $0x10] sm:$0xff]
    %v1667 = vld [vmem:[%s7 + $0x18] sm:$0xff]
    %v1668 = vld [vmem:[#allocation5] sm:$0x1]
    %v1670 = vlaneseq
    %v1671 = vshrl.u32 %v1670, 7
    %v1672 = vsub.s32 0, %v1671
    %v1673 = vrot.slane %v1668, %v1672
    %v1676 = vsel %vm92, %v1662, 0
    %v1679 = vsel %vm92, %v1663, 0
    %1681 = vmatprep.subr.mxu0 0.0
    %1682 = vmatpush1.msra.mxu0 %v1664
    %1683 = vmatprep.subr.mxu0 0.0
    %1684 = vmatpush1.msra.mxu0 %v1665
    %1685 = vmatprep.subr.mxu0 0.0
    %1686 = vmatpush1.msra.mxu0 %v1666
    %1687 = vmatprep.subr.mxu0 0.0
    %1688 = vmatpush1.msra.mxu0 %v1667
    %1689 = vmatprep.subr.mxu0 0.0
    %1690 = vmatpush1.msra.mxu0 0.0
    %1691 = vmatprep.subr.mxu0 0.0
    %1692 = vmatpush1.msra.mxu0 0.0
    %1693 = vmatprep.subr.mxu0 0.0
    %1694 = vmatpush1.msra.mxu0 0.0
    %1695 = vmatprep.subr.mxu0 0.0
    %1696 = vmatpush1.msra.mxu0 0.0
    %1697 = vmatprep.subr.mxu0 0.0
    %1698 = vmatpush1.msra.mxu0 0.0
    %1699 = vmatprep.subr.mxu0 0.0
    %1700 = vmatpush1.msra.mxu0 0.0
    %1701 = vmatprep.subr.mxu0 0.0
    %1702 = vmatpush1.msra.mxu0 0.0
    %1703 = vmatprep.subr.mxu0 0.0
    %1704 = vmatpush1.msra.mxu0 0.0
    %1705 = vmatprep.subr.mxu0 0.0
    %1706 = vmatpush1.msra.mxu0 0.0
    %1707 = vmatprep.subr.mxu0 0.0
    %1708 = vmatpush1.msra.mxu0 0.0
    %1709 = vmatprep.subr.mxu0 0.0
    %1710 = vmatpush1.msra.mxu0 0.0
    %1711 = vmatprep.subr.mxu0 0.0
    %1712 = vmatpush1.msra.mxu0 0.0
    %1713 = vmatprep.subr.mxu0 0.0
    %1714 = vmatpush1.msra.mxu0 0.0
    %1715 = vmatprep.subr.mxu0 0.0
    %1716 = vmatpush1.msra.mxu0 0.0
    %1717 = vmatprep.subr.mxu0 0.0
    %1718 = vmatpush1.msra.mxu0 0.0
    %1719 = vmatprep.subr.mxu0 0.0
    %1720 = vmatpush1.msra.mxu0 0.0
    %1721 = vmatprep.subr.mxu0 0.0
    %1722 = vmatpush1.msra.mxu0 0.0
    %1723 = vmatprep.subr.mxu0 0.0
    %1724 = vmatpush1.msra.mxu0 0.0
    %1725 = vmatprep.subr.mxu0 0.0
    %1726 = vmatpush1.msra.mxu0 0.0
    %1727 = vmatprep.subr.mxu0 0.0
    %1728 = vmatpush1.msra.mxu0 0.0
    %1729 = vmatprep.subr.mxu0 0.0
    %1730 = vmatpush1.msra.mxu0 0.0
    %1731 = vmatprep.subr.mxu0 0.0
    %1732 = vmatpush1.msra.mxu0 0.0
    %1733 = vmatprep.subr.mxu0 0.0
    %1734 = vmatpush1.msra.mxu0 0.0
    %1735 = vmatprep.subr.mxu0 0.0
    %1736 = vmatpush1.msra.mxu0 0.0
    %1737 = vmatprep.subr.mxu0 0.0
    %1738 = vmatpush1.msra.mxu0 0.0
    %1739 = vmatprep.subr.mxu0 0.0
    %1740 = vmatpush1.msra.mxu0 0.0
    %1741 = vmatprep.subr.mxu0 0.0
    %1742 = vmatpush1.msra.mxu0 0.0
    %1743 = vmatprep.subr.mxu0 0.0
    %1744 = vmatpush1.msra.mxu0 0.0
    %1745 = vmatprep.mubr.f32.mxu0 0.0
    %1746 = vmatmul.mubr.f32.gmra.mrb[0].mxu0 %v1676
    %v1747 = vpop.f32.mrb[0].mxu0
    %v1748 = vadd.f32 %v1673, %v1747
    %v1749 = vpop.f32.mrb[0].mxu0
    %1750 = vmatprep.mubr.f32.mxu0 0.0
    %1751 = vmatmul.mubr.f32.gmra.mrb[0].mxu0 %v1679
    %v1752 = vpop.f32.mrb[0].mxu0
    %v1753 = vadd.f32 %v1673, %v1752
    %v1754 = vpop.f32.mrb[0].mxu0
    %1755 = vdwg.mxu0
    %v1756 = vmax.f32 %v1748, 0.0
    %v1757 = vmax.f32 %v1753, 0.0
    %v1758 = vld [vmem:[%s9] sm:$0xff]
    %v1759 = vld [vmem:[%s9 + $0x8] sm:$0xff]
    %v1760 = vld [vmem:[%s9 + $0x10] sm:$0xff]
    %v1761 = vld [vmem:[%s9 + $0x18] sm:$0xff]
    %v1762 = vld [vmem:[%s9 + $0x20] sm:$0xff]
    %v1763 = vld [vmem:[%s9 + $0x28] sm:$0xff]
    %v1764 = vld [vmem:[%s9 + $0x30] sm:$0xff]
    %v1765 = vld [vmem:[%s9 + $0x38] sm:$0xff]
    %v1766 = vld [vmem:[%s10] sm:$0x1]
    %v1768 = vlaneseq
    %v1769 = vshrl.u32 %v1768, 7
    %v1770 = vsub.s32 0, %v1769
    %v1771 = vrot.slane %v1766, %v1770
    %vm1773 = vcmask 523264
    %v1775 = vsel %vm1773, %v1756, 0
    %v1778 = vsel %vm1773, %v1757, 0
    %1780 = vmatprep.subr.mxu0 0.0
    %1781 = vmatpush1.msra.mxu0 %v1758
    %1782 = vmatprep.subr.mxu0 0.0
    %1783 = vmatpush1.msra.mxu0 %v1759
    %1784 = vmatprep.subr.mxu0 0.0
    %1785 = vmatpush1.msra.mxu0 %v1760
    %1786 = vmatprep.subr.mxu0 0.0
    %1787 = vmatpush1.msra.mxu0 %v1761
    %1788 = vmatprep.subr.mxu0 0.0
    %1789 = vmatpush1.msra.mxu0 %v1762
    %1790 = vmatprep.subr.mxu0 0.0
    %1791 = vmatpush1.msra.mxu0 %v1763
    %1792 = vmatprep.subr.mxu0 0.0
    %1793 = vmatpush1.msra.mxu0 %v1764
    %1794 = vmatprep.subr.mxu0 0.0
    %1795 = vmatpush1.msra.mxu0 %v1765
    %1796 = vmatprep.subr.mxu0 0.0
    %1797 = vmatpush1.msra.mxu0 0.0
    %1798 = vmatprep.subr.mxu0 0.0
    %1799 = vmatpush1.msra.mxu0 0.0
    %1800 = vmatprep.subr.mxu0 0.0
    %1801 = vmatpush1.msra.mxu0 0.0
    %1802 = vmatprep.subr.mxu0 0.0
    %1803 = vmatpush1.msra.mxu0 0.0
    %1804 = vmatprep.subr.mxu0 0.0
    %1805 = vmatpush1.msra.mxu0 0.0
    %1806 = vmatprep.subr.mxu0 0.0
    %1807 = vmatpush1.msra.mxu0 0.0
    %1808 = vmatprep.subr.mxu0 0.0
    %1809 = vmatpush1.msra.mxu0 0.0
    %1810 = vmatprep.subr.mxu0 0.0
    %1811 = vmatpush1.msra.mxu0 0.0
    %1812 = vmatprep.subr.mxu0 0.0
    %1813 = vmatpush1.msra.mxu0 0.0
    %1814 = vmatprep.subr.mxu0 0.0
    %1815 = vmatpush1.msra.mxu0 0.0
    %1816 = vmatprep.subr.mxu0 0.0
    %1817 = vmatpush1.msra.mxu0 0.0
    %1818 = vmatprep.subr.mxu0 0.0
    %1819 = vmatpush1.msra.mxu0 0.0
    %1820 = vmatprep.subr.mxu0 0.0
    %1821 = vmatpush1.msra.mxu0 0.0
    %1822 = vmatprep.subr.mxu0 0.0
    %1823 = vmatpush1.msra.mxu0 0.0
    %1824 = vmatprep.subr.mxu0 0.0
    %1825 = vmatpush1.msra.mxu0 0.0
    %1826 = vmatprep.subr.mxu0 0.0
    %1827 = vmatpush1.msra.mxu0 0.0
    %1828 = vmatprep.subr.mxu0 0.0
    %1829 = vmatpush1.msra.mxu0 0.0
    %1830 = vmatprep.subr.mxu0 0.0
    %1831 = vmatpush1.msra.mxu0 0.0
    %1832 = vmatprep.subr.mxu0 0.0
    %1833 = vmatpush1.msra.mxu0 0.0
    %1834 = vmatprep.subr.mxu0 0.0
    %1835 = vmatpush1.msra.mxu0 0.0
    %1836 = vmatprep.subr.mxu0 0.0
    %1837 = vmatpush1.msra.mxu0 0.0
    %1838 = vmatprep.subr.mxu0 0.0
    %1839 = vmatpush1.msra.mxu0 0.0
    %1840 = vmatprep.subr.mxu0 0.0
    %1841 = vmatpush1.msra.mxu0 0.0
    %1842 = vmatprep.subr.mxu0 0.0
    %1843 = vmatpush1.msra.mxu0 0.0
    %1844 = vmatprep.mubr.f32.mxu0 0.0
    %1845 = vmatmul.mubr.f32.gmra.mrb[0].mxu0 %v1775
    %v1846 = vpop.f32.mrb[0].mxu0
    %v1847 = vadd.f32 %v1771, %v1846
    %v1848 = vpop.f32.mrb[0].mxu0
    %1849 = vmatprep.mubr.f32.mxu0 0.0
    %1850 = vmatmul.mubr.f32.gmra.mrb[0].mxu0 %v1778
    %v1851 = vpop.f32.mrb[0].mxu0
    %v1852 = vadd.f32 %v1771, %v1851
    %v1853 = vpop.f32.mrb[0].mxu0
    %1854 = vdwg.mxu0
    %v1855 = vadd.f32 %v1662, %v1847
    %v1856 = vadd.f32 %v1663, %v1852
    %v1857 = vld [vmem:[%s11] sm:$0x1]
    %v1858 = vld [vmem:[%s12] sm:$0x1]
    %v1859 = vsel %vm92, %v1855, 0.0
    %1860 = vadd.xlane.f32.xlu0 %v1859
    %v1861 = vpop.xlane.xlu0 %1860
    %v1862 = vsel %vm92, %v1856, 0.0
    %1863 = vadd.xlane.f32.xlu0 %v1862
    %v1864 = vpop.xlane.xlu0 %1863
    %v1865 = vmul.f32 %v1861, %v1627
    %v1866 = vmul.f32 %v1864, %v1627
    %v1867 = vsub.f32 %v1855, %v1865
    %v1868 = vsub.f32 %v1856, %v1866
    %v1869 = vmul.f32 %v1867, %v1867
    %v1870 = vmul.f32 %v1868, %v1868
    %v1871 = vsel %vm92, %v1869, 0.0
    %1872 = vadd.xlane.f32.xlu0 %v1871
    %v1873 = vpop.xlane.xlu0 %1872
    %v1874 = vsel %vm92, %v1870, 0.0
    %1875 = vadd.xlane.f32.xlu0 %v1874
    %v1876 = vpop.xlane.xlu0 %1875
    %v1877 = vmul.f32 %v1873, %v1627
    %v1878 = vmul.f32 %v1876, %v1627
    %v1879 = vadd.f32 %v1877, 1e-05
    %v1880 = vadd.f32 %v1878, 1e-05
    %v1881 = vrsqrt.pop %v1879
    %v1882 = vrsqrt.pop %v1880
    %v1883 = vmul.f32 %v1867, %v1881
    %v1884 = vmul.f32 %v1868, %v1882
    %v1886 = vlaneseq
    %v1887 = vshrl.u32 %v1886, 7
    %v1888 = vsub.s32 0, %v1887
    %v1889 = vrot.slane %v1857, %v1888
    %v1891 = vmul.f32 %v1883, %v1889
    %v1892 = vmul.f32 %v1884, %v1889
    %v1894 = vlaneseq
    %v1895 = vshrl.u32 %v1894, 7
    %v1896 = vsub.s32 0, %v1895
    %v1897 = vrot.slane %v1858, %v1896
    %v1899 = vadd.f32 %v1891, %v1897
    %v1900 = vadd.f32 %v1892, %v1897
    %s1901 = scalar_lea.vmem %s1, 32
    %v1902 = vld [vmem:[%s1901] sm:$0xff]
    %v1903 = vld [vmem:[%s1901 + $0x8] sm:$0xff]
    %v1904 = vld [vmem:[%s1901 + $0x10] sm:$0xff]
    %v1905 = vld [vmem:[%s1901 + $0x18] sm:$0xff]
    %s1906 = scalar_lea.vmem %s2, 1
    %v1907 = vld [vmem:[%s1906] sm:$0x1]
    %v1909 = vlaneseq
    %v1910 = vshrl.u32 %v1909, 7
    %v1911 = vsub.s32 0, %v1910
    %v1912 = vrot.slane %v1907, %v1911
    %v1915 = vsel %vm92, %v1899, 0
    %v1918 = vsel %vm92, %v1900, 0
    %1920 = vmatprep.subr.mxu0 0.0
    %1921 = vmatpush1.msra.mxu0 %v1902
    %1922 = vmatprep.subr.mxu0 0.0
    %1923 = vmatpush1.msra.mxu0 %v1903
    %1924 = vmatprep.subr.mxu0 0.0
    %1925 = vmatpush1.msra.mxu0 %v1904
    %1926 = vmatprep.subr.mxu0 0.0
    %1927 = vmatpush1.msra.mxu0 %v1905
    %1928 = vmatprep.subr.mxu0 0.0
    %1929 = vmatpush1.msra.mxu0 0.0
    %1930 = vmatprep.subr.mxu0 0.0
    %1931 = vmatpush1.msra.mxu0 0.0
    %1932 = vmatprep.subr.mxu0 0.0
    %1933 = vmatpush1.msra.mxu0 0.0
    %1934 = vmatprep.subr.mxu0 0.0
    %1935 = vmatpush1.msra.mxu0 0.0
    %1936 = vmatprep.subr.mxu0 0.0
    %1937 = vmatpush1.msra.mxu0 0.0
    %1938 = vmatprep.subr.mxu0 0.0
    %1939 = vmatpush1.msra.mxu0 0.0
    %1940 = vmatprep.subr.mxu0 0.0
    %1941 = vmatpush1.msra.mxu0 0.0
    %1942 = vmatprep.subr.mxu0 0.0
    %1943 = vmatpush1.msra.mxu0 0.0
    %1944 = vmatprep.subr.mxu0 0.0
    %1945 = vmatpush1.msra.mxu0 0.0
    %1946 = vmatprep.subr.mxu0 0.0
    %1947 = vmatpush1.msra.mxu0 0.0
    %1948 = vmatprep.subr.mxu0 0.0
    %1949 = vmatpush1.msra.mxu0 0.0
    %1950 = vmatprep.subr.mxu0 0.0
    %1951 = vmatpush1.msra.mxu0 0.0
    %1952 = vmatprep.subr.mxu0 0.0
    %1953 = vmatpush1.msra.mxu0 0.0
    %1954 = vmatprep.subr.mxu0 0.0
    %1955 = vmatpush1.msra.mxu0 0.0
    %1956 = vmatprep.subr.mxu0 0.0
    %1957 = vmatpush1.msra.mxu0 0.0
    %1958 = vmatprep.subr.mxu0 0.0
    %1959 = vmatpush1.msra.mxu0 0.0
    %1960 = vmatprep.subr.mxu0 0.0
    %1961 = vmatpush1.msra.mxu0 0.0
    %1962 = vmatprep.subr.mxu0 0.0
    %1963 = vmatpush1.msra.mxu0 0.0
    %1964 = vmatprep.subr.mxu0 0.0
    %1965 = vmatpush1.msra.mxu0 0.0
    %1966 = vmatprep.subr.mxu0 0.0
    %1967 = vmatpush1.msra.mxu0 0.0
    %1968 = vmatprep.subr.mxu0 0.0
    %1969 = vmatpush1.msra.mxu0 0.0
    %1970 = vmatprep.subr.mxu0 0.0
    %1971 = vmatpush1.msra.mxu0 0.0
    %1972 = vmatprep.subr.mxu0 0.0
    %1973 = vmatpush1.msra.mxu0 0.0
    %1974 = vmatprep.subr.mxu0 0.0
    %1975 = vmatpush1.msra.mxu0 0.0
    %1976 = vmatprep.subr.mxu0 0.0
    %1977 = vmatpush1.msra.mxu0 0.0
    %1978 = vmatprep.subr.mxu0 0.0
    %1979 = vmatpush1.msra.mxu0 0.0
    %1980 = vmatprep.subr.mxu0 0.0
    %1981 = vmatpush1.msra.mxu0 0.0
    %1982 = vmatprep.subr.mxu0 0.0
    %1983 = vmatpush1.msra.mxu0 0.0
    %1984 = vmatprep.mubr.f32.mxu0 0.0
    %1985 = vmatmul.mubr.f32.gmra.mrb[0].mxu0 %v1915
    %v1986 = vpop.f32.mrb[0].mxu0
    %v1987 = vadd.f32 %v1912, %v1986
    %v1988 = vpop.f32.mrb[0].mxu0
    %1989 = vmatprep.mubr.f32.mxu0 0.0
    %1990 = vmatmul.mubr.f32.gmra.mrb[0].mxu0 %v1918
    %v1991 = vpop.f32.mrb[0].mxu0
    %v1992 = vadd.f32 %v1912, %v1991
    %v1993 = vpop.f32.mrb[0].mxu0
    %1994 = vdwg.mxu0
    %1996 = vrot.lane.b32.xlu0 %v1987, 96
    %v1997 = vpop.permute.xlu0 %1996
    %v1998 = vsel %vm177, %v1987, 0
    %v2000 = vsel %vm177, %v1997, 0
    %2002 = vmatprep.subr.mxu0 0.0
    %2003 = vmatpush1.xpose.msra.mxu0 %v2000
    %2004 = vmatprep.subr.mxu0 0.0
    %2005 = vmatpush1.xpose.msra.mxu0 0.0
    %2006 = vmatprep.subr.mxu0 0.0
    %2007 = vmatpush1.xpose.msra.mxu0 0.0
    %2008 = vmatprep.subr.mxu0 0.0
    %2009 = vmatpush1.xpose.msra.mxu0 0.0
    %2010 = vmatprep.subr.mxu0 0.0
    %2011 = vmatpush1.xpose.msra.mxu0 0.0
    %2012 = vmatprep.subr.mxu0 0.0
    %2013 = vmatpush1.xpose.msra.mxu0 0.0
    %2014 = vmatprep.subr.mxu0 0.0
    %2015 = vmatpush1.xpose.msra.mxu0 0.0
    %2016 = vmatprep.subr.mxu0 0.0
    %2017 = vmatpush1.xpose.msra.mxu0 0.0
    %2018 = vmatprep.subr.mxu0 0.0
    %2019 = vmatpush1.xpose.msra.mxu0 0.0
    %2020 = vmatprep.subr.mxu0 0.0
    %2021 = vmatpush1.xpose.msra.mxu0 0.0
    %2022 = vmatprep.subr.mxu0 0.0
    %2023 = vmatpush1.xpose.msra.mxu0 0.0
    %2024 = vmatprep.subr.mxu0 0.0
    %2025 = vmatpush1.xpose.msra.mxu0 0.0
    %2026 = vmatprep.subr.mxu0 0.0
    %2027 = vmatpush1.xpose.msra.mxu0 0.0
    %2028 = vmatprep.subr.mxu0 0.0
    %2029 = vmatpush1.xpose.msra.mxu0 0.0
    %2030 = vmatprep.subr.mxu0 0.0
    %2031 = vmatpush1.xpose.msra.mxu0 0.0
    %2032 = vmatprep.subr.mxu0 0.0
    %2033 = vmatpush1.xpose.msra.mxu0 0.0
    %2034 = vmatprep.subr.mxu0 0.0
    %2035 = vmatpush1.xpose.msra.mxu0 0.0
    %2036 = vmatprep.subr.mxu0 0.0
    %2037 = vmatpush1.xpose.msra.mxu0 0.0
    %2038 = vmatprep.subr.mxu0 0.0
    %2039 = vmatpush1.xpose.msra.mxu0 0.0
    %2040 = vmatprep.subr.mxu0 0.0
    %2041 = vmatpush1.xpose.msra.mxu0 0.0
    %2042 = vmatprep.subr.mxu0 0.0
    %2043 = vmatpush1.xpose.msra.mxu0 0.0
    %2044 = vmatprep.subr.mxu0 0.0
    %2045 = vmatpush1.xpose.msra.mxu0 0.0
    %2046 = vmatprep.subr.mxu0 0.0
    %2047 = vmatpush1.xpose.msra.mxu0 0.0
    %2048 = vmatprep.subr.mxu0 0.0
    %2049 = vmatpush1.xpose.msra.mxu0 0.0
    %2050 = vmatprep.subr.mxu0 0.0
    %2051 = vmatpush1.xpose.msra.mxu0 0.0
    %2052 = vmatprep.subr.mxu0 0.0
    %2053 = vmatpush1.xpose.msra.mxu0 0.0
    %2054 = vmatprep.subr.mxu0 0.0
    %2055 = vmatpush1.xpose.msra.mxu0 0.0
    %2056 = vmatprep.subr.mxu0 0.0
    %2057 = vmatpush1.xpose.msra.mxu0 0.0
    %2058 = vmatprep.subr.mxu0 0.0
    %2059 = vmatpush1.xpose.msra.mxu0 0.0
    %2060 = vmatprep.subr.mxu0 0.0
    %2061 = vmatpush1.xpose.msra.mxu0 0.0
    %2062 = vmatprep.subr.mxu0 0.0
    %2063 = vmatpush1.xpose.msra.mxu0 0.0
    %2064 = vmatprep.subr.mxu0 0.0
    %2065 = vmatpush1.xpose.msra.mxu0 0.0
    %2066 = vmatprep.mubr.f32.mxu0 0.0
    %2067 = vmatmul.mubr.f32.gmra.mrb[0].mxu0 %v1998
    %v2068 = vpop.f32.mrb[0].mxu0
    %v2069 = vadd.f32 0.0, %v2068
    %v2070 = vpop.f32.mrb[0].mxu0
    %2071 = vdwg.mxu0
    %v2072 = vsel %vm177, %v2069, -inf
    %2073 = vmax.xlane.f32.xlu0 %v2072
    %v2074 = vpop.xlane.xlu0 %2073
    %v2075 = vsub.f32 %v2069, %v2074
    %v2076 = vmul.f32 %v2075, 1.442695
    %v2077 = vpow.pop %v2076
    %v2078 = vsel %vm177, %v2077, 0.0
    %2079 = vadd.xlane.f32.xlu0 %v2078
    %v2080 = vpop.xlane.xlu0 %2079
    %v2081 = vrcp.pop %v2080
    %v2082 = vmul.f32 %v2077, %v2081
    %2083 = vrot.lane.b32.xlu0 %v1987, 64
    %v2084 = vpop.permute.xlu0 %2083
    %v2087 = vsel %vm177, %v2082, 0
    %2089 = vmatprep.subr.mxu0 0.0
    %2090 = vmatpush1.msra.mxu0 %v2084
    %2091 = vmatprep.subr.mxu0 0.0
    %2092 = vmatpush1.msra.mxu0 0.0
    %2093 = vmatprep.subr.mxu0 0.0
    %2094 = vmatpush1.msra.mxu0 0.0
    %2095 = vmatprep.subr.mxu0 0.0
    %2096 = vmatpush1.msra.mxu0 0.0
    %2097 = vmatprep.subr.mxu0 0.0
    %2098 = vmatpush1.msra.mxu0 0.0
    %2099 = vmatprep.subr.mxu0 0.0
    %2100 = vmatpush1.msra.mxu0 0.0
    %2101 = vmatprep.subr.mxu0 0.0
    %2102 = vmatpush1.msra.mxu0 0.0
    %2103 = vmatprep.subr.mxu0 0.0
    %2104 = vmatpush1.msra.mxu0 0.0
    %2105 = vmatprep.subr.mxu0 0.0
    %2106 = vmatpush1.msra.mxu0 0.0
    %2107 = vmatprep.subr.mxu0 0.0
    %2108 = vmatpush1.msra.mxu0 0.0
    %2109 = vmatprep.subr.mxu0 0.0
    %2110 = vmatpush1.msra.mxu0 0.0
    %2111 = vmatprep.subr.mxu0 0.0
    %2112 = vmatpush1.msra.mxu0 0.0
    %2113 = vmatprep.subr.mxu0 0.0
    %2114 = vmatpush1.msra.mxu0 0.0
    %2115 = vmatprep.subr.mxu0 0.0
    %2116 = vmatpush1.msra.mxu0 0.0
    %2117 = vmatprep.subr.mxu0 0.0
    %2118 = vmatpush1.msra.mxu0 0.0
    %2119 = vmatprep.subr.mxu0 0.0
    %2120 = vmatpush1.msra.mxu0 0.0
    %2121 = vmatprep.subr.mxu0 0.0
    %2122 = vmatpush1.msra.mxu0 0.0
    %2123 = vmatprep.subr.mxu0 0.0
    %2124 = vmatpush1.msra.mxu0 0.0
    %2125 = vmatprep.subr.mxu0 0.0
    %2126 = vmatpush1.msra.mxu0 0.0
    %2127 = vmatprep.subr.mxu0 0.0
    %2128 = vmatpush1.msra.mxu0 0.0
    %2129 = vmatprep.subr.mxu0 0.0
    %2130 = vmatpush1.msra.mxu0 0.0
    %2131 = vmatprep.subr.mxu0 0.0
    %2132 = vmatpush1.msra.mxu0 0.0
    %2133 = vmatprep.subr.mxu0 0.0
    %2134 = vmatpush1.msra.mxu0 0.0
    %2135 = vmatprep.subr.mxu0 0.0
    %2136 = vmatpush1.msra.mxu0 0.0
    %2137 = vmatprep.subr.mxu0 0.0
    %2138 = vmatpush1.msra.mxu0 0.0
    %2139 = vmatprep.subr.mxu0 0.0
    %2140 = vmatpush1.msra.mxu0 0.0
    %2141 = vmatprep.subr.mxu0 0.0
    %2142 = vmatpush1.msra.mxu0 0.0
    %2143 = vmatprep.subr.mxu0 0.0
    %2144 = vmatpush1.msra.mxu0 0.0
    %2145 = vmatprep.subr.mxu0 0.0
    %2146 = vmatpush1.msra.mxu0 0.0
    %2147 = vmatprep.subr.mxu0 0.0
    %2148 = vmatpush1.msra.mxu0 0.0
    %2149 = vmatprep.subr.mxu0 0.0
    %2150 = vmatpush1.msra.mxu0 0.0
    %2151 = vmatprep.subr.mxu0 0.0
    %2152 = vmatpush1.msra.mxu0 0.0
    %2153 = vmatprep.mubr.f32.mxu0 0.0
    %2154 = vmatmul.mubr.f32.gmra.mrb[0].mxu0 %v2087
    %v2155 = vpop.f32.mrb[0].mxu0
    %v2156 = vadd.f32 0.0, %v2155
    %v2157 = vpop.f32.mrb[0].mxu0
    %2158 = vdwg.mxu0
    %2159 = vrot.lane.b32.xlu0 %v1987, 120
    %v2160 = vpop.permute.xlu0 %2159
    %2161 = vrot.lane.b32.xlu0 %v1987, 88
    %v2162 = vpop.permute.xlu0 %2161
    %v2163 = vsel %vm177, %v2160, 0
    %v2165 = vsel %vm177, %v2162, 0
    %2167 = vmatprep.subr.mxu0 0.0
    %2168 = vmatpush1.xpose.msra.mxu0 %v2165
    %2169 = vmatprep.subr.mxu0 0.0
    %2170 = vmatpush1.xpose.msra.mxu0 0.0
    %2171 = vmatprep.subr.mxu0 0.0
    %2172 = vmatpush1.xpose.msra.mxu0 0.0
    %2173 = vmatprep.subr.mxu0 0.0
    %2174 = vmatpush1.xpose.msra.mxu0 0.0
    %2175 = vmatprep.subr.mxu0 0.0
    %2176 = vmatpush1.xpose.msra.mxu0 0.0
    %2177 = vmatprep.subr.mxu0 0.0
    %2178 = vmatpush1.xpose.msra.mxu0 0.0
    %2179 = vmatprep.subr.mxu0 0.0
    %2180 = vmatpush1.xpose.msra.mxu0 0.0
    %2181 = vmatprep.subr.mxu0 0.0
    %2182 = vmatpush1.xpose.msra.mxu0 0.0
    %2183 = vmatprep.subr.mxu0 0.0
    %2184 = vmatpush1.xpose.msra.mxu0 0.0
    %2185 = vmatprep.subr.mxu0 0.0
    %2186 = vmatpush1.xpose.msra.mxu0 0.0
    %2187 = vmatprep.subr.mxu0 0.0
    %2188 = vmatpush1.xpose.msra.mxu0 0.0
    %2189 = vmatprep.subr.mxu0 0.0
    %2190 = vmatpush1.xpose.msra.mxu0 0.0
    %2191 = vmatprep.subr.mxu0 0.0
    %2192 = vmatpush1.xpose.msra.mxu0 0.0
    %2193 = vmatprep.subr.mxu0 0.0
    %2194 = vmatpush1.xpose.msra.mxu0 0.0
    %2195 = vmatprep.subr.mxu0 0.0
    %2196 = vmatpush1.xpose.msra.mxu0 0.0
    %2197 = vmatprep.subr.mxu0 0.0
    %2198 = vmatpush1.xpose.msra.mxu0 0.0
    %2199 = vmatprep.subr.mxu0 0.0
    %2200 = vmatpush1.xpose.msra.mxu0 0.0
    %2201 = vmatprep.subr.mxu0 0.0
    %2202 = vmatpush1.xpose.msra.mxu0 0.0
    %2203 = vmatprep.subr.mxu0 0.0
    %2204 = vmatpush1.xpose.msra.mxu0 0.0
    %2205 = vmatprep.subr.mxu0 0.0
    %2206 = vmatpush1.xpose.msra.mxu0 0.0
    %2207 = vmatprep.subr.mxu0 0.0
    %2208 = vmatpush1.xpose.msra.mxu0 0.0
    %2209 = vmatprep.subr.mxu0 0.0
    %2210 = vmatpush1.xpose.msra.mxu0 0.0
    %2211 = vmatprep.subr.mxu0 0.0
    %2212 = vmatpush1.xpose.msra.mxu0 0.0
    %2213 = vmatprep.subr.mxu0 0.0
    %2214 = vmatpush1.xpose.msra.mxu0 0.0
    %2215 = vmatprep.subr.mxu0 0.0
    %2216 = vmatpush1.xpose.msra.mxu0 0.0
    %2217 = vmatprep.subr.mxu0 0.0
    %2218 = vmatpush1.xpose.msra.mxu0 0.0
    %2219 = vmatprep.subr.mxu0 0.0
    %2220 = vmatpush1.xpose.msra.mxu0 0.0
    %2221 = vmatprep.subr.mxu0 0.0
    %2222 = vmatpush1.xpose.msra.mxu0 0.0
    %2223 = vmatprep.subr.mxu0 0.0
    %2224 = vmatpush1.xpose.msra.mxu0 0.0
    %2225 = vmatprep.subr.mxu0 0.0
    %2226 = vmatpush1.xpose.msra.mxu0 0.0
    %2227 = vmatprep.subr.mxu0 0.0
    %2228 = vmatpush1.xpose.msra.mxu0 0.0
    %2229 = vmatprep.subr.mxu0 0.0
    %2230 = vmatpush1.xpose.msra.mxu0 0.0
    %2231 = vmatprep.mubr.f32.mxu0 0.0
    %2232 = vmatmul.mubr.f32.gmra.mrb[0].mxu0 %v2163
    %v2233 = vpop.f32.mrb[0].mxu0
    %v2234 = vadd.f32 0.0, %v2233
    %v2235 = vpop.f32.mrb[0].mxu0
    %2236 = vdwg.mxu0
    %v2237 = vsel %vm177, %v2234, -inf
    %2238 = vmax.xlane.f32.xlu0 %v2237
    %v2239 = vpop.xlane.xlu0 %2238
    %v2240 = vsub.f32 %v2234, %v2239
    %v2241 = vmul.f32 %v2240, 1.442695
    %v2242 = vpow.pop %v2241
    %v2243 = vsel %vm177, %v2242, 0.0
    %2244 = vadd.xlane.f32.xlu0 %v2243
    %v2245 = vpop.xlane.xlu0 %2244
    %v2246 = vrcp.pop %v2245
    %v2247 = vmul.f32 %v2242, %v2246
    %2248 = vrot.lane.b32.xlu0 %v1987, 56
    %v2249 = vpop.permute.xlu0 %2248
    %v2252 = vsel %vm177, %v2247, 0
    %2254 = vmatprep.subr.mxu0 0.0
    %2255 = vmatpush1.msra.mxu0 %v2249
    %2256 = vmatprep.subr.mxu0 0.0
    %2257 = vmatpush1.msra.mxu0 0.0
    %2258 = vmatprep.subr.mxu0 0.0
    %2259 = vmatpush1.msra.mxu0 0.0
    %2260 = vmatprep.subr.mxu0 0.0
    %2261 = vmatpush1.msra.mxu0 0.0
    %2262 = vmatprep.subr.mxu0 0.0
    %2263 = vmatpush1.msra.mxu0 0.0
    %2264 = vmatprep.subr.mxu0 0.0
    %2265 = vmatpush1.msra.mxu0 0.0
    %2266 = vmatprep.subr.mxu0 0.0
    %2267 = vmatpush1.msra.mxu0 0.0
    %2268 = vmatprep.subr.mxu0 0.0
    %2269 = vmatpush1.msra.mxu0 0.0
    %2270 = vmatprep.subr.mxu0 0.0
    %2271 = vmatpush1.msra.mxu0 0.0
    %2272 = vmatprep.subr.mxu0 0.0
    %2273 = vmatpush1.msra.mxu0 0.0
    %2274 = vmatprep.subr.mxu0 0.0
    %2275 = vmatpush1.msra.mxu0 0.0
    %2276 = vmatprep.subr.mxu0 0.0
    %2277 = vmatpush1.msra.mxu0 0.0
    %2278 = vmatprep.subr.mxu0 0.0
    %2279 = vmatpush1.msra.mxu0 0.0
    %2280 = vmatprep.subr.mxu0 0.0
    %2281 = vmatpush1.msra.mxu0 0.0
    %2282 = vmatprep.subr.mxu0 0.0
    %2283 = vmatpush1.msra.mxu0 0.0
    %2284 = vmatprep.subr.mxu0 0.0
    %2285 = vmatpush1.msra.mxu0 0.0
    %2286 = vmatprep.subr.mxu0 0.0
    %2287 = vmatpush1.msra.mxu0 0.0
    %2288 = vmatprep.subr.mxu0 0.0
    %2289 = vmatpush1.msra.mxu0 0.0
    %2290 = vmatprep.subr.mxu0 0.0
    %2291 = vmatpush1.msra.mxu0 0.0
    %2292 = vmatprep.subr.mxu0 0.0
    %2293 = vmatpush1.msra.mxu0 0.0
    %2294 = vmatprep.subr.mxu0 0.0
    %2295 = vmatpush1.msra.mxu0 0.0
    %2296 = vmatprep.subr.mxu0 0.0
    %2297 = vmatpush1.msra.mxu0 0.0
    %2298 = vmatprep.subr.mxu0 0.0
    %2299 = vmatpush1.msra.mxu0 0.0
    %2300 = vmatprep.subr.mxu0 0.0
    %2301 = vmatpush1.msra.mxu0 0.0
    %2302 = vmatprep.subr.mxu0 0.0
    %2303 = vmatpush1.msra.mxu0 0.0
    %2304 = vmatprep.subr.mxu0 0.0
    %2305 = vmatpush1.msra.mxu0 0.0
    %2306 = vmatprep.subr.mxu0 0.0
    %2307 = vmatpush1.msra.mxu0 0.0
    %2308 = vmatprep.subr.mxu0 0.0
    %2309 = vmatpush1.msra.mxu0 0.0
    %2310 = vmatprep.subr.mxu0 0.0
    %2311 = vmatpush1.msra.mxu0 0.0
    %2312 = vmatprep.subr.mxu0 0.0
    %2313 = vmatpush1.msra.mxu0 0.0
    %2314 = vmatprep.subr.mxu0 0.0
    %2315 = vmatpush1.msra.mxu0 0.0
    %2316 = vmatprep.subr.mxu0 0.0
    %2317 = vmatpush1.msra.mxu0 0.0
    %2318 = vmatprep.mubr.f32.mxu0 0.0
    %2319 = vmatmul.mubr.f32.gmra.mrb[0].mxu0 %v2252
    %v2320 = vpop.f32.mrb[0].mxu0
    %v2321 = vadd.f32 0.0, %v2320
    %v2322 = vpop.f32.mrb[0].mxu0
    %2323 = vdwg.mxu0
    %2324 = vrot.lane.b32.xlu0 %v1987, 112
    %v2325 = vpop.permute.xlu0 %2324
    %2326 = vrot.lane.b32.xlu0 %v1987, 80
    %v2327 = vpop.permute.xlu0 %2326
    %v2328 = vsel %vm177, %v2325, 0
    %v2330 = vsel %vm177, %v2327, 0
    %2332 = vmatprep.subr.mxu0 0.0
    %2333 = vmatpush1.xpose.msra.mxu0 %v2330
    %2334 = vmatprep.subr.mxu0 0.0
    %2335 = vmatpush1.xpose.msra.mxu0 0.0
    %2336 = vmatprep.subr.mxu0 0.0
    %2337 = vmatpush1.xpose.msra.mxu0 0.0
    %2338 = vmatprep.subr.mxu0 0.0
    %2339 = vmatpush1.xpose.msra.mxu0 0.0
    %2340 = vmatprep.subr.mxu0 0.0
    %2341 = vmatpush1.xpose.msra.mxu0 0.0
    %2342 = vmatprep.subr.mxu0 0.0
    %2343 = vmatpush1.xpose.msra.mxu0 0.0
    %2344 = vmatprep.subr.mxu0 0.0
    %2345 = vmatpush1.xpose.msra.mxu0 0.0
    %2346 = vmatprep.subr.mxu0 0.0
    %2347 = vmatpush1.xpose.msra.mxu0 0.0
    %2348 = vmatprep.subr.mxu0 0.0
    %2349 = vmatpush1.xpose.msra.mxu0 0.0
    %2350 = vmatprep.subr.mxu0 0.0
    %2351 = vmatpush1.xpose.msra.mxu0 0.0
    %2352 = vmatprep.subr.mxu0 0.0
    %2353 = vmatpush1.xpose.msra.mxu0 0.0
    %2354 = vmatprep.subr.mxu0 0.0
    %2355 = vmatpush1.xpose.msra.mxu0 0.0
    %2356 = vmatprep.subr.mxu0 0.0
    %2357 = vmatpush1.xpose.msra.mxu0 0.0
    %2358 = vmatprep.subr.mxu0 0.0
    %2359 = vmatpush1.xpose.msra.mxu0 0.0
    %2360 = vmatprep.subr.mxu0 0.0
    %2361 = vmatpush1.xpose.msra.mxu0 0.0
    %2362 = vmatprep.subr.mxu0 0.0
    %2363 = vmatpush1.xpose.msra.mxu0 0.0
    %2364 = vmatprep.subr.mxu0 0.0
    %2365 = vmatpush1.xpose.msra.mxu0 0.0
    %2366 = vmatprep.subr.mxu0 0.0
    %2367 = vmatpush1.xpose.msra.mxu0 0.0
    %2368 = vmatprep.subr.mxu0 0.0
    %2369 = vmatpush1.xpose.msra.mxu0 0.0
    %2370 = vmatprep.subr.mxu0 0.0
    %2371 = vmatpush1.xpose.msra.mxu0 0.0
    %2372 = vmatprep.subr.mxu0 0.0
    %2373 = vmatpush1.xpose.msra.mxu0 0.0
    %2374 = vmatprep.subr.mxu0 0.0
    %2375 = vmatpush1.xpose.msra.mxu0 0.0
    %2376 = vmatprep.subr.mxu0 0.0
    %2377 = vmatpush1.xpose.msra.mxu0 0.0
    %2378 = vmatprep.subr.mxu0 0.0
    %2379 = vmatpush1.xpose.msra.mxu0 0.0
    %2380 = vmatprep.subr.mxu0 0.0
    %2381 = vmatpush1.xpose.msra.mxu0 0.0
    %2382 = vmatprep.subr.mxu0 0.0
    %2383 = vmatpush1.xpose.msra.mxu0 0.0
    %2384 = vmatprep.subr.mxu0 0.0
    %2385 = vmatpush1.xpose.msra.mxu0 0.0
    %2386 = vmatprep.subr.mxu0 0.0
    %2387 = vmatpush1.xpose.msra.mxu0 0.0
    %2388 = vmatprep.subr.mxu0 0.0
    %2389 = vmatpush1.xpose.msra.mxu0 0.0
    %2390 = vmatprep.subr.mxu0 0.0
    %2391 = vmatpush1.xpose.msra.mxu0 0.0
    %2392 = vmatprep.subr.mxu0 0.0
    %2393 = vmatpush1.xpose.msra.mxu0 0.0
    %2394 = vmatprep.subr.mxu0 0.0
    %2395 = vmatpush1.xpose.msra.mxu0 0.0
    %2396 = vmatprep.mubr.f32.mxu0 0.0
    %2397 = vmatmul.mubr.f32.gmra.mrb[0].mxu0 %v2328
    %v2398 = vpop.f32.mrb[0].mxu0
    %v2399 = vadd.f32 0.0, %v2398
    %v2400 = vpop.f32.mrb[0].mxu0
    %2401 = vdwg.mxu0
    %v2402 = vsel %vm177, %v2399, -inf
    %2403 = vmax.xlane.f32.xlu0 %v2402
    %v2404 = vpop.xlane.xlu0 %2403
    %v2405 = vsub.f32 %v2399, %v2404
    %v2406 = vmul.f32 %v2405, 1.442695
    %v2407 = vpow.pop %v2406
    %v2408 = vsel %vm177, %v2407, 0.0
    %2409 = vadd.xlane.f32.xlu0 %v2408
    %v2410 = vpop.xlane.xlu0 %2409
    %v2411 = vrcp.pop %v2410
    %v2412 = vmul.f32 %v2407, %v2411
    %2413 = vrot.lane.b32.xlu0 %v1987, 48
    %v2414 = vpop.permute.xlu0 %2413
    %v2417 = vsel %vm177, %v2412, 0
    %2419 = vmatprep.subr.mxu0 0.0
    %2420 = vmatpush1.msra.mxu0 %v2414
    %2421 = vmatprep.subr.mxu0 0.0
    %2422 = vmatpush1.msra.mxu0 0.0
    %2423 = vmatprep.subr.mxu0 0.0
    %2424 = vmatpush1.msra.mxu0 0.0
    %2425 = vmatprep.subr.mxu0 0.0
    %2426 = vmatpush1.msra.mxu0 0.0
    %2427 = vmatprep.subr.mxu0 0.0
    %2428 = vmatpush1.msra.mxu0 0.0
    %2429 = vmatprep.subr.mxu0 0.0
    %2430 = vmatpush1.msra.mxu0 0.0
    %2431 = vmatprep.subr.mxu0 0.0
    %2432 = vmatpush1.msra.mxu0 0.0
    %2433 = vmatprep.subr.mxu0 0.0
    %2434 = vmatpush1.msra.mxu0 0.0
    %2435 = vmatprep.subr.mxu0 0.0
    %2436 = vmatpush1.msra.mxu0 0.0
    %2437 = vmatprep.subr.mxu0 0.0
    %2438 = vmatpush1.msra.mxu0 0.0
    %2439 = vmatprep.subr.mxu0 0.0
    %2440 = vmatpush1.msra.mxu0 0.0
    %2441 = vmatprep.subr.mxu0 0.0
    %2442 = vmatpush1.msra.mxu0 0.0
    %2443 = vmatprep.subr.mxu0 0.0
    %2444 = vmatpush1.msra.mxu0 0.0
    %2445 = vmatprep.subr.mxu0 0.0
    %2446 = vmatpush1.msra.mxu0 0.0
    %2447 = vmatprep.subr.mxu0 0.0
    %2448 = vmatpush1.msra.mxu0 0.0
    %2449 = vmatprep.subr.mxu0 0.0
    %2450 = vmatpush1.msra.mxu0 0.0
    %2451 = vmatprep.subr.mxu0 0.0
    %2452 = vmatpush1.msra.mxu0 0.0
    %2453 = vmatprep.subr.mxu0 0.0
    %2454 = vmatpush1.msra.mxu0 0.0
    %2455 = vmatprep.subr.mxu0 0.0
    %2456 = vmatpush1.msra.mxu0 0.0
    %2457 = vmatprep.subr.mxu0 0.0
    %2458 = vmatpush1.msra.mxu0 0.0
    %2459 = vmatprep.subr.mxu0 0.0
    %2460 = vmatpush1.msra.mxu0 0.0
    %2461 = vmatprep.subr.mxu0 0.0
    %2462 = vmatpush1.msra.mxu0 0.0
    %2463 = vmatprep.subr.mxu0 0.0
    %2464 = vmatpush1.msra.mxu0 0.0
    %2465 = vmatprep.subr.mxu0 0.0
    %2466 = vmatpush1.msra.mxu0 0.0
    %2467 = vmatprep.subr.mxu0 0.0
    %2468 = vmatpush1.msra.mxu0 0.0
    %2469 = vmatprep.subr.mxu0 0.0
    %2470 = vmatpush1.msra.mxu0 0.0
    %2471 = vmatprep.subr.mxu0 0.0
    %2472 = vmatpush1.msra.mxu0 0.0
    %2473 = vmatprep.subr.mxu0 0.0
    %2474 = vmatpush1.msra.mxu0 0.0
    %2475 = vmatprep.subr.mxu0 0.0
    %2476 = vmatpush1.msra.mxu0 0.0
    %2477 = vmatprep.subr.mxu0 0.0
    %2478 = vmatpush1.msra.mxu0 0.0
    %2479 = vmatprep.subr.mxu0 0.0
    %2480 = vmatpush1.msra.mxu0 0.0
    %2481 = vmatprep.subr.mxu0 0.0
    %2482 = vmatpush1.msra.mxu0 0.0
    %2483 = vmatprep.mubr.f32.mxu0 0.0
    %2484 = vmatmul.mubr.f32.gmra.mrb[0].mxu0 %v2417
    %v2485 = vpop.f32.mrb[0].mxu0
    %v2486 = vadd.f32 0.0, %v2485
    %v2487 = vpop.f32.mrb[0].mxu0
    %2488 = vdwg.mxu0
    %2489 = vrot.lane.b32.xlu0 %v1987, 104
    %v2490 = vpop.permute.xlu0 %2489
    %2491 = vrot.lane.b32.xlu0 %v1987, 72
    %v2492 = vpop.permute.xlu0 %2491
    %v2493 = vsel %vm177, %v2490, 0
    %v2495 = vsel %vm177, %v2492, 0
    %2497 = vmatprep.subr.mxu0 0.0
    %2498 = vmatpush1.xpose.msra.mxu0 %v2495
    %2499 = vmatprep.subr.mxu0 0.0
    %2500 = vmatpush1.xpose.msra.mxu0 0.0
    %2501 = vmatprep.subr.mxu0 0.0
    %2502 = vmatpush1.xpose.msra.mxu0 0.0
    %2503 = vmatprep.subr.mxu0 0.0
    %2504 = vmatpush1.xpose.msra.mxu0 0.0
    %2505 = vmatprep.subr.mxu0 0.0
    %2506 = vmatpush1.xpose.msra.mxu0 0.0
    %2507 = vmatprep.subr.mxu0 0.0
    %2508 = vmatpush1.xpose.msra.mxu0 0.0
    %2509 = vmatprep.subr.mxu0 0.0
    %2510 = vmatpush1.xpose.msra.mxu0 0.0
    %2511 = vmatprep.subr.mxu0 0.0
    %2512 = vmatpush1.xpose.msra.mxu0 0.0
    %2513 = vmatprep.subr.mxu0 0.0
    %2514 = vmatpush1.xpose.msra.mxu0 0.0
    %2515 = vmatprep.subr.mxu0 0.0
    %2516 = vmatpush1.xpose.msra.mxu0 0.0
    %2517 = vmatprep.subr.mxu0 0.0
    %2518 = vmatpush1.xpose.msra.mxu0 0.0
    %2519 = vmatprep.subr.mxu0 0.0
    %2520 = vmatpush1.xpose.msra.mxu0 0.0
    %2521 = vmatprep.subr.mxu0 0.0
    %2522 = vmatpush1.xpose.msra.mxu0 0.0
    %2523 = vmatprep.subr.mxu0 0.0
    %2524 = vmatpush1.xpose.msra.mxu0 0.0
    %2525 = vmatprep.subr.mxu0 0.0
    %2526 = vmatpush1.xpose.msra.mxu0 0.0
    %2527 = vmatprep.subr.mxu0 0.0
    %2528 = vmatpush1.xpose.msra.mxu0 0.0
    %2529 = vmatprep.subr.mxu0 0.0
    %2530 = vmatpush1.xpose.msra.mxu0 0.0
    %2531 = vmatprep.subr.mxu0 0.0
    %2532 = vmatpush1.xpose.msra.mxu0 0.0
    %2533 = vmatprep.subr.mxu0 0.0
    %2534 = vmatpush1.xpose.msra.mxu0 0.0
    %2535 = vmatprep.subr.mxu0 0.0
    %2536 = vmatpush1.xpose.msra.mxu0 0.0
    %2537 = vmatprep.subr.mxu0 0.0
    %2538 = vmatpush1.xpose.msra.mxu0 0.0
    %2539 = vmatprep.subr.mxu0 0.0
    %2540 = vmatpush1.xpose.msra.mxu0 0.0
    %2541 = vmatprep.subr.mxu0 0.0
    %2542 = vmatpush1.xpose.msra.mxu0 0.0
    %2543 = vmatprep.subr.mxu0 0.0
    %2544 = vmatpush1.xpose.msra.mxu0 0.0
    %2545 = vmatprep.subr.mxu0 0.0
    %2546 = vmatpush1.xpose.msra.mxu0 0.0
    %2547 = vmatprep.subr.mxu0 0.0
    %2548 = vmatpush1.xpose.msra.mxu0 0.0
    %2549 = vmatprep.subr.mxu0 0.0
    %2550 = vmatpush1.xpose.msra.mxu0 0.0
    %2551 = vmatprep.subr.mxu0 0.0
    %2552 = vmatpush1.xpose.msra.mxu0 0.0
    %2553 = vmatprep.subr.mxu0 0.0
    %2554 = vmatpush1.xpose.msra.mxu0 0.0
    %2555 = vmatprep.subr.mxu0 0.0
    %2556 = vmatpush1.xpose.msra.mxu0 0.0
    %2557 = vmatprep.subr.mxu0 0.0
    %2558 = vmatpush1.xpose.msra.mxu0 0.0
    %2559 = vmatprep.subr.mxu0 0.0
    %2560 = vmatpush1.xpose.msra.mxu0 0.0
    %2561 = vmatprep.mubr.f32.mxu0 0.0
    %2562 = vmatmul.mubr.f32.gmra.mrb[0].mxu0 %v2493
    %v2563 = vpop.f32.mrb[0].mxu0
    %v2564 = vadd.f32 0.0, %v2563
    %v2565 = vpop.f32.mrb[0].mxu0
    %2566 = vdwg.mxu0
    %v2567 = vsel %vm177, %v2564, -inf
    %2568 = vmax.xlane.f32.xlu0 %v2567
    %v2569 = vpop.xlane.xlu0 %2568
    %v2570 = vsub.f32 %v2564, %v2569
    %v2571 = vmul.f32 %v2570, 1.442695
    %v2572 = vpow.pop %v2571
    %v2573 = vsel %vm177, %v2572, 0.0
    %2574 = vadd.xlane.f32.xlu0 %v2573
    %v2575 = vpop.xlane.xlu0 %2574
    %v2576 = vrcp.pop %v2575
    %v2577 = vmul.f32 %v2572, %v2576
    %2578 = vrot.lane.b32.xlu0 %v1987, 40
    %v2579 = vpop.permute.xlu0 %2578
    %v2582 = vsel %vm177, %v2577, 0
    %2584 = vmatprep.subr.mxu0 0.0
    %2585 = vmatpush1.msra.mxu0 %v2579
    %2586 = vmatprep.subr.mxu0 0.0
    %2587 = vmatpush1.msra.mxu0 0.0
    %2588 = vmatprep.subr.mxu0 0.0
    %2589 = vmatpush1.msra.mxu0 0.0
    %2590 = vmatprep.subr.mxu0 0.0
    %2591 = vmatpush1.msra.mxu0 0.0
    %2592 = vmatprep.subr.mxu0 0.0
    %2593 = vmatpush1.msra.mxu0 0.0
    %2594 = vmatprep.subr.mxu0 0.0
    %2595 = vmatpush1.msra.mxu0 0.0
    %2596 = vmatprep.subr.mxu0 0.0
    %2597 = vmatpush1.msra.mxu0 0.0
    %2598 = vmatprep.subr.mxu0 0.0
    %2599 = vmatpush1.msra.mxu0 0.0
    %2600 = vmatprep.subr.mxu0 0.0
    %2601 = vmatpush1.msra.mxu0 0.0
    %2602 = vmatprep.subr.mxu0 0.0
    %2603 = vmatpush1.msra.mxu0 0.0
    %2604 = vmatprep.subr.mxu0 0.0
    %2605 = vmatpush1.msra.mxu0 0.0
    %2606 = vmatprep.subr.mxu0 0.0
    %2607 = vmatpush1.msra.mxu0 0.0
    %2608 = vmatprep.subr.mxu0 0.0
    %2609 = vmatpush1.msra.mxu0 0.0
    %2610 = vmatprep.subr.mxu0 0.0
    %2611 = vmatpush1.msra.mxu0 0.0
    %2612 = vmatprep.subr.mxu0 0.0
    %2613 = vmatpush1.msra.mxu0 0.0
    %2614 = vmatprep.subr.mxu0 0.0
    %2615 = vmatpush1.msra.mxu0 0.0
    %2616 = vmatprep.subr.mxu0 0.0
    %2617 = vmatpush1.msra.mxu0 0.0
    %2618 = vmatprep.subr.mxu0 0.0
    %2619 = vmatpush1.msra.mxu0 0.0
    %2620 = vmatprep.subr.mxu0 0.0
    %2621 = vmatpush1.msra.mxu0 0.0
    %2622 = vmatprep.subr.mxu0 0.0
    %2623 = vmatpush1.msra.mxu0 0.0
    %2624 = vmatprep.subr.mxu0 0.0
    %2625 = vmatpush1.msra.mxu0 0.0
    %2626 = vmatprep.subr.mxu0 0.0
    %2627 = vmatpush1.msra.mxu0 0.0
    %2628 = vmatprep.subr.mxu0 0.0
    %2629 = vmatpush1.msra.mxu0 0.0
    %2630 = vmatprep.subr.mxu0 0.0
    %2631 = vmatpush1.msra.mxu0 0.0
    %2632 = vmatprep.subr.mxu0 0.0
    %2633 = vmatpush1.msra.mxu0 0.0
    %2634 = vmatprep.subr.mxu0 0.0
    %2635 = vmatpush1.msra.mxu0 0.0
    %2636 = vmatprep.subr.mxu0 0.0
    %2637 = vmatpush1.msra.mxu0 0.0
    %2638 = vmatprep.subr.mxu0 0.0
    %2639 = vmatpush1.msra.mxu0 0.0
    %2640 = vmatprep.subr.mxu0 0.0
    %2641 = vmatpush1.msra.mxu0 0.0
    %2642 = vmatprep.subr.mxu0 0.0
    %2643 = vmatpush1.msra.mxu0 0.0
    %2644 = vmatprep.subr.mxu0 0.0
    %2645 = vmatpush1.msra.mxu0 0.0
    %2646 = vmatprep.subr.mxu0 0.0
    %2647 = vmatpush1.msra.mxu0 0.0
    %2648 = vmatprep.mubr.f32.mxu0 0.0
    %2649 = vmatmul.mubr.f32.gmra.mrb[0].mxu0 %v2582
    %v2650 = vpop.f32.mrb[0].mxu0
    %v2651 = vadd.f32 0.0, %v2650
    %v2652 = vpop.f32.mrb[0].mxu0
    %2653 = vdwg.mxu0
    %2655 = vrot.lane.b32.xlu0 %v2321, 8
    %v2656 = vpop.permute.xlu0 %2655
    %2659 = vrot.lane.b32.xlu0 %v2486, 16
    %v2660 = vpop.permute.xlu0 %2659
    %2663 = vrot.lane.b32.xlu0 %v2651, 24
    %v2664 = vpop.permute.xlu0 %2663
    %v2666 = vsel %vm177, %v2156, %v2656
    %v2667 = vsel %vm847, %v2666, %v2660
    %v2668 = vsel %vm849, %v2667, %v2664
    %2670 = vrot.lane.b32.xlu0 %v1992, 96
    %v2671 = vpop.permute.xlu0 %2670
    %v2672 = vsel %vm177, %v1992, 0
    %v2674 = vsel %vm177, %v2671, 0
    %2676 = vmatprep.subr.mxu0 0.0
    %2677 = vmatpush1.xpose.msra.mxu0 %v2674
    %2678 = vmatprep.subr.mxu0 0.0
    %2679 = vmatpush1.xpose.msra.mxu0 0.0
    %2680 = vmatprep.subr.mxu0 0.0
    %2681 = vmatpush1.xpose.msra.mxu0 0.0
    %2682 = vmatprep.subr.mxu0 0.0
    %2683 = vmatpush1.xpose.msra.mxu0 0.0
    %2684 = vmatprep.subr.mxu0 0.0
    %2685 = vmatpush1.xpose.msra.mxu0 0.0
    %2686 = vmatprep.subr.mxu0 0.0
    %2687 = vmatpush1.xpose.msra.mxu0 0.0
    %2688 = vmatprep.subr.mxu0 0.0
    %2689 = vmatpush1.xpose.msra.mxu0 0.0
    %2690 = vmatprep.subr.mxu0 0.0
    %2691 = vmatpush1.xpose.msra.mxu0 0.0
    %2692 = vmatprep.subr.mxu0 0.0
    %2693 = vmatpush1.xpose.msra.mxu0 0.0
    %2694 = vmatprep.subr.mxu0 0.0
    %2695 = vmatpush1.xpose.msra.mxu0 0.0
    %2696 = vmatprep.subr.mxu0 0.0
    %2697 = vmatpush1.xpose.msra.mxu0 0.0
    %2698 = vmatprep.subr.mxu0 0.0
    %2699 = vmatpush1.xpose.msra.mxu0 0.0
    %2700 = vmatprep.subr.mxu0 0.0
    %2701 = vmatpush1.xpose.msra.mxu0 0.0
    %2702 = vmatprep.subr.mxu0 0.0
    %2703 = vmatpush1.xpose.msra.mxu0 0.0
    %2704 = vmatprep.subr.mxu0 0.0
    %2705 = vmatpush1.xpose.msra.mxu0 0.0
    %2706 = vmatprep.subr.mxu0 0.0
    %2707 = vmatpush1.xpose.msra.mxu0 0.0
    %2708 = vmatprep.subr.mxu0 0.0
    %2709 = vmatpush1.xpose.msra.mxu0 0.0
    %2710 = vmatprep.subr.mxu0 0.0
    %2711 = vmatpush1.xpose.msra.mxu0 0.0
    %2712 = vmatprep.subr.mxu0 0.0
    %2713 = vmatpush1.xpose.msra.mxu0 0.0
    %2714 = vmatprep.subr.mxu0 0.0
    %2715 = vmatpush1.xpose.msra.mxu0 0.0
    %2716 = vmatprep.subr.mxu0 0.0
    %2717 = vmatpush1.xpose.msra.mxu0 0.0
    %2718 = vmatprep.subr.mxu0 0.0
    %2719 = vmatpush1.xpose.msra.mxu0 0.0
    %2720 = vmatprep.subr.mxu0 0.0
    %2721 = vmatpush1.xpose.msra.mxu0 0.0
    %2722 = vmatprep.subr.mxu0 0.0
    %2723 = vmatpush1.xpose.msra.mxu0 0.0
    %2724 = vmatprep.subr.mxu0 0.0
    %2725 = vmatpush1.xpose.msra.mxu0 0.0
    %2726 = vmatprep.subr.mxu0 0.0
    %2727 = vmatpush1.xpose.msra.mxu0 0.0
    %2728 = vmatprep.subr.mxu0 0.0
    %2729 = vmatpush1.xpose.msra.mxu0 0.0
    %2730 = vmatprep.subr.mxu0 0.0
    %2731 = vmatpush1.xpose.msra.mxu0 0.0
    %2732 = vmatprep.subr.mxu0 0.0
    %2733 = vmatpush1.xpose.msra.mxu0 0.0
    %2734 = vmatprep.subr.mxu0 0.0
    %2735 = vmatpush1.xpose.msra.mxu0 0.0
    %2736 = vmatprep.subr.mxu0 0.0
    %2737 = vmatpush1.xpose.msra.mxu0 0.0
    %2738 = vmatprep.subr.mxu0 0.0
    %2739 = vmatpush1.xpose.msra.mxu0 0.0
    %2740 = vmatprep.mubr.f32.mxu0 0.0
    %2741 = vmatmul.mubr.f32.gmra.mrb[0].mxu0 %v2672
    %v2742 = vpop.f32.mrb[0].mxu0
    %v2743 = vadd.f32 0.0, %v2742
    %v2744 = vpop.f32.mrb[0].mxu0
    %2745 = vdwg.mxu0
    %v2746 = vsel %vm177, %v2743, -inf
    %2747 = vmax.xlane.f32.xlu0 %v2746
    %v2748 = vpop.xlane.xlu0 %2747
    %v2749 = vsub.f32 %v2743, %v2748
    %v2750 = vmul.f32 %v2749, 1.442695
    %v2751 = vpow.pop %v2750
    %v2752 = vsel %vm177, %v2751, 0.0
    %2753 = vadd.xlane.f32.xlu0 %v2752
    %v2754 = vpop.xlane.xlu0 %2753
    %v2755 = vrcp.pop %v2754
    %v2756 = vmul.f32 %v2751, %v2755
    %2757 = vrot.lane.b32.xlu0 %v1992, 64
    %v2758 = vpop.permute.xlu0 %2757
    %v2761 = vsel %vm177, %v2756, 0
    %2763 = vmatprep.subr.mxu0 0.0
    %2764 = vmatpush1.msra.mxu0 %v2758
    %2765 = vmatprep.subr.mxu0 0.0
    %2766 = vmatpush1.msra.mxu0 0.0
    %2767 = vmatprep.subr.mxu0 0.0
    %2768 = vmatpush1.msra.mxu0 0.0
    %2769 = vmatprep.subr.mxu0 0.0
    %2770 = vmatpush1.msra.mxu0 0.0
    %2771 = vmatprep.subr.mxu0 0.0
    %2772 = vmatpush1.msra.mxu0 0.0
    %2773 = vmatprep.subr.mxu0 0.0
    %2774 = vmatpush1.msra.mxu0 0.0
    %2775 = vmatprep.subr.mxu0 0.0
    %2776 = vmatpush1.msra.mxu0 0.0
    %2777 = vmatprep.subr.mxu0 0.0
    %2778 = vmatpush1.msra.mxu0 0.0
    %2779 = vmatprep.subr.mxu0 0.0
    %2780 = vmatpush1.msra.mxu0 0.0
    %2781 = vmatprep.subr.mxu0 0.0
    %2782 = vmatpush1.msra.mxu0 0.0
    %2783 = vmatprep.subr.mxu0 0.0
    %2784 = vmatpush1.msra.mxu0 0.0
    %2785 = vmatprep.subr.mxu0 0.0
    %2786 = vmatpush1.msra.mxu0 0.0
    %2787 = vmatprep.subr.mxu0 0.0
    %2788 = vmatpush1.msra.mxu0 0.0
    %2789 = vmatprep.subr.mxu0 0.0
    %2790 = vmatpush1.msra.mxu0 0.0
    %2791 = vmatprep.subr.mxu0 0.0
    %2792 = vmatpush1.msra.mxu0 0.0
    %2793 = vmatprep.subr.mxu0 0.0
    %2794 = vmatpush1.msra.mxu0 0.0
    %2795 = vmatprep.subr.mxu0 0.0
    %2796 = vmatpush1.msra.mxu0 0.0
    %2797 = vmatprep.subr.mxu0 0.0
    %2798 = vmatpush1.msra.mxu0 0.0
    %2799 = vmatprep.subr.mxu0 0.0
    %2800 = vmatpush1.msra.mxu0 0.0
    %2801 = vmatprep.subr.mxu0 0.0
    %2802 = vmatpush1.msra.mxu0 0.0
    %2803 = vmatprep.subr.mxu0 0.0
    %2804 = vmatpush1.msra.mxu0 0.0
    %2805 = vmatprep.subr.mxu0 0.0
    %2806 = vmatpush1.msra.mxu0 0.0
    %2807 = vmatprep.subr.mxu0 0.0
    %2808 = vmatpush1.msra.mxu0 0.0
    %2809 = vmatprep.subr.mxu0 0.0
    %2810 = vmatpush1.msra.mxu0 0.0
    %2811 = vmatprep.subr.mxu0 0.0
    %2812 = vmatpush1.msra.mxu0 0.0
    %2813 = vmatprep.subr.mxu0 0.0
    %2814 = vmatpush1.msra.mxu0 0.0
    %2815 = vmatprep.subr.mxu0 0.0
    %2816 = vmatpush1.msra.mxu0 0.0
    %2817 = vmatprep.subr.mxu0 0.0
    %2818 = vmatpush1.msra.mxu0 0.0
    %2819 = vmatprep.subr.mxu0 0.0
    %2820 = vmatpush1.msra.mxu0 0.0
    %2821 = vmatprep.subr.mxu0 0.0
    %2822 = vmatpush1.msra.mxu0 0.0
    %2823 = vmatprep.subr.mxu0 0.0
    %2824 = vmatpush1.msra.mxu0 0.0
    %2825 = vmatprep.subr.mxu0 0.0
    %2826 = vmatpush1.msra.mxu0 0.0
    %2827 = vmatprep.mubr.f32.mxu0 0.0
    %2828 = vmatmul.mubr.f32.gmra.mrb[0].mxu0 %v2761
    %v2829 = vpop.f32.mrb[0].mxu0
    %v2830 = vadd.f32 0.0, %v2829
    %v2831 = vpop.f32.mrb[0].mxu0
    %2832 = vdwg.mxu0
    %2833 = vrot.lane.b32.xlu0 %v1992, 120
    %v2834 = vpop.permute.xlu0 %2833
    %2835 = vrot.lane.b32.xlu0 %v1992, 88
    %v2836 = vpop.permute.xlu0 %2835
    %v2837 = vsel %vm177, %v2834, 0
    %v2839 = vsel %vm177, %v2836, 0
    %2841 = vmatprep.subr.mxu0 0.0
    %2842 = vmatpush1.xpose.msra.mxu0 %v2839
    %2843 = vmatprep.subr.mxu0 0.0
    %2844 = vmatpush1.xpose.msra.mxu0 0.0
    %2845 = vmatprep.subr.mxu0 0.0
    %2846 = vmatpush1.xpose.msra.mxu0 0.0
    %2847 = vmatprep.subr.mxu0 0.0
    %2848 = vmatpush1.xpose.msra.mxu0 0.0
    %2849 = vmatprep.subr.mxu0 0.0
    %2850 = vmatpush1.xpose.msra.mxu0 0.0
    %2851 = vmatprep.subr.mxu0 0.0
    %2852 = vmatpush1.xpose.msra.mxu0 0.0
    %2853 = vmatprep.subr.mxu0 0.0
    %2854 = vmatpush1.xpose.msra.mxu0 0.0
    %2855 = vmatprep.subr.mxu0 0.0
    %2856 = vmatpush1.xpose.msra.mxu0 0.0
    %2857 = vmatprep.subr.mxu0 0.0
    %2858 = vmatpush1.xpose.msra.mxu0 0.0
    %2859 = vmatprep.subr.mxu0 0.0
    %2860 = vmatpush1.xpose.msra.mxu0 0.0
    %2861 = vmatprep.subr.mxu0 0.0
    %2862 = vmatpush1.xpose.msra.mxu0 0.0
    %2863 = vmatprep.subr.mxu0 0.0
    %2864 = vmatpush1.xpose.msra.mxu0 0.0
    %2865 = vmatprep.subr.mxu0 0.0
    %2866 = vmatpush1.xpose.msra.mxu0 0.0
    %2867 = vmatprep.subr.mxu0 0.0
    %2868 = vmatpush1.xpose.msra.mxu0 0.0
    %2869 = vmatprep.subr.mxu0 0.0
    %2870 = vmatpush1.xpose.msra.mxu0 0.0
    %2871 = vmatprep.subr.mxu0 0.0
    %2872 = vmatpush1.xpose.msra.mxu0 0.0
    %2873 = vmatprep.subr.mxu0 0.0
    %2874 = vmatpush1.xpose.msra.mxu0 0.0
    %2875 = vmatprep.subr.mxu0 0.0
    %2876 = vmatpush1.xpose.msra.mxu0 0.0
    %2877 = vmatprep.subr.mxu0 0.0
    %2878 = vmatpush1.xpose.msra.mxu0 0.0
    %2879 = vmatprep.subr.mxu0 0.0
    %2880 = vmatpush1.xpose.msra.mxu0 0.0
    %2881 = vmatprep.subr.mxu0 0.0
    %2882 = vmatpush1.xpose.msra.mxu0 0.0
    %2883 = vmatprep.subr.mxu0 0.0
    %2884 = vmatpush1.xpose.msra.mxu0 0.0
    %2885 = vmatprep.subr.mxu0 0.0
    %2886 = vmatpush1.xpose.msra.mxu0 0.0
    %2887 = vmatprep.subr.mxu0 0.0
    %2888 = vmatpush1.xpose.msra.mxu0 0.0
    %2889 = vmatprep.subr.mxu0 0.0
    %2890 = vmatpush1.xpose.msra.mxu0 0.0
    %2891 = vmatprep.subr.mxu0 0.0
    %2892 = vmatpush1.xpose.msra.mxu0 0.0
    %2893 = vmatprep.subr.mxu0 0.0
    %2894 = vmatpush1.xpose.msra.mxu0 0.0
    %2895 = vmatprep.subr.mxu0 0.0
    %2896 = vmatpush1.xpose.msra.mxu0 0.0
    %2897 = vmatprep.subr.mxu0 0.0
    %2898 = vmatpush1.xpose.msra.mxu0 0.0
    %2899 = vmatprep.subr.mxu0 0.0
    %2900 = vmatpush1.xpose.msra.mxu0 0.0
    %2901 = vmatprep.subr.mxu0 0.0
    %2902 = vmatpush1.xpose.msra.mxu0 0.0
    %2903 = vmatprep.subr.mxu0 0.0
    %2904 = vmatpush1.xpose.msra.mxu0 0.0
    %2905 = vmatprep.mubr.f32.mxu0 0.0
    %2906 = vmatmul.mubr.f32.gmra.mrb[0].mxu0 %v2837
    %v2907 = vpop.f32.mrb[0].mxu0
    %v2908 = vadd.f32 0.0, %v2907
    %v2909 = vpop.f32.mrb[0].mxu0
    %2910 = vdwg.mxu0
    %v2911 = vsel %vm177, %v2908, -inf
    %2912 = vmax.xlane.f32.xlu0 %v2911
    %v2913 = vpop.xlane.xlu0 %2912
    %v2914 = vsub.f32 %v2908, %v2913
    %v2915 = vmul.f32 %v2914, 1.442695
    %v2916 = vpow.pop %v2915
    %v2917 = vsel %vm177, %v2916, 0.0
    %2918 = vadd.xlane.f32.xlu0 %v2917
    %v2919 = vpop.xlane.xlu0 %2918
    %v2920 = vrcp.pop %v2919
    %v2921 = vmul.f32 %v2916, %v2920
    %2922 = vrot.lane.b32.xlu0 %v1992, 56
    %v2923 = vpop.permute.xlu0 %2922
    %v2926 = vsel %vm177, %v2921, 0
    %2928 = vmatprep.subr.mxu0 0.0
    %2929 = vmatpush1.msra.mxu0 %v2923
    %2930 = vmatprep.subr.mxu0 0.0
    %2931 = vmatpush1.msra.mxu0 0.0
    %2932 = vmatprep.subr.mxu0 0.0
    %2933 = vmatpush1.msra.mxu0 0.0
    %2934 = vmatprep.subr.mxu0 0.0
    %2935 = vmatpush1.msra.mxu0 0.0
    %2936 = vmatprep.subr.mxu0 0.0
    %2937 = vmatpush1.msra.mxu0 0.0
    %2938 = vmatprep.subr.mxu0 0.0
    %2939 = vmatpush1.msra.mxu0 0.0
    %2940 = vmatprep.subr.mxu0 0.0
    %2941 = vmatpush1.msra.mxu0 0.0
    %2942 = vmatprep.subr.mxu0 0.0
    %2943 = vmatpush1.msra.mxu0 0.0
    %2944 = vmatprep.subr.mxu0 0.0
    %2945 = vmatpush1.msra.mxu0 0.0
    %2946 = vmatprep.subr.mxu0 0.0
    %2947 = vmatpush1.msra.mxu0 0.0
    %2948 = vmatprep.subr.mxu0 0.0
    %2949 = vmatpush1.msra.mxu0 0.0
    %2950 = vmatprep.subr.mxu0 0.0
    %2951 = vmatpush1.msra.mxu0 0.0
    %2952 = vmatprep.subr.mxu0 0.0
    %2953 = vmatpush1.msra.mxu0 0.0
    %2954 = vmatprep.subr.mxu0 0.0
    %2955 = vmatpush1.msra.mxu0 0.0
    %2956 = vmatprep.subr.mxu0 0.0
    %2957 = vmatpush1.msra.mxu0 0.0
    %2958 = vmatprep.subr.mxu0 0.0
    %2959 = vmatpush1.msra.mxu0 0.0
    %2960 = vmatprep.subr.mxu0 0.0
    %2961 = vmatpush1.msra.mxu0 0.0
    %2962 = vmatprep.subr.mxu0 0.0
    %2963 = vmatpush1.msra.mxu0 0.0
    %2964 = vmatprep.subr.mxu0 0.0
    %2965 = vmatpush1.msra.mxu0 0.0
    %2966 = vmatprep.subr.mxu0 0.0
    %2967 = vmatpush1.msra.mxu0 0.0
    %2968 = vmatprep.subr.mxu0 0.0
    %2969 = vmatpush1.msra.mxu0 0.0
    %2970 = vmatprep.subr.mxu0 0.0
    %2971 = vmatpush1.msra.mxu0 0.0
    %2972 = vmatprep.subr.mxu0 0.0
    %2973 = vmatpush1.msra.mxu0 0.0
    %2974 = vmatprep.subr.mxu0 0.0
    %2975 = vmatpush1.msra.mxu0 0.0
    %2976 = vmatprep.subr.mxu0 0.0
    %2977 = vmatpush1.msra.mxu0 0.0
    %2978 = vmatprep.subr.mxu0 0.0
    %2979 = vmatpush1.msra.mxu0 0.0
    %2980 = vmatprep.subr.mxu0 0.0
    %2981 = vmatpush1.msra.mxu0 0.0
    %2982 = vmatprep.subr.mxu0 0.0
    %2983 = vmatpush1.msra.mxu0 0.0
    %2984 = vmatprep.subr.mxu0 0.0
    %2985 = vmatpush1.msra.mxu0 0.0
    %2986 = vmatprep.subr.mxu0 0.0
    %2987 = vmatpush1.msra.mxu0 0.0
    %2988 = vmatprep.subr.mxu0 0.0
    %2989 = vmatpush1.msra.mxu0 0.0
    %2990 = vmatprep.subr.mxu0 0.0
    %2991 = vmatpush1.msra.mxu0 0.0
    %2992 = vmatprep.mubr.f32.mxu0 0.0
    %2993 = vmatmul.mubr.f32.gmra.mrb[0].mxu0 %v2926
    %v2994 = vpop.f32.mrb[0].mxu0
    %v2995 = vadd.f32 0.0, %v2994
    %v2996 = vpop.f32.mrb[0].mxu0
    %2997 = vdwg.mxu0
    %2998 = vrot.lane.b32.xlu0 %v1992, 112
    %v2999 = vpop.permute.xlu0 %2998
    %3000 = vrot.lane.b32.xlu0 %v1992, 80
    %v3001 = vpop.permute.xlu0 %3000
    %v3002 = vsel %vm177, %v2999, 0
    %v3004 = vsel %vm177, %v3001, 0
    %3006 = vmatprep.subr.mxu0 0.0
    %3007 = vmatpush1.xpose.msra.mxu0 %v3004
    %3008 = vmatprep.subr.mxu0 0.0
    %3009 = vmatpush1.xpose.msra.mxu0 0.0
    %3010 = vmatprep.subr.mxu0 0.0
    %3011 = vmatpush1.xpose.msra.mxu0 0.0
    %3012 = vmatprep.subr.mxu0 0.0
    %3013 = vmatpush1.xpose.msra.mxu0 0.0
    %3014 = vmatprep.subr.mxu0 0.0
    %3015 = vmatpush1.xpose.msra.mxu0 0.0
    %3016 = vmatprep.subr.mxu0 0.0
    %3017 = vmatpush1.xpose.msra.mxu0 0.0
    %3018 = vmatprep.subr.mxu0 0.0
    %3019 = vmatpush1.xpose.msra.mxu0 0.0
    %3020 = vmatprep.subr.mxu0 0.0
    %3021 = vmatpush1.xpose.msra.mxu0 0.0
    %3022 = vmatprep.subr.mxu0 0.0
    %3023 = vmatpush1.xpose.msra.mxu0 0.0
    %3024 = vmatprep.subr.mxu0 0.0
    %3025 = vmatpush1.xpose.msra.mxu0 0.0
    %3026 = vmatprep.subr.mxu0 0.0
    %3027 = vmatpush1.xpose.msra.mxu0 0.0
    %3028 = vmatprep.subr.mxu0 0.0
    %3029 = vmatpush1.xpose.msra.mxu0 0.0
    %3030 = vmatprep.subr.mxu0 0.0
    %3031 = vmatpush1.xpose.msra.mxu0 0.0
    %3032 = vmatprep.subr.mxu0 0.0
    %3033 = vmatpush1.xpose.msra.mxu0 0.0
    %3034 = vmatprep.subr.mxu0 0.0
    %3035 = vmatpush1.xpose.msra.mxu0 0.0
    %3036 = vmatprep.subr.mxu0 0.0
    %3037 = vmatpush1.xpose.msra.mxu0 0.0
    %3038 = vmatprep.subr.mxu0 0.0
    %3039 = vmatpush1.xpose.msra.mxu0 0.0
    %3040 = vmatprep.subr.mxu0 0.0
    %3041 = vmatpush1.xpose.msra.mxu0 0.0
    %3042 = vmatprep.subr.mxu0 0.0
    %3043 = vmatpush1.xpose.msra.mxu0 0.0
    %3044 = vmatprep.subr.mxu0 0.0
    %3045 = vmatpush1.xpose.msra.mxu0 0.0
    %3046 = vmatprep.subr.mxu0 0.0
    %3047 = vmatpush1.xpose.msra.mxu0 0.0
    %3048 = vmatprep.subr.mxu0 0.0
    %3049 = vmatpush1.xpose.msra.mxu0 0.0
    %3050 = vmatprep.subr.mxu0 0.0
    %3051 = vmatpush1.xpose.msra.mxu0 0.0
    %3052 = vmatprep.subr.mxu0 0.0
    %3053 = vmatpush1.xpose.msra.mxu0 0.0
    %3054 = vmatprep.subr.mxu0 0.0
    %3055 = vmatpush1.xpose.msra.mxu0 0.0
    %3056 = vmatprep.subr.mxu0 0.0
    %3057 = vmatpush1.xpose.msra.mxu0 0.0
    %3058 = vmatprep.subr.mxu0 0.0
    %3059 = vmatpush1.xpose.msra.mxu0 0.0
    %3060 = vmatprep.subr.mxu0 0.0
    %3061 = vmatpush1.xpose.msra.mxu0 0.0
    %3062 = vmatprep.subr.mxu0 0.0
    %3063 = vmatpush1.xpose.msra.mxu0 0.0
    %3064 = vmatprep.subr.mxu0 0.0
    %3065 = vmatpush1.xpose.msra.mxu0 0.0
    %3066 = vmatprep.subr.mxu0 0.0
    %3067 = vmatpush1.xpose.msra.mxu0 0.0
    %3068 = vmatprep.subr.mxu0 0.0
    %3069 = vmatpush1.xpose.msra.mxu0 0.0
    %3070 = vmatprep.mubr.f32.mxu0 0.0
    %3071 = vmatmul.mubr.f32.gmra.mrb[0].mxu0 %v3002
    %v3072 = vpop.f32.mrb[0].mxu0
    %v3073 = vadd.f32 0.0, %v3072
    %v3074 = vpop.f32.mrb[0].mxu0
    %3075 = vdwg.mxu0
    %v3076 = vsel %vm177, %v3073, -inf
    %3077 = vmax.xlane.f32.xlu0 %v3076
    %v3078 = vpop.xlane.xlu0 %3077
    %v3079 = vsub.f32 %v3073, %v3078
    %v3080 = vmul.f32 %v3079, 1.442695
    %v3081 = vpow.pop %v3080
    %v3082 = vsel %vm177, %v3081, 0.0
    %3083 = vadd.xlane.f32.xlu0 %v3082
    %v3084 = vpop.xlane.xlu0 %3083
    %v3085 = vrcp.pop %v3084
    %v3086 = vmul.f32 %v3081, %v3085
    %3087 = vrot.lane.b32.xlu0 %v1992, 48
    %v3088 = vpop.permute.xlu0 %3087
    %v3091 = vsel %vm177, %v3086, 0
    %3093 = vmatprep.subr.mxu0 0.0
    %3094 = vmatpush1.msra.mxu0 %v3088
    %3095 = vmatprep.subr.mxu0 0.0
    %3096 = vmatpush1.msra.mxu0 0.0
    %3097 = vmatprep.subr.mxu0 0.0
    %3098 = vmatpush1.msra.mxu0 0.0
    %3099 = vmatprep.subr.mxu0 0.0
    %3100 = vmatpush1.msra.mxu0 0.0
    %3101 = vmatprep.subr.mxu0 0.0
    %3102 = vmatpush1.msra.mxu0 0.0
    %3103 = vmatprep.subr.mxu0 0.0
    %3104 = vmatpush1.msra.mxu0 0.0
    %3105 = vmatprep.subr.mxu0 0.0
    %3106 = vmatpush1.msra.mxu0 0.0
    %3107 = vmatprep.subr.mxu0 0.0
    %3108 = vmatpush1.msra.mxu0 0.0
    %3109 = vmatprep.subr.mxu0 0.0
    %3110 = vmatpush1.msra.mxu0 0.0
    %3111 = vmatprep.subr.mxu0 0.0
    %3112 = vmatpush1.msra.mxu0 0.0
    %3113 = vmatprep.subr.mxu0 0.0
    %3114 = vmatpush1.msra.mxu0 0.0
    %3115 = vmatprep.subr.mxu0 0.0
    %3116 = vmatpush1.msra.mxu0 0.0
    %3117 = vmatprep.subr.mxu0 0.0
    %3118 = vmatpush1.msra.mxu0 0.0
    %3119 = vmatprep.subr.mxu0 0.0
    %3120 = vmatpush1.msra.mxu0 0.0
    %3121 = vmatprep.subr.mxu0 0.0
    %3122 = vmatpush1.msra.mxu0 0.0
    %3123 = vmatprep.subr.mxu0 0.0
    %3124 = vmatpush1.msra.mxu0 0.0
    %3125 = vmatprep.subr.mxu0 0.0
    %3126 = vmatpush1.msra.mxu0 0.0
    %3127 = vmatprep.subr.mxu0 0.0
    %3128 = vmatpush1.msra.mxu0 0.0
    %3129 = vmatprep.subr.mxu0 0.0
    %3130 = vmatpush1.msra.mxu0 0.0
    %3131 = vmatprep.subr.mxu0 0.0
    %3132 = vmatpush1.msra.mxu0 0.0
    %3133 = vmatprep.subr.mxu0 0.0
    %3134 = vmatpush1.msra.mxu0 0.0
    %3135 = vmatprep.subr.mxu0 0.0
    %3136 = vmatpush1.msra.mxu0 0.0
    %3137 = vmatprep.subr.mxu0 0.0
    %3138 = vmatpush1.msra.mxu0 0.0
    %3139 = vmatprep.subr.mxu0 0.0
    %3140 = vmatpush1.msra.mxu0 0.0
    %3141 = vmatprep.subr.mxu0 0.0
    %3142 = vmatpush1.msra.mxu0 0.0
    %3143 = vmatprep.subr.mxu0 0.0
    %3144 = vmatpush1.msra.mxu0 0.0
    %3145 = vmatprep.subr.mxu0 0.0
    %3146 = vmatpush1.msra.mxu0 0.0
    %3147 = vmatprep.subr.mxu0 0.0
    %3148 = vmatpush1.msra.mxu0 0.0
    %3149 = vmatprep.subr.mxu0 0.0
    %3150 = vmatpush1.msra.mxu0 0.0
    %3151 = vmatprep.subr.mxu0 0.0
    %3152 = vmatpush1.msra.mxu0 0.0
    %3153 = vmatprep.subr.mxu0 0.0
    %3154 = vmatpush1.msra.mxu0 0.0
    %3155 = vmatprep.subr.mxu0 0.0
    %3156 = vmatpush1.msra.mxu0 0.0
    %3157 = vmatprep.mubr.f32.mxu0 0.0
    %3158 = vmatmul.mubr.f32.gmra.mrb[0].mxu0 %v3091
    %v3159 = vpop.f32.mrb[0].mxu0
    %v3160 = vadd.f32 0.0, %v3159
    %v3161 = vpop.f32.mrb[0].mxu0
    %3162 = vdwg.mxu0
    %3163 = vrot.lane.b32.xlu0 %v1992, 104
    %v3164 = vpop.permute.xlu0 %3163
    %3165 = vrot.lane.b32.xlu0 %v1992, 72
    %v3166 = vpop.permute.xlu0 %3165
    %v3167 = vsel %vm177, %v3164, 0
    %v3169 = vsel %vm177, %v3166, 0
    %3171 = vmatprep.subr.mxu0 0.0
    %3172 = vmatpush1.xpose.msra.mxu0 %v3169
    %3173 = vmatprep.subr.mxu0 0.0
    %3174 = vmatpush1.xpose.msra.mxu0 0.0
    %3175 = vmatprep.subr.mxu0 0.0
    %3176 = vmatpush1.xpose.msra.mxu0 0.0
    %3177 = vmatprep.subr.mxu0 0.0
    %3178 = vmatpush1.xpose.msra.mxu0 0.0
    %3179 = vmatprep.subr.mxu0 0.0
    %3180 = vmatpush1.xpose.msra.mxu0 0.0
    %3181 = vmatprep.subr.mxu0 0.0
    %3182 = vmatpush1.xpose.msra.mxu0 0.0
    %3183 = vmatprep.subr.mxu0 0.0
    %3184 = vmatpush1.xpose.msra.mxu0 0.0
    %3185 = vmatprep.subr.mxu0 0.0
    %3186 = vmatpush1.xpose.msra.mxu0 0.0
    %3187 = vmatprep.subr.mxu0 0.0
    %3188 = vmatpush1.xpose.msra.mxu0 0.0
    %3189 = vmatprep.subr.mxu0 0.0
    %3190 = vmatpush1.xpose.msra.mxu0 0.0
    %3191 = vmatprep.subr.mxu0 0.0
    %3192 = vmatpush1.xpose.msra.mxu0 0.0
    %3193 = vmatprep.subr.mxu0 0.0
    %3194 = vmatpush1.xpose.msra.mxu0 0.0
    %3195 = vmatprep.subr.mxu0 0.0
    %3196 = vmatpush1.xpose.msra.mxu0 0.0
    %3197 = vmatprep.subr.mxu0 0.0
    %3198 = vmatpush1.xpose.msra.mxu0 0.0
    %3199 = vmatprep.subr.mxu0 0.0
    %3200 = vmatpush1.xpose.msra.mxu0 0.0
    %3201 = vmatprep.subr.mxu0 0.0
    %3202 = vmatpush1.xpose.msra.mxu0 0.0
    %3203 = vmatprep.subr.mxu0 0.0
    %3204 = vmatpush1.xpose.msra.mxu0 0.0
    %3205 = vmatprep.subr.mxu0 0.0
    %3206 = vmatpush1.xpose.msra.mxu0 0.0
    %3207 = vmatprep.subr.mxu0 0.0
    %3208 = vmatpush1.xpose.msra.mxu0 0.0
    %3209 = vmatprep.subr.mxu0 0.0
    %3210 = vmatpush1.xpose.msra.mxu0 0.0
    %3211 = vmatprep.subr.mxu0 0.0
    %3212 = vmatpush1.xpose.msra.mxu0 0.0
    %3213 = vmatprep.subr.mxu0 0.0
    %3214 = vmatpush1.xpose.msra.mxu0 0.0
    %3215 = vmatprep.subr.mxu0 0.0
    %3216 = vmatpush1.xpose.msra.mxu0 0.0
    %3217 = vmatprep.subr.mxu0 0.0
    %3218 = vmatpush1.xpose.msra.mxu0 0.0
    %3219 = vmatprep.subr.mxu0 0.0
    %3220 = vmatpush1.xpose.msra.mxu0 0.0
    %3221 = vmatprep.subr.mxu0 0.0
    %3222 = vmatpush1.xpose.msra.mxu0 0.0
    %3223 = vmatprep.subr.mxu0 0.0
    %3224 = vmatpush1.xpose.msra.mxu0 0.0
    %3225 = vmatprep.subr.mxu0 0.0
    %3226 = vmatpush1.xpose.msra.mxu0 0.0
    %3227 = vmatprep.subr.mxu0 0.0
    %3228 = vmatpush1.xpose.msra.mxu0 0.0
    %3229 = vmatprep.subr.mxu0 0.0
    %3230 = vmatpush1.xpose.msra.mxu0 0.0
    %3231 = vmatprep.subr.mxu0 0.0
    %3232 = vmatpush1.xpose.msra.mxu0 0.0
    %3233 = vmatprep.subr.mxu0 0.0
    %3234 = vmatpush1.xpose.msra.mxu0 0.0
    %3235 = vmatprep.mubr.f32.mxu0 0.0
    %3236 = vmatmul.mubr.f32.gmra.mrb[0].mxu0 %v3167
    %v3237 = vpop.f32.mrb[0].mxu0
    %v3238 = vadd.f32 0.0, %v3237
    %v3239 = vpop.f32.mrb[0].mxu0
    %3240 = vdwg.mxu0
    %v3241 = vsel %vm177, %v3238, -inf
    %3242 = vmax.xlane.f32.xlu0 %v3241
    %v3243 = vpop.xlane.xlu0 %3242
    %v3244 = vsub.f32 %v3238, %v3243
    %v3245 = vmul.f32 %v3244, 1.442695
    %v3246 = vpow.pop %v3245
    %v3247 = vsel %vm177, %v3246, 0.0
    %3248 = vadd.xlane.f32.xlu0 %v3247
    %v3249 = vpop.xlane.xlu0 %3248
    %v3250 = vrcp.pop %v3249
    %v3251 = vmul.f32 %v3246, %v3250
    %3252 = vrot.lane.b32.xlu0 %v1992, 40
    %v3253 = vpop.permute.xlu0 %3252
    %v3256 = vsel %vm177, %v3251, 0
    %3258 = vmatprep.subr.mxu0 0.0
    %3259 = vmatpush1.msra.mxu0 %v3253
    %3260 = vmatprep.subr.mxu0 0.0
    %3261 = vmatpush1.msra.mxu0 0.0
    %3262 = vmatprep.subr.mxu0 0.0
    %3263 = vmatpush1.msra.mxu0 0.0
    %3264 = vmatprep.subr.mxu0 0.0
    %3265 = vmatpush1.msra.mxu0 0.0
    %3266 = vmatprep.subr.mxu0 0.0
    %3267 = vmatpush1.msra.mxu0 0.0
    %3268 = vmatprep.subr.mxu0 0.0
    %3269 = vmatpush1.msra.mxu0 0.0
    %3270 = vmatprep.subr.mxu0 0.0
    %3271 = vmatpush1.msra.mxu0 0.0
    %3272 = vmatprep.subr.mxu0 0.0
    %3273 = vmatpush1.msra.mxu0 0.0
    %3274 = vmatprep.subr.mxu0 0.0
    %3275 = vmatpush1.msra.mxu0 0.0
    %3276 = vmatprep.subr.mxu0 0.0
    %3277 = vmatpush1.msra.mxu0 0.0
    %3278 = vmatprep.subr.mxu0 0.0
    %3279 = vmatpush1.msra.mxu0 0.0
    %3280 = vmatprep.subr.mxu0 0.0
    %3281 = vmatpush1.msra.mxu0 0.0
    %3282 = vmatprep.subr.mxu0 0.0
    %3283 = vmatpush1.msra.mxu0 0.0
    %3284 = vmatprep.subr.mxu0 0.0
    %3285 = vmatpush1.msra.mxu0 0.0
    %3286 = vmatprep.subr.mxu0 0.0
    %3287 = vmatpush1.msra.mxu0 0.0
    %3288 = vmatprep.subr.mxu0 0.0
    %3289 = vmatpush1.msra.mxu0 0.0
    %3290 = vmatprep.subr.mxu0 0.0
    %3291 = vmatpush1.msra.mxu0 0.0
    %3292 = vmatprep.subr.mxu0 0.0
    %3293 = vmatpush1.msra.mxu0 0.0
    %3294 = vmatprep.subr.mxu0 0.0
    %3295 = vmatpush1.msra.mxu0 0.0
    %3296 = vmatprep.subr.mxu0 0.0
    %3297 = vmatpush1.msra.mxu0 0.0
    %3298 = vmatprep.subr.mxu0 0.0
    %3299 = vmatpush1.msra.mxu0 0.0
    %3300 = vmatprep.subr.mxu0 0.0
    %3301 = vmatpush1.msra.mxu0 0.0
    %3302 = vmatprep.subr.mxu0 0.0
    %3303 = vmatpush1.msra.mxu0 0.0
    %3304 = vmatprep.subr.mxu0 0.0
    %3305 = vmatpush1.msra.mxu0 0.0
    %3306 = vmatprep.subr.mxu0 0.0
    %3307 = vmatpush1.msra.mxu0 0.0
    %3308 = vmatprep.subr.mxu0 0.0
    %3309 = vmatpush1.msra.mxu0 0.0
    %3310 = vmatprep.subr.mxu0 0.0
    %3311 = vmatpush1.msra.mxu0 0.0
    %3312 = vmatprep.subr.mxu0 0.0
    %3313 = vmatpush1.msra.mxu0 0.0
    %3314 = vmatprep.subr.mxu0 0.0
    %3315 = vmatpush1.msra.mxu0 0.0
    %3316 = vmatprep.subr.mxu0 0.0
    %3317 = vmatpush1.msra.mxu0 0.0
    %3318 = vmatprep.subr.mxu0 0.0
    %3319 = vmatpush1.msra.mxu0 0.0
    %3320 = vmatprep.subr.mxu0 0.0
    %3321 = vmatpush1.msra.mxu0 0.0
    %3322 = vmatprep.mubr.f32.mxu0 0.0
    %3323 = vmatmul.mubr.f32.gmra.mrb[0].mxu0 %v3256
    %v3324 = vpop.f32.mrb[0].mxu0
    %v3325 = vadd.f32 0.0, %v3324
    %v3326 = vpop.f32.mrb[0].mxu0
    %3327 = vdwg.mxu0
    %3329 = vrot.lane.b32.xlu0 %v2995, 8
    %v3330 = vpop.permute.xlu0 %3329
    %3333 = vrot.lane.b32.xlu0 %v3160, 16
    %v3334 = vpop.permute.xlu0 %3333
    %3337 = vrot.lane.b32.xlu0 %v3325, 24
    %v3338 = vpop.permute.xlu0 %3337
    %v3340 = vsel %vm177, %v2830, %v3330
    %v3341 = vsel %vm847, %v3340, %v3334
    %v3342 = vsel %vm849, %v3341, %v3338
    %s3343 = scalar_lea.vmem %s3, 32
    %v3344 = vld [vmem:[%s3343] sm:$0xff]
    %v3345 = vld [vmem:[%s3343 + $0x8] sm:$0xff]
    %v3346 = vld [vmem:[%s3343 + $0x10] sm:$0xff]
    %v3347 = vld [vmem:[%s3343 + $0x18] sm:$0xff]
    %s3348 = scalar_lea.vmem %s4, 1
    %v3349 = vld [vmem:[%s3348] sm:$0x1]
    %v3351 = vlaneseq
    %v3352 = vshrl.u32 %v3351, 7
    %v3353 = vsub.s32 0, %v3352
    %v3354 = vrot.slane %v3349, %v3353
    %v3357 = vsel %vm92, %v2668, 0
    %v3360 = vsel %vm92, %v3342, 0
    %3362 = vmatprep.subr.mxu0 0.0
    %3363 = vmatpush1.msra.mxu0 %v3344
    %3364 = vmatprep.subr.mxu0 0.0
    %3365 = vmatpush1.msra.mxu0 %v3345
    %3366 = vmatprep.subr.mxu0 0.0
    %3367 = vmatpush1.msra.mxu0 %v3346
    %3368 = vmatprep.subr.mxu0 0.0
    %3369 = vmatpush1.msra.mxu0 %v3347
    %3370 = vmatprep.subr.mxu0 0.0
    %3371 = vmatpush1.msra.mxu0 0.0
    %3372 = vmatprep.subr.mxu0 0.0
    %3373 = vmatpush1.msra.mxu0 0.0
    %3374 = vmatprep.subr.mxu0 0.0
    %3375 = vmatpush1.msra.mxu0 0.0
    %3376 = vmatprep.subr.mxu0 0.0
    %3377 = vmatpush1.msra.mxu0 0.0
    %3378 = vmatprep.subr.mxu0 0.0
    %3379 = vmatpush1.msra.mxu0 0.0
    %3380 = vmatprep.subr.mxu0 0.0
    %3381 = vmatpush1.msra.mxu0 0.0
    %3382 = vmatprep.subr.mxu0 0.0
    %3383 = vmatpush1.msra.mxu0 0.0
    %3384 = vmatprep.subr.mxu0 0.0
    %3385 = vmatpush1.msra.mxu0 0.0
    %3386 = vmatprep.subr.mxu0 0.0
    %3387 = vmatpush1.msra.mxu0 0.0
    %3388 = vmatprep.subr.mxu0 0.0
    %3389 = vmatpush1.msra.mxu0 0.0
    %3390 = vmatprep.subr.mxu0 0.0
    %3391 = vmatpush1.msra.mxu0 0.0
    %3392 = vmatprep.subr.mxu0 0.0
    %3393 = vmatpush1.msra.mxu0 0.0
    %3394 = vmatprep.subr.mxu0 0.0
    %3395 = vmatpush1.msra.mxu0 0.0
    %3396 = vmatprep.subr.mxu0 0.0
    %3397 = vmatpush1.msra.mxu0 0.0
    %3398 = vmatprep.subr.mxu0 0.0
    %3399 = vmatpush1.msra.mxu0 0.0
    %3400 = vmatprep.subr.mxu0 0.0
    %3401 = vmatpush1.msra.mxu0 0.0
    %3402 = vmatprep.subr.mxu0 0.0
    %3403 = vmatpush1.msra.mxu0 0.0
    %3404 = vmatprep.subr.mxu0 0.0
    %3405 = vmatpush1.msra.mxu0 0.0
    %3406 = vmatprep.subr.mxu0 0.0
    %3407 = vmatpush1.msra.mxu0 0.0
    %3408 = vmatprep.subr.mxu0 0.0
    %3409 = vmatpush1.msra.mxu0 0.0
    %3410 = vmatprep.subr.mxu0 0.0
    %3411 = vmatpush1.msra.mxu0 0.0
    %3412 = vmatprep.subr.mxu0 0.0
    %3413 = vmatpush1.msra.mxu0 0.0
    %3414 = vmatprep.subr.mxu0 0.0
    %3415 = vmatpush1.msra.mxu0 0.0
    %3416 = vmatprep.subr.mxu0 0.0
    %3417 = vmatpush1.msra.mxu0 0.0
    %3418 = vmatprep.subr.mxu0 0.0
    %3419 = vmatpush1.msra.mxu0 0.0
    %3420 = vmatprep.subr.mxu0 0.0
    %3421 = vmatpush1.msra.mxu0 0.0
    %3422 = vmatprep.subr.mxu0 0.0
    %3423 = vmatpush1.msra.mxu0 0.0
    %3424 = vmatprep.subr.mxu0 0.0
    %3425 = vmatpush1.msra.mxu0 0.0
    %3426 = vmatprep.mubr.f32.mxu0 0.0
    %3427 = vmatmul.mubr.f32.gmra.mrb[0].mxu0 %v3357
    %v3428 = vpop.f32.mrb[0].mxu0
    %v3429 = vadd.f32 %v3354, %v3428
    %v3430 = vpop.f32.mrb[0].mxu0
    %3431 = vmatprep.mubr.f32.mxu0 0.0
    %3432 = vmatmul.mubr.f32.gmra.mrb[0].mxu0 %v3360
    %v3433 = vpop.f32.mrb[0].mxu0
    %v3434 = vadd.f32 %v3354, %v3433
    %v3435 = vpop.f32.mrb[0].mxu0
    %3436 = vdwg.mxu0
    %v3437 = vadd.f32 %v1899, %v3429
    %v3438 = vadd.f32 %v1900, %v3434
    %s3439 = scalar_lea.vmem %s5, 1
    %v3440 = vld [vmem:[%s3439] sm:$0x1]
    %s3441 = scalar_lea.vmem %s6, 1
    %v3442 = vld [vmem:[%s3441] sm:$0x1]
    %v3443 = vsel %vm92, %v3437, 0.0
    %3444 = vadd.xlane.f32.xlu0 %v3443
    %v3445 = vpop.xlane.xlu0 %3444
    %v3446 = vsel %vm92, %v3438, 0.0
    %3447 = vadd.xlane.f32.xlu0 %v3446
    %v3448 = vpop.xlane.xlu0 %3447
    %v3449 = vmul.f32 %v3445, %v1627
    %v3450 = vmul.f32 %v3448, %v1627
    %v3451 = vsub.f32 %v3437, %v3449
    %v3452 = vsub.f32 %v3438, %v3450
    %v3453 = vmul.f32 %v3451, %v3451
    %v3454 = vmul.f32 %v3452, %v3452
    %v3455 = vsel %vm92, %v3453, 0.0
    %3456 = vadd.xlane.f32.xlu0 %v3455
    %v3457 = vpop.xlane.xlu0 %3456
    %v3458 = vsel %vm92, %v3454, 0.0
    %3459 = vadd.xlane.f32.xlu0 %v3458
    %v3460 = vpop.xlane.xlu0 %3459
    %v3461 = vmul.f32 %v3457, %v1627
    %v3462 = vmul.f32 %v3460, %v1627
    %v3463 = vadd.f32 %v3461, 1e-05
    %v3464 = vadd.f32 %v3462, 1e-05
    %v3465 = vrsqrt.pop %v3463
    %v3466 = vrsqrt.pop %v3464
    %v3467 = vmul.f32 %v3451, %v3465
    %v3468 = vmul.f32 %v3452, %v3466
    %v3470 = vlaneseq
    %v3471 = vshrl.u32 %v3470, 7
    %v3472 = vsub.s32 0, %v3471
    %v3473 = vrot.slane %v3440, %v3472
    %v3475 = vmul.f32 %v3467, %v3473
    %v3476 = vmul.f32 %v3468, %v3473
    %v3478 = vlaneseq
    %v3479 = vshrl.u32 %v3478, 7
    %v3480 = vsub.s32 0, %v3479
    %v3481 = vrot.slane %v3442, %v3480
    %v3483 = vadd.f32 %v3475, %v3481
    %v3484 = vadd.f32 %v3476, %v3481
    %s3485 = scalar_lea.vmem %s7, 32
    %v3486 = vld [vmem:[%s3485] sm:$0xff]
    %v3487 = vld [vmem:[%s3485 + $0x8] sm:$0xff]
    %v3488 = vld [vmem:[%s3485 + $0x10] sm:$0xff]
    %v3489 = vld [vmem:[%s3485 + $0x18] sm:$0xff]
    %s3490 = scalar_lea.vmem [#allocation5], 1
    %v3491 = vld [vmem:[%s3490] sm:$0x1]
    %v3493 = vlaneseq
    %v3494 = vshrl.u32 %v3493, 7
    %v3495 = vsub.s32 0, %v3494
    %v3496 = vrot.slane %v3491, %v3495
    %v3499 = vsel %vm92, %v3483, 0
    %v3502 = vsel %vm92, %v3484, 0
    %3504 = vmatprep.subr.mxu0 0.0
    %3505 = vmatpush1.msra.mxu0 %v3486
    %3506 = vmatprep.subr.mxu0 0.0
    %3507 = vmatpush1.msra.mxu0 %v3487
    %3508 = vmatprep.subr.mxu0 0.0
    %3509 = vmatpush1.msra.mxu0 %v3488
    %3510 = vmatprep.subr.mxu0 0.0
    %3511 = vmatpush1.msra.mxu0 %v3489
    %3512 = vmatprep.subr.mxu0 0.0
    %3513 = vmatpush1.msra.mxu0 0.0
    %3514 = vmatprep.subr.mxu0 0.0
    %3515 = vmatpush1.msra.mxu0 0.0
    %3516 = vmatprep.subr.mxu0 0.0
    %3517 = vmatpush1.msra.mxu0 0.0
    %3518 = vmatprep.subr.mxu0 0.0
    %3519 = vmatpush1.msra.mxu0 0.0
    %3520 = vmatprep.subr.mxu0 0.0
    %3521 = vmatpush1.msra.mxu0 0.0
    %3522 = vmatprep.subr.mxu0 0.0
    %3523 = vmatpush1.msra.mxu0 0.0
    %3524 = vmatprep.subr.mxu0 0.0
    %3525 = vmatpush1.msra.mxu0 0.0
    %3526 = vmatprep.subr.mxu0 0.0
    %3527 = vmatpush1.msra.mxu0 0.0
    %3528 = vmatprep.subr.mxu0 0.0
    %3529 = vmatpush1.msra.mxu0 0.0
    %3530 = vmatprep.subr.mxu0 0.0
    %3531 = vmatpush1.msra.mxu0 0.0
    %3532 = vmatprep.subr.mxu0 0.0
    %3533 = vmatpush1.msra.mxu0 0.0
    %3534 = vmatprep.subr.mxu0 0.0
    %3535 = vmatpush1.msra.mxu0 0.0
    %3536 = vmatprep.subr.mxu0 0.0
    %3537 = vmatpush1.msra.mxu0 0.0
    %3538 = vmatprep.subr.mxu0 0.0
    %3539 = vmatpush1.msra.mxu0 0.0
    %3540 = vmatprep.subr.mxu0 0.0
    %3541 = vmatpush1.msra.mxu0 0.0
    %3542 = vmatprep.subr.mxu0 0.0
    %3543 = vmatpush1.msra.mxu0 0.0
    %3544 = vmatprep.subr.mxu0 0.0
    %3545 = vmatpush1.msra.mxu0 0.0
    %3546 = vmatprep.subr.mxu0 0.0
    %3547 = vmatpush1.msra.mxu0 0.0
    %3548 = vmatprep.subr.mxu0 0.0
    %3549 = vmatpush1.msra.mxu0 0.0
    %3550 = vmatprep.subr.mxu0 0.0
    %3551 = vmatpush1.msra.mxu0 0.0
    %3552 = vmatprep.subr.mxu0 0.0
    %3553 = vmatpush1.msra.mxu0 0.0
    %3554 = vmatprep.subr.mxu0 0.0
    %3555 = vmatpush1.msra.mxu0 0.0
    %3556 = vmatprep.subr.mxu0 0.0
    %3557 = vmatpush1.msra.mxu0 0.0
    %3558 = vmatprep.subr.mxu0 0.0
    %3559 = vmatpush1.msra.mxu0 0.0
    %3560 = vmatprep.subr.mxu0 0.0
    %3561 = vmatpush1.msra.mxu0 0.0
    %3562 = vmatprep.subr.mxu0 0.0
    %3563 = vmatpush1.msra.mxu0 0.0
    %3564 = vmatprep.subr.mxu0 0.0
    %3565 = vmatpush1.msra.mxu0 0.0
    %3566 = vmatprep.subr.mxu0 0.0
    %3567 = vmatpush1.msra.mxu0 0.0
    %3568 = vmatprep.mubr.f32.mxu0 0.0
    %3569 = vmatmul.mubr.f32.gmra.mrb[0].mxu0 %v3499
    %v3570 = vpop.f32.mrb[0].mxu0
    %v3571 = vadd.f32 %v3496, %v3570
    %v3572 = vpop.f32.mrb[0].mxu0
    %3573 = vmatprep.mubr.f32.mxu0 0.0
    %3574 = vmatmul.mubr.f32.gmra.mrb[0].mxu0 %v3502
    %v3575 = vpop.f32.mrb[0].mxu0
    %v3576 = vadd.f32 %v3496, %v3575
    %v3577 = vpop.f32.mrb[0].mxu0
    %3578 = vdwg.mxu0
    %v3579 = vmax.f32 %v3571, 0.0
    %v3580 = vmax.f32 %v3576, 0.0
    %s3581 = scalar_lea.vmem %s9, 64
    %v3582 = vld [vmem:[%s3581] sm:$0xff]
    %v3583 = vld [vmem:[%s3581 + $0x8] sm:$0xff]
    %v3584 = vld [vmem:[%s3581 + $0x10] sm:$0xff]
    %v3585 = vld [vmem:[%s3581 + $0x18] sm:$0xff]
    %v3586 = vld [vmem:[%s3581 + $0x20] sm:$0xff]
    %v3587 = vld [vmem:[%s3581 + $0x28] sm:$0xff]
    %v3588 = vld [vmem:[%s3581 + $0x30] sm:$0xff]
    %v3589 = vld [vmem:[%s3581 + $0x38] sm:$0xff]
    %s3590 = scalar_lea.vmem %s10, 1
    %v3591 = vld [vmem:[%s3590] sm:$0x1]
    %v3593 = vlaneseq
    %v3594 = vshrl.u32 %v3593, 7
    %v3595 = vsub.s32 0, %v3594
    %v3596 = vrot.slane %v3591, %v3595
    %v3599 = vsel %vm1773, %v3579, 0
    %v3602 = vsel %vm1773, %v3580, 0
    %3604 = vmatprep.subr.mxu0 0.0
    %3605 = vmatpush1.msra.mxu0 %v3582
    %3606 = vmatprep.subr.mxu0 0.0
    %3607 = vmatpush1.msra.mxu0 %v3583
    %3608 = vmatprep.subr.mxu0 0.0
    %3609 = vmatpush1.msra.mxu0 %v3584
    %3610 = vmatprep.subr.mxu0 0.0
    %3611 = vmatpush1.msra.mxu0 %v3585
    %3612 = vmatprep.subr.mxu0 0.0
    %3613 = vmatpush1.msra.mxu0 %v3586
    %3614 = vmatprep.subr.mxu0 0.0
    %3615 = vmatpush1.msra.mxu0 %v3587
    %3616 = vmatprep.subr.mxu0 0.0
    %3617 = vmatpush1.msra.mxu0 %v3588
    %3618 = vmatprep.subr.mxu0 0.0
    %3619 = vmatpush1.msra.mxu0 %v3589
    %3620 = vmatprep.subr.mxu0 0.0
    %3621 = vmatpush1.msra.mxu0 0.0
    %3622 = vmatprep.subr.mxu0 0.0
    %3623 = vmatpush1.msra.mxu0 0.0
    %3624 = vmatprep.subr.mxu0 0.0
    %3625 = vmatpush1.msra.mxu0 0.0
    %3626 = vmatprep.subr.mxu0 0.0
    %3627 = vmatpush1.msra.mxu0 0.0
    %3628 = vmatprep.subr.mxu0 0.0
    %3629 = vmatpush1.msra.mxu0 0.0
    %3630 = vmatprep.subr.mxu0 0.0
    %3631 = vmatpush1.msra.mxu0 0.0
    %3632 = vmatprep.subr.mxu0 0.0
    %3633 = vmatpush1.msra.mxu0 0.0
    %3634 = vmatprep.subr.mxu0 0.0
    %3635 = vmatpush1.msra.mxu0 0.0
    %3636 = vmatprep.subr.mxu0 0.0
    %3637 = vmatpush1.msra.mxu0 0.0
    %3638 = vmatprep.subr.mxu0 0.0
    %3639 = vmatpush1.msra.mxu0 0.0
    %3640 = vmatprep.subr.mxu0 0.0
    %3641 = vmatpush1.msra.mxu0 0.0
    %3642 = vmatprep.subr.mxu0 0.0
    %3643 = vmatpush1.msra.mxu0 0.0
    %3644 = vmatprep.subr.mxu0 0.0
    %3645 = vmatpush1.msra.mxu0 0.0
    %3646 = vmatprep.subr.mxu0 0.0
    %3647 = vmatpush1.msra.mxu0 0.0
    %3648 = vmatprep.subr.mxu0 0.0
    %3649 = vmatpush1.msra.mxu0 0.0
    %3650 = vmatprep.subr.mxu0 0.0
    %3651 = vmatpush1.msra.mxu0 0.0
    %3652 = vmatprep.subr.mxu0 0.0
    %3653 = vmatpush1.msra.mxu0 0.0
    %3654 = vmatprep.subr.mxu0 0.0
    %3655 = vmatpush1.msra.mxu0 0.0
    %3656 = vmatprep.subr.mxu0 0.0
    %3657 = vmatpush1.msra.mxu0 0.0
    %3658 = vmatprep.subr.mxu0 0.0
    %3659 = vmatpush1.msra.mxu0 0.0
    %3660 = vmatprep.subr.mxu0 0.0
    %3661 = vmatpush1.msra.mxu0 0.0
    %3662 = vmatprep.subr.mxu0 0.0
    %3663 = vmatpush1.msra.mxu0 0.0
    %3664 = vmatprep.subr.mxu0 0.0
    %3665 = vmatpush1.msra.mxu0 0.0
    %3666 = vmatprep.subr.mxu0 0.0
    %3667 = vmatpush1.msra.mxu0 0.0
    %3668 = vmatprep.mubr.f32.mxu0 0.0
    %3669 = vmatmul.mubr.f32.gmra.mrb[0].mxu0 %v3599
    %v3670 = vpop.f32.mrb[0].mxu0
    %v3671 = vadd.f32 %v3596, %v3670
    %v3672 = vpop.f32.mrb[0].mxu0
    %3673 = vmatprep.mubr.f32.mxu0 0.0
    %3674 = vmatmul.mubr.f32.gmra.mrb[0].mxu0 %v3602
    %v3675 = vpop.f32.mrb[0].mxu0
    %v3676 = vadd.f32 %v3596, %v3675
    %v3677 = vpop.f32.mrb[0].mxu0
    %3678 = vdwg.mxu0
    %v3679 = vadd.f32 %v3483, %v3671
    %v3680 = vadd.f32 %v3484, %v3676
    %s3681 = scalar_lea.vmem %s11, 1
    %v3682 = vld [vmem:[%s3681] sm:$0x1]
    %s3683 = scalar_lea.vmem %s12, 1
    %v3684 = vld [vmem:[%s3683] sm:$0x1]
    %v3685 = vsel %vm92, %v3679, 0.0
    %3686 = vadd.xlane.f32.xlu0 %v3685
    %v3687 = vpop.xlane.xlu0 %3686
    %v3688 = vsel %vm92, %v3680, 0.0
    %3689 = vadd.xlane.f32.xlu0 %v3688
    %v3690 = vpop.xlane.xlu0 %3689
    %v3691 = vmul.f32 %v3687, %v1627
    %v3692 = vmul.f32 %v3690, %v1627
    %v3693 = vsub.f32 %v3679, %v3691
    %v3694 = vsub.f32 %v3680, %v3692
    %v3695 = vmul.f32 %v3693, %v3693
    %v3696 = vmul.f32 %v3694, %v3694
    %v3697 = vsel %vm92, %v3695, 0.0
    %3698 = vadd.xlane.f32.xlu0 %v3697
    %v3699 = vpop.xlane.xlu0 %3698
    %v3700 = vsel %vm92, %v3696, 0.0
    %3701 = vadd.xlane.f32.xlu0 %v3700
    %v3702 = vpop.xlane.xlu0 %3701
    %v3703 = vmul.f32 %v3699, %v1627
    %v3704 = vmul.f32 %v3702, %v1627
    %v3705 = vadd.f32 %v3703, 1e-05
    %v3706 = vadd.f32 %v3704, 1e-05
    %v3707 = vrsqrt.pop %v3705
    %v3708 = vrsqrt.pop %v3706
    %v3709 = vmul.f32 %v3693, %v3707
    %v3710 = vmul.f32 %v3694, %v3708
    %v3712 = vlaneseq
    %v3713 = vshrl.u32 %v3712, 7
    %v3714 = vsub.s32 0, %v3713
    %v3715 = vrot.slane %v3682, %v3714
    %v3717 = vmul.f32 %v3709, %v3715
    %v3718 = vmul.f32 %v3710, %v3715
    %v3720 = vlaneseq
    %v3721 = vshrl.u32 %v3720, 7
    %v3722 = vsub.s32 0, %v3721
    %v3723 = vrot.slane %v3684, %v3722
    %v3725 = vadd.f32 %v3717, %v3723
    %v3726 = vadd.f32 %v3718, %v3723
    %v3727 = vld [vmem:[%s13] sm:$0x1]
    %v3728 = vld [vmem:[%s14] sm:$0x1]
    %v3729 = vsel %vm92, %v3725, 0.0
    %3730 = vadd.xlane.f32.xlu0 %v3729
    %v3731 = vpop.xlane.xlu0 %3730
    %v3732 = vsel %vm92, %v3726, 0.0
    %3733 = vadd.xlane.f32.xlu0 %v3732
    %v3734 = vpop.xlane.xlu0 %3733
    %v3735 = vmul.f32 %v3731, %v1627
    %v3736 = vmul.f32 %v3734, %v1627
    %v3737 = vsub.f32 %v3725, %v3735
    %v3738 = vsub.f32 %v3726, %v3736
    %v3739 = vmul.f32 %v3737, %v3737
    %v3740 = vmul.f32 %v3738, %v3738
    %v3741 = vsel %vm92, %v3739, 0.0
    %3742 = vadd.xlane.f32.xlu0 %v3741
    %v3743 = vpop.xlane.xlu0 %3742
    %v3744 = vsel %vm92, %v3740, 0.0
    %3745 = vadd.xlane.f32.xlu0 %v3744
    %v3746 = vpop.xlane.xlu0 %3745
    %v3747 = vmul.f32 %v3743, %v1627
    %v3748 = vmul.f32 %v3746, %v1627
    %v3749 = vadd.f32 %v3747, 1e-05
    %v3750 = vadd.f32 %v3748, 1e-05
    %v3751 = vrsqrt.pop %v3749
    %v3752 = vrsqrt.pop %v3750
    %v3753 = vmul.f32 %v3737, %v3751
    %v3754 = vmul.f32 %v3738, %v3752
    %v3756 = vlaneseq
    %v3757 = vshrl.u32 %v3756, 7
    %v3758 = vsub.s32 0, %v3757
    %v3759 = vrot.slane %v3727, %v3758
    %v3761 = vmul.f32 %v3753, %v3759
    %v3762 = vmul.f32 %v3754, %v3759
    %v3764 = vlaneseq
    %v3765 = vshrl.u32 %v3764, 7
    %v3766 = vsub.s32 0, %v3765
    %v3767 = vrot.slane %v3728, %v3766
    %v3769 = vadd.f32 %v3761, %v3767
    %v3770 = vadd.f32 %v3762, %v3767
    %3771 = vst.msk [vmem:[#allocation7] sm:$0xff] %vm92, %v3769
    %3772 = vst.msk [vmem:[#allocation7 + $0x8] sm:$0xff] %vm92, %v3770
    // Predicated region
    $region70: #{transformer_encoder.1} parent=1 // pred_check
      _
    $region71: #{transformer_encoder.1} parent=1 // pred_check_branch
      %3774 = sbr.rel (0) target = $region73
    $region72: #{transformer_encoder.1} parent=1 // pred_region
      %s3776 = ssub.s32 256, 256
      %3777 = vsyncadd [#allocation4], %s3776
      %s3778 = sshll.u32 [#allocation7], 4
      %s3779 = int_to_ptr.vmem [resolvable:$true] %s3778
      %3784 = dma.vmem_to_hbm [thread:$0]  %s3779, 256, %s15, [#allocation4], 128, 128, 8
    $region73: #{transformer_encoder.1} parent=1 // pred_fallthru
      _
    // Predicated region
    $region74: #{transformer_encoder.1} parent=1 // pred_check
      _
    $region75: #{transformer_encoder.1} parent=1 // pred_check_branch
      %3786 = sbr.rel (0) target = $region77
    $region76: #{transformer_encoder.1} parent=1 // pred_region
      %3787 = dma.done [#allocation4], 256
    $region77: #{transformer_encoder.1} parent=1 // pred_fallthru
      _
    %3788 = vsyncpa [#allocation3], 1
    %3789 = vsyncpa [#allocation6], 1
    %3790 = vsyncpa [#allocation4], 1

</llo_original>
